<compile_context>
chip_gen: v5e
topology: v5e:2x2
jax: 0.10.0
libtpu: 0.0.40
codegen_flags: <defaults>
</compile_context>

<pallas_src>
import numpy as np
import jax
import jax.numpy as jnp
from jax.experimental import pallas as pl
from jax.experimental.pallas import tpu as pltpu

EPS = 1e-5


# ---------------------------------------------------------------------------
# In-kernel helpers (all pure jnp on register values)
# ---------------------------------------------------------------------------
def _pad_hw(x3, ph, pw):
    # x3: [B, H, L] -> zero-pad ph rows on each side of axis 1, pw lanes on each side of axis 2.
    B, H, L = x3.shape
    zw = jnp.zeros((B, H, pw), x3.dtype)
    x3 = jnp.concatenate([zw, x3, zw], axis=2)
    zh = jnp.zeros((B, ph, L + 2 * pw), x3.dtype)
    return jnp.concatenate([zh, x3, zh], axis=1)


def _pool2x2(y, Wd, C):
    # y: [B*H, Wd*C], rows=(b,h), lanes=(w,c).  2x2/stride-2 max-pool, fully in-register.
    half_rows = y.shape[0] // 2
    yr = y.reshape(half_rows, 2 * Wd * C)              # (h even | h odd) row pairs -> lanes
    hp = jnp.maximum(yr[:, :Wd * C], yr[:, Wd * C:])   # h-pool
    parts = [jnp.maximum(hp[:, (2 * j) * C:(2 * j + 1) * C],
                         hp[:, (2 * j + 1) * C:(2 * j + 2) * C])
             for j in range(Wd // 2)]                  # w-pool over adjacent C-lane groups
    return jnp.concatenate(parts, axis=1)              # [B*H/2, (Wd/2)*C]


def _lane_group_sum(v, groups, width):
    # v: [1, groups*width] -> [1, width]; sum the `groups` lane blocks.
    acc = v[:, :width]
    for g in range(1, groups):
        acc = acc + v[:, g * width:(g + 1) * width]
    return acc


def _bn_lanes(x, Wd, C, gamma, beta):
    # Training-mode BatchNorm2d in the (rows=(b,h), lanes=(w,c)) layout.
    n = x.shape[0] * Wd                                 # elements per channel = B*H*W
    mu_c = _lane_group_sum(jnp.sum(x, axis=0, keepdims=True), Wd, C) / n      # [1, C]
    d = x - jnp.tile(mu_c, (1, Wd))
    var_c = _lane_group_sum(jnp.sum(d * d, axis=0, keepdims=True), Wd, C) / n  # [1, C]
    scale_c = gamma * jax.lax.rsqrt(var_c + EPS)
    return d * jnp.tile(scale_c, (1, Wd)) + jnp.tile(beta, (1, Wd))


def _bn_rows(x, gamma, beta):
    # Training-mode BatchNorm1d: per-column stats over rows (biased variance).
    n = x.shape[0]
    mu = jnp.sum(x, axis=0, keepdims=True) / n
    d = x - mu
    var = jnp.sum(d * d, axis=0, keepdims=True) / n
    return d * jax.lax.rsqrt(var + EPS) * gamma + beta


# ---------------------------------------------------------------------------
# Fused kernel: conv1+relu -> pool1 -> bn1 -> conv2+relu -> pool2 -> bn2 -> fc -> bn3
# ---------------------------------------------------------------------------
def fused_cnn_kernel(x_ref, w1b_ref, b1_ref, g1_ref, be1_ref,
                     w2b_ref, b2_ref, g2_ref, be2_ref,
                     wfc_ref, bfc_ref, g3_ref, be3_ref,
                     out_ref):
    f32 = jnp.float32
    B = x_ref.shape[0]

    # ---- conv1 (+bias, ReLU): banded-weight GEMMs, output lanes = (w16, cout16) ----
    xp = _pad_hw(x_ref[...], 2, 2)                     # [B, 20, 20]
    y1 = jnp.zeros((B * 16, 256), f32)
    for kh in range(5):                                # 5 accumulating MXU calls, K = 20
        lhs = xp[:, kh:kh + 16, :].reshape(B * 16, 20)
        y1 = y1 + jnp.dot(lhs, w1b_ref[kh], preferred_element_type=f32)
    y1 = jnp.maximum(y1 + b1_ref[...], 0.0)            # [B*16, 256], rows (b,h)

    # ---- maxpool1 + bn1 ------------------------------------------------------------
    p1 = _pool2x2(y1, 16, 16)                          # [B*8, 128], lanes (w8, c16)
    h1 = _bn_lanes(p1, 8, 16, g1_ref[...], be1_ref[...])

    # ---- conv2 (+bias, ReLU): banded-weight GEMMs over 192 lanes --------------------
    h1p = _pad_hw(h1.reshape(B, 8, 128), 2, 32)        # [B, 12, 192]; 32 lanes == 2 w-positions
    y2 = jnp.zeros((B * 8, 256), f32)
    for kh in range(5):                                # 5 accumulating MXU calls, K = 192
        lhs = h1p[:, kh:kh + 8, :].reshape(B * 8, 192)
        y2 = y2 + jnp.dot(lhs, w2b_ref[kh], preferred_element_type=f32)
    y2 = jnp.maximum(y2 + b2_ref[...], 0.0)            # [B*8, 256], lanes (w8, c32)

    # ---- maxpool2 + bn2 ------------------------------------------------------------
    p2 = _pool2x2(y2, 8, 32)                           # [B*4, 128], lanes (w4, c32)
    h2 = _bn_lanes(p2, 4, 32, g2_ref[...], be2_ref[...])

    # ---- flatten + fc1 + bn3 --------------------------------------------------------
    # wfc is pre-permuted to (h, w, c) row order, so the flatten is a single reshape.
    flat = h2.reshape(B, 512)
    y3 = jnp.dot(flat, wfc_ref[...], preferred_element_type=f32) + bfc_ref[...]
    out_ref[...] = _bn_rows(y3, g3_ref[...], be3_ref[...])


# ---------------------------------------------------------------------------
# Wrapper
# ---------------------------------------------------------------------------
def custom_cnn_forward(x_nchw, q):
    B = x_nchw.shape[0]
    x = x_nchw.reshape(B, 16, 16)                      # Cin == 1

    flops = B * (2 * 5 * 16 * 20 * 256 + 2 * 5 * 8 * 192 * 256 + 2 * 512 * 10)
    bytes_accessed = 4 * (B * 256 + 5 * 20 * 256 + 5 * 192 * 256 + 512 * 10
                          + 2 * 256 + 2 * (16 + 32) + 3 * 10 + B * 10)
    vmem = pl.BlockSpec(memory_space=pltpu.MemorySpace.VMEM)

    return pl.pallas_call(
        fused_cnn_kernel,
        out_shape=jax.ShapeDtypeStruct((B, 10), jnp.float32),
        in_specs=[vmem] * 13,
        out_specs=vmem,
        compiler_params=pltpu.CompilerParams(vmem_limit_bytes=32 * 1024 * 1024),
        cost_estimate=pl.CostEstimate(
            flops=flops, transcendentals=58, bytes_accessed=bytes_accessed),
    )(x, q["w1b"], q["b1t"], q["g1"], q["be1"],
      q["w2b"], q["b2t"], q["g2"], q["be2"],
      q["wfc"], q["bfc"], q["g3"], q["be3"])


# ---------------------------------------------------------------------------
# Parameter init / one-time layout preparation
# ---------------------------------------------------------------------------
def init_params(key):
    ks = jax.random.split(key, 6)
    p = {}
    # PyTorch layouts: conv weight [Cout, Cin, K, K], linear weight [out, in]
    p["w1"] = 0.1 * jax.random.normal(ks[0], (16, 1, 5, 5), jnp.float32)
    p["b1"] = 0.1 * jax.random.normal(ks[1], (16,), jnp.float32)
    p["w2"] = 0.05 * jax.random.normal(ks[2], (32, 16, 5, 5), jnp.float32)
    p["b2"] = 0.05 * jax.random.normal(ks[3], (32,), jnp.float32)
    p["wfc"] = 0.05 * jax.random.normal(ks[4], (10, 32 * 4 * 4), jnp.float32)
    p["bfc"] = 0.05 * jax.random.normal(ks[5], (10,), jnp.float32)
    # BatchNorm affine params (PyTorch default init: gamma=1, beta=0)
    p["g1"], p["be1"] = jnp.ones((16,), jnp.float32), jnp.zeros((16,), jnp.float32)
    p["g2"], p["be2"] = jnp.ones((32,), jnp.float32), jnp.zeros((32,), jnp.float32)
    p["g3"], p["be3"] = jnp.ones((10,), jnp.float32), jnp.zeros((10,), jnp.float32)
    return p


def prepare_params(p):
    """One-time weight layout transforms (hoisted out of the per-call forward).

    Banded conv weights: w_b[kh, w_in*Cin + cin, w_out*Cout + cout] =
        W[cout, cin, kh, w_in - w_out] if 0 <= w_in - w_out <= 4 else 0,
    so that each kh row-shifted activation slab times w_b[kh] computes the conv directly
    in the (rows=(b,h), lanes=(w,c)) layout — no im2col needed.
    """
    q = {}

    w1 = np.asarray(p["w1"], np.float32)                      # [16, 1, 5, 5]
    w1b = np.zeros((5, 20, 16, 16), np.float32)               # [kh, w_in, w_out, cout]
    for kh in range(5):
        for kw in range(5):
            for wo in range(16):
                w1b[kh, wo + kw, wo, :] = w1[:, 0, kh, kw]
    q["w1b"] = jnp.asarray(w1b.reshape(5, 20, 256))

    w2 = np.asarray(p["w2"], np.float32)                      # [32, 16, 5, 5]
    w2b = np.zeros((5, 12, 16, 8, 32), np.float32)            # [kh, w_in, cin, w_out, cout]
    for kh in range(5):
        for kw in range(5):
            for wo in range(8):
                w2b[kh, wo + kw, :, wo, :] = w2[:, :, kh, kw].T
    q["w2b"] = jnp.asarray(w2b.reshape(5, 192, 256))

    # Fold torch's NCHW flatten (c*16 + h*4 + w) into the fc weight row order used by the
    # kernel's (h*4 + w)*32 + c flatten:
    q["wfc"] = jnp.transpose(p["wfc"].reshape(10, 32, 4, 4), (2, 3, 1, 0)).reshape(512, 10)

    # Biases tiled to the (w, c) lane layout.
    q["b1t"] = jnp.tile(p["b1"], 16).reshape(1, 256)
    q["b2t"] = jnp.tile(p["b2"], 8).reshape(1, 256)
    q["bfc"] = p["bfc"].reshape(1, 10)
    q["g1"], q["be1"] = p["g1"].reshape(1, 16), p["be1"].reshape(1, 16)
    q["g2"], q["be2"] = p["g2"].reshape(1, 32), p["be2"].reshape(1, 32)
    q["g3"], q["be3"] = p["g3"].reshape(1, 10), p["be3"].reshape(1, 10)
    return q


# ---------------------------------------------------------------------------
# Pure-JAX reference (XLA), used only as a correctness check in __main__.
# ---------------------------------------------------------------------------
def reference_forward(x, p):
    def conv(h, w, b):
        y = jax.lax.conv_general_dilated(h, w, (1, 1), ((2, 2), (2, 2)),
                                         dimension_numbers=("NCHW", "OIHW", "NCHW"))
        return y + b.reshape(1, -1, 1, 1)

    def pool(h):
        Bb, C, H, W = h.shape
        return h.reshape(Bb, C, H // 2, 2, W // 2, 2).max(axis=(3, 5))

    def bn(h, g, b, axes):
        mu = jnp.mean(h, axis=axes, keepdims=True)
        var = jnp.mean((h - mu) ** 2, axis=axes, keepdims=True)
        return (h - mu) * jax.lax.rsqrt(var + EPS) * g + b

    h = jnp.maximum(conv(x, p["w1"], p["b1"]), 0.0)
    h = bn(pool(h), p["g1"].reshape(1, -1, 1, 1), p["be1"].reshape(1, -1, 1, 1), (0, 2, 3))
    h = jnp.maximum(conv(h, p["w2"], p["b2"]), 0.0)
    h = bn(pool(h), p["g2"].reshape(1, -1, 1, 1), p["be2"].reshape(1, -1, 1, 1), (0, 2, 3))
    h = h.reshape(h.shape[0], -1) @ p["wfc"].T + p["bfc"]
    return bn(h, p["g3"], p["be3"], (0,))


if __name__ == "__main__":
    key = jax.random.PRNGKey(0)
    kx, kp = jax.random.split(key)
    raw_params = init_params(kp)
    params = prepare_params(raw_params)
    x = jax.random.normal(kx, (2, 1, 16, 16), jnp.float32)

    fwd = jax.jit(lambda xx: custom_cnn_forward(xx, params))
    out = fwd(x)
    jax.block_until_ready(out)

    assert out.shape == (2, 10) and out.dtype == jnp.float32
    assert bool(jnp.all(jnp.isfinite(out)))

    ref = jax.jit(lambda xx: reference_forward(xx, raw_params))(x)
    jax.block_until_ready(ref)
    assert bool(jnp.allclose(out, ref, rtol=3e-2, atol=3e-2)), (out, ref)

    print("KERNEL_OK")
</pallas_src>

<mosaic_0001>
module attributes {stable_mosaic.version = 11 : i64} {
  func.func @fused_cnn_kernel(%arg0: memref<2x16x16xf32, #tpu.memory_space<vmem>>, %arg1: memref<5x20x256xf32, #tpu.memory_space<vmem>>, %arg2: memref<1x256xf32, #tpu.memory_space<vmem>>, %arg3: memref<1x16xf32, #tpu.memory_space<vmem>>, %arg4: memref<1x16xf32, #tpu.memory_space<vmem>>, %arg5: memref<5x192x256xf32, #tpu.memory_space<vmem>>, %arg6: memref<1x256xf32, #tpu.memory_space<vmem>>, %arg7: memref<1x32xf32, #tpu.memory_space<vmem>>, %arg8: memref<1x32xf32, #tpu.memory_space<vmem>>, %arg9: memref<512x10xf32, #tpu.memory_space<vmem>>, %arg10: memref<1x10xf32, #tpu.memory_space<vmem>>, %arg11: memref<1x10xf32, #tpu.memory_space<vmem>>, %arg12: memref<1x10xf32, #tpu.memory_space<vmem>>, %arg13: memref<2x10xf32, #tpu.memory_space<vmem>>) attributes {dimension_semantics = [], scalar_prefetch = 0 : i64, scratch_operands = 0 : i64, tpu.core_type = #tpu.core_type<tc>} {
    %c0 = arith.constant 0 : index
    %c0_0 = arith.constant 0 : index
    %c0_1 = arith.constant 0 : index
    %0 = vector.load %arg0[%c0, %c0_0, %c0_1] : memref<2x16x16xf32, #tpu.memory_space<vmem>>, vector<2x16x16xf32>
    %cst = arith.constant 0.000000e+00 : f32
    %1 = vector.broadcast %cst : f32 to vector<2x16x2xf32>
    %2 = tpu.concatenate %1, %0, %1 in 2 : vector<2x16x2xf32>, vector<2x16x16xf32>, vector<2x16x2xf32> -> vector<2x16x20xf32>
    %cst_2 = arith.constant 0.000000e+00 : f32
    %3 = vector.broadcast %cst_2 : f32 to vector<2x2x20xf32>
    %4 = tpu.concatenate %3, %2, %3 in 1 : vector<2x2x20xf32>, vector<2x16x20xf32>, vector<2x2x20xf32> -> vector<2x20x20xf32>
    %cst_3 = arith.constant 0.000000e+00 : f32
    %5 = vector.broadcast %cst_3 : f32 to vector<32x256xf32>
    %6 = vector.extract_strided_slice %4 {offsets = [0, 0, 0], sizes = [2, 16, 20], strides = [1, 1, 1]} : vector<2x20x20xf32> to vector<2x16x20xf32>
    %7 = vector.shape_cast %6 : vector<2x16x20xf32> to vector<32x20xf32>
    %c0_4 = arith.constant 0 : index
    %c0_5 = arith.constant 0 : index
    %c0_6 = arith.constant 0 : index
    %8 = vector.load %arg1[%c0_4, %c0_5, %c0_6] : memref<5x20x256xf32, #tpu.memory_space<vmem>>, vector<1x20x256xf32>
    %9 = vector.shape_cast %8 : vector<1x20x256xf32> to vector<20x256xf32>
    %cst_7 = arith.constant dense<0.000000e+00> : vector<32x256xf32>
    %10 = tpu.matmul %7, %9, %cst_7 {dimension_numbers = #tpu.dot_dimension_numbers<[1], [0], [0], [1], [0, 0, 1, 1], [], []>} : vector<32x20xf32>, vector<20x256xf32>, vector<32x256xf32> -> vector<32x256xf32>
    %11 = arith.addf %5, %10 : vector<32x256xf32>
    %12 = vector.extract_strided_slice %4 {offsets = [0, 1, 0], sizes = [2, 16, 20], strides = [1, 1, 1]} : vector<2x20x20xf32> to vector<2x16x20xf32>
    %13 = vector.shape_cast %12 : vector<2x16x20xf32> to vector<32x20xf32>
    %c1 = arith.constant 1 : index
    %c0_8 = arith.constant 0 : index
    %c0_9 = arith.constant 0 : index
    %14 = vector.load %arg1[%c1, %c0_8, %c0_9] : memref<5x20x256xf32, #tpu.memory_space<vmem>>, vector<1x20x256xf32>
    %15 = vector.shape_cast %14 : vector<1x20x256xf32> to vector<20x256xf32>
    %cst_10 = arith.constant dense<0.000000e+00> : vector<32x256xf32>
    %16 = tpu.matmul %13, %15, %cst_10 {dimension_numbers = #tpu.dot_dimension_numbers<[1], [0], [0], [1], [0, 0, 1, 1], [], []>} : vector<32x20xf32>, vector<20x256xf32>, vector<32x256xf32> -> vector<32x256xf32>
    %17 = arith.addf %11, %16 : vector<32x256xf32>
    %18 = vector.extract_strided_slice %4 {offsets = [0, 2, 0], sizes = [2, 16, 20], strides = [1, 1, 1]} : vector<2x20x20xf32> to vector<2x16x20xf32>
    %19 = vector.shape_cast %18 : vector<2x16x20xf32> to vector<32x20xf32>
    %c2 = arith.constant 2 : index
    %c0_11 = arith.constant 0 : index
    %c0_12 = arith.constant 0 : index
    %20 = vector.load %arg1[%c2, %c0_11, %c0_12] : memref<5x20x256xf32, #tpu.memory_space<vmem>>, vector<1x20x256xf32>
    %21 = vector.shape_cast %20 : vector<1x20x256xf32> to vector<20x256xf32>
    %cst_13 = arith.constant dense<0.000000e+00> : vector<32x256xf32>
    %22 = tpu.matmul %19, %21, %cst_13 {dimension_numbers = #tpu.dot_dimension_numbers<[1], [0], [0], [1], [0, 0, 1, 1], [], []>} : vector<32x20xf32>, vector<20x256xf32>, vector<32x256xf32> -> vector<32x256xf32>
    %23 = arith.addf %17, %22 : vector<32x256xf32>
    %24 = vector.extract_strided_slice %4 {offsets = [0, 3, 0], sizes = [2, 16, 20], strides = [1, 1, 1]} : vector<2x20x20xf32> to vector<2x16x20xf32>
    %25 = vector.shape_cast %24 : vector<2x16x20xf32> to vector<32x20xf32>
    %c3 = arith.constant 3 : index
    %c0_14 = arith.constant 0 : index
    %c0_15 = arith.constant 0 : index
    %26 = vector.load %arg1[%c3, %c0_14, %c0_15] : memref<5x20x256xf32, #tpu.memory_space<vmem>>, vector<1x20x256xf32>
    %27 = vector.shape_cast %26 : vector<1x20x256xf32> to vector<20x256xf32>
    %cst_16 = arith.constant dense<0.000000e+00> : vector<32x256xf32>
    %28 = tpu.matmul %25, %27, %cst_16 {dimension_numbers = #tpu.dot_dimension_numbers<[1], [0], [0], [1], [0, 0, 1, 1], [], []>} : vector<32x20xf32>, vector<20x256xf32>, vector<32x256xf32> -> vector<32x256xf32>
    %29 = arith.addf %23, %28 : vector<32x256xf32>
    %30 = vector.extract_strided_slice %4 {offsets = [0, 4, 0], sizes = [2, 16, 20], strides = [1, 1, 1]} : vector<2x20x20xf32> to vector<2x16x20xf32>
    %31 = vector.shape_cast %30 : vector<2x16x20xf32> to vector<32x20xf32>
    %c4 = arith.constant 4 : index
    %c0_17 = arith.constant 0 : index
    %c0_18 = arith.constant 0 : index
    %32 = vector.load %arg1[%c4, %c0_17, %c0_18] : memref<5x20x256xf32, #tpu.memory_space<vmem>>, vector<1x20x256xf32>
    %33 = vector.shape_cast %32 : vector<1x20x256xf32> to vector<20x256xf32>
    %cst_19 = arith.constant dense<0.000000e+00> : vector<32x256xf32>
    %34 = tpu.matmul %31, %33, %cst_19 {dimension_numbers = #tpu.dot_dimension_numbers<[1], [0], [0], [1], [0, 0, 1, 1], [], []>} : vector<32x20xf32>, vector<20x256xf32>, vector<32x256xf32> -> vector<32x256xf32>
    %35 = arith.addf %29, %34 : vector<32x256xf32>
    %c0_20 = arith.constant 0 : index
    %c0_21 = arith.constant 0 : index
    %36 = vector.load %arg2[%c0_20, %c0_21] : memref<1x256xf32, #tpu.memory_space<vmem>>, vector<1x256xf32>
    %37 = vector.broadcast %36 : vector<1x256xf32> to vector<32x256xf32>
    %38 = arith.addf %35, %37 : vector<32x256xf32>
    %cst_22 = arith.constant 0.000000e+00 : f32
    %39 = vector.broadcast %cst_22 : f32 to vector<32x256xf32>
    %40 = arith.maximumf %38, %39 : vector<32x256xf32>
    %41 = vector.shape_cast %40 : vector<32x256xf32> to vector<16x512xf32>
    %42 = vector.extract_strided_slice %41 {offsets = [0, 0], sizes = [16, 256], strides = [1, 1]} : vector<16x512xf32> to vector<16x256xf32>
    %43 = vector.extract_strided_slice %41 {offsets = [0, 256], sizes = [16, 256], strides = [1, 1]} : vector<16x512xf32> to vector<16x256xf32>
    %44 = arith.maximumf %42, %43 : vector<16x256xf32>
    %45 = vector.extract_strided_slice %44 {offsets = [0, 0], sizes = [16, 16], strides = [1, 1]} : vector<16x256xf32> to vector<16x16xf32>
    %46 = vector.extract_strided_slice %44 {offsets = [0, 16], sizes = [16, 16], strides = [1, 1]} : vector<16x256xf32> to vector<16x16xf32>
    %47 = arith.maximumf %45, %46 : vector<16x16xf32>
    %48 = vector.extract_strided_slice %44 {offsets = [0, 32], sizes = [16, 16], strides = [1, 1]} : vector<16x256xf32> to vector<16x16xf32>
    %49 = vector.extract_strided_slice %44 {offsets = [0, 48], sizes = [16, 16], strides = [1, 1]} : vector<16x256xf32> to vector<16x16xf32>
    %50 = arith.maximumf %48, %49 : vector<16x16xf32>
    %51 = vector.extract_strided_slice %44 {offsets = [0, 64], sizes = [16, 16], strides = [1, 1]} : vector<16x256xf32> to vector<16x16xf32>
    %52 = vector.extract_strided_slice %44 {offsets = [0, 80], sizes = [16, 16], strides = [1, 1]} : vector<16x256xf32> to vector<16x16xf32>
    %53 = arith.maximumf %51, %52 : vector<16x16xf32>
    %54 = vector.extract_strided_slice %44 {offsets = [0, 96], sizes = [16, 16], strides = [1, 1]} : vector<16x256xf32> to vector<16x16xf32>
    %55 = vector.extract_strided_slice %44 {offsets = [0, 112], sizes = [16, 16], strides = [1, 1]} : vector<16x256xf32> to vector<16x16xf32>
    %56 = arith.maximumf %54, %55 : vector<16x16xf32>
    %57 = vector.extract_strided_slice %44 {offsets = [0, 128], sizes = [16, 16], strides = [1, 1]} : vector<16x256xf32> to vector<16x16xf32>
    %58 = vector.extract_strided_slice %44 {offsets = [0, 144], sizes = [16, 16], strides = [1, 1]} : vector<16x256xf32> to vector<16x16xf32>
    %59 = arith.maximumf %57, %58 : vector<16x16xf32>
    %60 = vector.extract_strided_slice %44 {offsets = [0, 160], sizes = [16, 16], strides = [1, 1]} : vector<16x256xf32> to vector<16x16xf32>
    %61 = vector.extract_strided_slice %44 {offsets = [0, 176], sizes = [16, 16], strides = [1, 1]} : vector<16x256xf32> to vector<16x16xf32>
    %62 = arith.maximumf %60, %61 : vector<16x16xf32>
    %63 = vector.extract_strided_slice %44 {offsets = [0, 192], sizes = [16, 16], strides = [1, 1]} : vector<16x256xf32> to vector<16x16xf32>
    %64 = vector.extract_strided_slice %44 {offsets = [0, 208], sizes = [16, 16], strides = [1, 1]} : vector<16x256xf32> to vector<16x16xf32>
    %65 = arith.maximumf %63, %64 : vector<16x16xf32>
    %66 = vector.extract_strided_slice %44 {offsets = [0, 224], sizes = [16, 16], strides = [1, 1]} : vector<16x256xf32> to vector<16x16xf32>
    %67 = vector.extract_strided_slice %44 {offsets = [0, 240], sizes = [16, 16], strides = [1, 1]} : vector<16x256xf32> to vector<16x16xf32>
    %68 = arith.maximumf %66, %67 : vector<16x16xf32>
    %69 = tpu.concatenate %47, %50, %53, %56, %59, %62, %65, %68 in 1 : vector<16x16xf32>, vector<16x16xf32>, vector<16x16xf32>, vector<16x16xf32>, vector<16x16xf32>, vector<16x16xf32>, vector<16x16xf32>, vector<16x16xf32> -> vector<16x128xf32>
    %c0_23 = arith.constant 0 : index
    %c0_24 = arith.constant 0 : index
    %70 = vector.load %arg3[%c0_23, %c0_24] : memref<1x16xf32, #tpu.memory_space<vmem>>, vector<1x16xf32>
    %c0_25 = arith.constant 0 : index
    %c0_26 = arith.constant 0 : index
    %71 = vector.load %arg4[%c0_25, %c0_26] : memref<1x16xf32, #tpu.memory_space<vmem>>, vector<1x16xf32>
    %cst_27 = arith.constant dense<0.000000e+00> : vector<128xf32>
    %72 = vector.multi_reduction <add>, %69, %cst_27 [0] : vector<16x128xf32> to vector<128xf32>
    %73 = vector.shape_cast %72 : vector<128xf32> to vector<1x128xf32>
    %74 = vector.extract_strided_slice %73 {offsets = [0, 0], sizes = [1, 16], strides = [1, 1]} : vector<1x128xf32> to vector<1x16xf32>
    %75 = vector.extract_strided_slice %73 {offsets = [0, 16], sizes = [1, 16], strides = [1, 1]} : vector<1x128xf32> to vector<1x16xf32>
    %76 = arith.addf %74, %75 : vector<1x16xf32>
    %77 = vector.extract_strided_slice %73 {offsets = [0, 32], sizes = [1, 16], strides = [1, 1]} : vector<1x128xf32> to vector<1x16xf32>
    %78 = arith.addf %76, %77 : vector<1x16xf32>
    %79 = vector.extract_strided_slice %73 {offsets = [0, 48], sizes = [1, 16], strides = [1, 1]} : vector<1x128xf32> to vector<1x16xf32>
    %80 = arith.addf %78, %79 : vector<1x16xf32>
    %81 = vector.extract_strided_slice %73 {offsets = [0, 64], sizes = [1, 16], strides = [1, 1]} : vector<1x128xf32> to vector<1x16xf32>
    %82 = arith.addf %80, %81 : vector<1x16xf32>
    %83 = vector.extract_strided_slice %73 {offsets = [0, 80], sizes = [1, 16], strides = [1, 1]} : vector<1x128xf32> to vector<1x16xf32>
    %84 = arith.addf %82, %83 : vector<1x16xf32>
    %85 = vector.extract_strided_slice %73 {offsets = [0, 96], sizes = [1, 16], strides = [1, 1]} : vector<1x128xf32> to vector<1x16xf32>
    %86 = arith.addf %84, %85 : vector<1x16xf32>
    %87 = vector.extract_strided_slice %73 {offsets = [0, 112], sizes = [1, 16], strides = [1, 1]} : vector<1x128xf32> to vector<1x16xf32>
    %88 = arith.addf %86, %87 : vector<1x16xf32>
    %cst_28 = arith.constant 1.280000e+02 : f32
    %89 = vector.broadcast %cst_28 : f32 to vector<1x16xf32>
    %90 = arith.divf %88, %89 : vector<1x16xf32>
    %91 = tpu.concatenate %90, %90, %90, %90, %90, %90, %90, %90 in 1 : vector<1x16xf32>, vector<1x16xf32>, vector<1x16xf32>, vector<1x16xf32>, vector<1x16xf32>, vector<1x16xf32>, vector<1x16xf32>, vector<1x16xf32> -> vector<1x128xf32>
    %92 = vector.broadcast %91 : vector<1x128xf32> to vector<16x128xf32>
    %93 = arith.subf %69, %92 : vector<16x128xf32>
    %94 = arith.mulf %93, %93 : vector<16x128xf32>
    %cst_29 = arith.constant dense<0.000000e+00> : vector<128xf32>
    %95 = vector.multi_reduction <add>, %94, %cst_29 [0] : vector<16x128xf32> to vector<128xf32>
    %96 = vector.shape_cast %95 : vector<128xf32> to vector<1x128xf32>
    %97 = vector.extract_strided_slice %96 {offsets = [0, 0], sizes = [1, 16], strides = [1, 1]} : vector<1x128xf32> to vector<1x16xf32>
    %98 = vector.extract_strided_slice %96 {offsets = [0, 16], sizes = [1, 16], strides = [1, 1]} : vector<1x128xf32> to vector<1x16xf32>
    %99 = arith.addf %97, %98 : vector<1x16xf32>
    %100 = vector.extract_strided_slice %96 {offsets = [0, 32], sizes = [1, 16], strides = [1, 1]} : vector<1x128xf32> to vector<1x16xf32>
    %101 = arith.addf %99, %100 : vector<1x16xf32>
    %102 = vector.extract_strided_slice %96 {offsets = [0, 48], sizes = [1, 16], strides = [1, 1]} : vector<1x128xf32> to vector<1x16xf32>
    %103 = arith.addf %101, %102 : vector<1x16xf32>
    %104 = vector.extract_strided_slice %96 {offsets = [0, 64], sizes = [1, 16], strides = [1, 1]} : vector<1x128xf32> to vector<1x16xf32>
    %105 = arith.addf %103, %104 : vector<1x16xf32>
    %106 = vector.extract_strided_slice %96 {offsets = [0, 80], sizes = [1, 16], strides = [1, 1]} : vector<1x128xf32> to vector<1x16xf32>
    %107 = arith.addf %105, %106 : vector<1x16xf32>
    %108 = vector.extract_strided_slice %96 {offsets = [0, 96], sizes = [1, 16], strides = [1, 1]} : vector<1x128xf32> to vector<1x16xf32>
    %109 = arith.addf %107, %108 : vector<1x16xf32>
    %110 = vector.extract_strided_slice %96 {offsets = [0, 112], sizes = [1, 16], strides = [1, 1]} : vector<1x128xf32> to vector<1x16xf32>
    %111 = arith.addf %109, %110 : vector<1x16xf32>
    %cst_30 = arith.constant 1.280000e+02 : f32
    %112 = vector.broadcast %cst_30 : f32 to vector<1x16xf32>
    %113 = arith.divf %111, %112 : vector<1x16xf32>
    %cst_31 = arith.constant 9.99999974E-6 : f32
    %114 = vector.broadcast %cst_31 : f32 to vector<1x16xf32>
    %115 = arith.addf %113, %114 : vector<1x16xf32>
    %116 = math.rsqrt %115 : vector<1x16xf32>
    %117 = arith.mulf %70, %116 : vector<1x16xf32>
    %118 = tpu.concatenate %117, %117, %117, %117, %117, %117, %117, %117 in 1 : vector<1x16xf32>, vector<1x16xf32>, vector<1x16xf32>, vector<1x16xf32>, vector<1x16xf32>, vector<1x16xf32>, vector<1x16xf32>, vector<1x16xf32> -> vector<1x128xf32>
    %119 = vector.broadcast %118 : vector<1x128xf32> to vector<16x128xf32>
    %120 = arith.mulf %93, %119 : vector<16x128xf32>
    %121 = tpu.concatenate %71, %71, %71, %71, %71, %71, %71, %71 in 1 : vector<1x16xf32>, vector<1x16xf32>, vector<1x16xf32>, vector<1x16xf32>, vector<1x16xf32>, vector<1x16xf32>, vector<1x16xf32>, vector<1x16xf32> -> vector<1x128xf32>
    %122 = vector.broadcast %121 : vector<1x128xf32> to vector<16x128xf32>
    %123 = arith.addf %120, %122 : vector<16x128xf32>
    %124 = vector.shape_cast %123 : vector<16x128xf32> to vector<2x8x128xf32>
    %cst_32 = arith.constant 0.000000e+00 : f32
    %125 = vector.broadcast %cst_32 : f32 to vector<2x8x32xf32>
    %126 = tpu.concatenate %125, %124, %125 in 2 : vector<2x8x32xf32>, vector<2x8x128xf32>, vector<2x8x32xf32> -> vector<2x8x192xf32>
    %cst_33 = arith.constant 0.000000e+00 : f32
    %127 = vector.broadcast %cst_33 : f32 to vector<2x2x192xf32>
    %128 = tpu.concatenate %127, %126, %127 in 1 : vector<2x2x192xf32>, vector<2x8x192xf32>, vector<2x2x192xf32> -> vector<2x12x192xf32>
    %cst_34 = arith.constant 0.000000e+00 : f32
    %129 = vector.broadcast %cst_34 : f32 to vector<16x256xf32>
    %130 = vector.extract_strided_slice %128 {offsets = [0, 0, 0], sizes = [2, 8, 192], strides = [1, 1, 1]} : vector<2x12x192xf32> to vector<2x8x192xf32>
    %131 = vector.shape_cast %130 : vector<2x8x192xf32> to vector<16x192xf32>
    %c0_35 = arith.constant 0 : index
    %c0_36 = arith.constant 0 : index
    %c0_37 = arith.constant 0 : index
    %132 = vector.load %arg5[%c0_35, %c0_36, %c0_37] : memref<5x192x256xf32, #tpu.memory_space<vmem>>, vector<1x192x256xf32>
    %133 = vector.shape_cast %132 : vector<1x192x256xf32> to vector<192x256xf32>
    %cst_38 = arith.constant dense<0.000000e+00> : vector<16x256xf32>
    %134 = tpu.matmul %131, %133, %cst_38 {dimension_numbers = #tpu.dot_dimension_numbers<[1], [0], [0], [1], [0, 0, 1, 1], [], []>} : vector<16x192xf32>, vector<192x256xf32>, vector<16x256xf32> -> vector<16x256xf32>
    %135 = arith.addf %129, %134 : vector<16x256xf32>
    %136 = vector.extract_strided_slice %128 {offsets = [0, 1, 0], sizes = [2, 8, 192], strides = [1, 1, 1]} : vector<2x12x192xf32> to vector<2x8x192xf32>
    %137 = vector.shape_cast %136 : vector<2x8x192xf32> to vector<16x192xf32>
    %c1_39 = arith.constant 1 : index
    %c0_40 = arith.constant 0 : index
    %c0_41 = arith.constant 0 : index
    %138 = vector.load %arg5[%c1_39, %c0_40, %c0_41] : memref<5x192x256xf32, #tpu.memory_space<vmem>>, vector<1x192x256xf32>
    %139 = vector.shape_cast %138 : vector<1x192x256xf32> to vector<192x256xf32>
    %cst_42 = arith.constant dense<0.000000e+00> : vector<16x256xf32>
    %140 = tpu.matmul %137, %139, %cst_42 {dimension_numbers = #tpu.dot_dimension_numbers<[1], [0], [0], [1], [0, 0, 1, 1], [], []>} : vector<16x192xf32>, vector<192x256xf32>, vector<16x256xf32> -> vector<16x256xf32>
    %141 = arith.addf %135, %140 : vector<16x256xf32>
    %142 = vector.extract_strided_slice %128 {offsets = [0, 2, 0], sizes = [2, 8, 192], strides = [1, 1, 1]} : vector<2x12x192xf32> to vector<2x8x192xf32>
    %143 = vector.shape_cast %142 : vector<2x8x192xf32> to vector<16x192xf32>
    %c2_43 = arith.constant 2 : index
    %c0_44 = arith.constant 0 : index
    %c0_45 = arith.constant 0 : index
    %144 = vector.load %arg5[%c2_43, %c0_44, %c0_45] : memref<5x192x256xf32, #tpu.memory_space<vmem>>, vector<1x192x256xf32>
    %145 = vector.shape_cast %144 : vector<1x192x256xf32> to vector<192x256xf32>
    %cst_46 = arith.constant dense<0.000000e+00> : vector<16x256xf32>
    %146 = tpu.matmul %143, %145, %cst_46 {dimension_numbers = #tpu.dot_dimension_numbers<[1], [0], [0], [1], [0, 0, 1, 1], [], []>} : vector<16x192xf32>, vector<192x256xf32>, vector<16x256xf32> -> vector<16x256xf32>
    %147 = arith.addf %141, %146 : vector<16x256xf32>
    %148 = vector.extract_strided_slice %128 {offsets = [0, 3, 0], sizes = [2, 8, 192], strides = [1, 1, 1]} : vector<2x12x192xf32> to vector<2x8x192xf32>
    %149 = vector.shape_cast %148 : vector<2x8x192xf32> to vector<16x192xf32>
    %c3_47 = arith.constant 3 : index
    %c0_48 = arith.constant 0 : index
    %c0_49 = arith.constant 0 : index
    %150 = vector.load %arg5[%c3_47, %c0_48, %c0_49] : memref<5x192x256xf32, #tpu.memory_space<vmem>>, vector<1x192x256xf32>
    %151 = vector.shape_cast %150 : vector<1x192x256xf32> to vector<192x256xf32>
    %cst_50 = arith.constant dense<0.000000e+00> : vector<16x256xf32>
    %152 = tpu.matmul %149, %151, %cst_50 {dimension_numbers = #tpu.dot_dimension_numbers<[1], [0], [0], [1], [0, 0, 1, 1], [], []>} : vector<16x192xf32>, vector<192x256xf32>, vector<16x256xf32> -> vector<16x256xf32>
    %153 = arith.addf %147, %152 : vector<16x256xf32>
    %154 = vector.extract_strided_slice %128 {offsets = [0, 4, 0], sizes = [2, 8, 192], strides = [1, 1, 1]} : vector<2x12x192xf32> to vector<2x8x192xf32>
    %155 = vector.shape_cast %154 : vector<2x8x192xf32> to vector<16x192xf32>
    %c4_51 = arith.constant 4 : index
    %c0_52 = arith.constant 0 : index
    %c0_53 = arith.constant 0 : index
    %156 = vector.load %arg5[%c4_51, %c0_52, %c0_53] : memref<5x192x256xf32, #tpu.memory_space<vmem>>, vector<1x192x256xf32>
    %157 = vector.shape_cast %156 : vector<1x192x256xf32> to vector<192x256xf32>
    %cst_54 = arith.constant dense<0.000000e+00> : vector<16x256xf32>
    %158 = tpu.matmul %155, %157, %cst_54 {dimension_numbers = #tpu.dot_dimension_numbers<[1], [0], [0], [1], [0, 0, 1, 1], [], []>} : vector<16x192xf32>, vector<192x256xf32>, vector<16x256xf32> -> vector<16x256xf32>
    %159 = arith.addf %153, %158 : vector<16x256xf32>
    %c0_55 = arith.constant 0 : index
    %c0_56 = arith.constant 0 : index
    %160 = vector.load %arg6[%c0_55, %c0_56] : memref<1x256xf32, #tpu.memory_space<vmem>>, vector<1x256xf32>
    %161 = vector.broadcast %160 : vector<1x256xf32> to vector<16x256xf32>
    %162 = arith.addf %159, %161 : vector<16x256xf32>
    %cst_57 = arith.constant 0.000000e+00 : f32
    %163 = vector.broadcast %cst_57 : f32 to vector<16x256xf32>
    %164 = arith.maximumf %162, %163 : vector<16x256xf32>
    %165 = vector.shape_cast %164 : vector<16x256xf32> to vector<8x512xf32>
    %166 = vector.extract_strided_slice %165 {offsets = [0, 0], sizes = [8, 256], strides = [1, 1]} : vector<8x512xf32> to vector<8x256xf32>
    %167 = vector.extract_strided_slice %165 {offsets = [0, 256], sizes = [8, 256], strides = [1, 1]} : vector<8x512xf32> to vector<8x256xf32>
    %168 = arith.maximumf %166, %167 : vector<8x256xf32>
    %169 = vector.extract_strided_slice %168 {offsets = [0, 0], sizes = [8, 32], strides = [1, 1]} : vector<8x256xf32> to vector<8x32xf32>
    %170 = vector.extract_strided_slice %168 {offsets = [0, 32], sizes = [8, 32], strides = [1, 1]} : vector<8x256xf32> to vector<8x32xf32>
    %171 = arith.maximumf %169, %170 : vector<8x32xf32>
    %172 = vector.extract_strided_slice %168 {offsets = [0, 64], sizes = [8, 32], strides = [1, 1]} : vector<8x256xf32> to vector<8x32xf32>
    %173 = vector.extract_strided_slice %168 {offsets = [0, 96], sizes = [8, 32], strides = [1, 1]} : vector<8x256xf32> to vector<8x32xf32>
    %174 = arith.maximumf %172, %173 : vector<8x32xf32>
    %175 = vector.extract_strided_slice %168 {offsets = [0, 128], sizes = [8, 32], strides = [1, 1]} : vector<8x256xf32> to vector<8x32xf32>
    %176 = vector.extract_strided_slice %168 {offsets = [0, 160], sizes = [8, 32], strides = [1, 1]} : vector<8x256xf32> to vector<8x32xf32>
    %177 = arith.maximumf %175, %176 : vector<8x32xf32>
    %178 = vector.extract_strided_slice %168 {offsets = [0, 192], sizes = [8, 32], strides = [1, 1]} : vector<8x256xf32> to vector<8x32xf32>
    %179 = vector.extract_strided_slice %168 {offsets = [0, 224], sizes = [8, 32], strides = [1, 1]} : vector<8x256xf32> to vector<8x32xf32>
    %180 = arith.maximumf %178, %179 : vector<8x32xf32>
    %181 = tpu.concatenate %171, %174, %177, %180 in 1 : vector<8x32xf32>, vector<8x32xf32>, vector<8x32xf32>, vector<8x32xf32> -> vector<8x128xf32>
    %c0_58 = arith.constant 0 : index
    %c0_59 = arith.constant 0 : index
    %182 = vector.load %arg7[%c0_58, %c0_59] : memref<1x32xf32, #tpu.memory_space<vmem>>, vector<1x32xf32>
    %c0_60 = arith.constant 0 : index
    %c0_61 = arith.constant 0 : index
    %183 = vector.load %arg8[%c0_60, %c0_61] : memref<1x32xf32, #tpu.memory_space<vmem>>, vector<1x32xf32>
    %cst_62 = arith.constant dense<0.000000e+00> : vector<128xf32>
    %184 = vector.multi_reduction <add>, %181, %cst_62 [0] : vector<8x128xf32> to vector<128xf32>
    %185 = vector.shape_cast %184 : vector<128xf32> to vector<1x128xf32>
    %186 = vector.extract_strided_slice %185 {offsets = [0, 0], sizes = [1, 32], strides = [1, 1]} : vector<1x128xf32> to vector<1x32xf32>
    %187 = vector.extract_strided_slice %185 {offsets = [0, 32], sizes = [1, 32], strides = [1, 1]} : vector<1x128xf32> to vector<1x32xf32>
    %188 = arith.addf %186, %187 : vector<1x32xf32>
    %189 = vector.extract_strided_slice %185 {offsets = [0, 64], sizes = [1, 32], strides = [1, 1]} : vector<1x128xf32> to vector<1x32xf32>
    %190 = arith.addf %188, %189 : vector<1x32xf32>
    %191 = vector.extract_strided_slice %185 {offsets = [0, 96], sizes = [1, 32], strides = [1, 1]} : vector<1x128xf32> to vector<1x32xf32>
    %192 = arith.addf %190, %191 : vector<1x32xf32>
    %cst_63 = arith.constant 3.200000e+01 : f32
    %193 = vector.broadcast %cst_63 : f32 to vector<1x32xf32>
    %194 = arith.divf %192, %193 : vector<1x32xf32>
    %195 = tpu.concatenate %194, %194, %194, %194 in 1 : vector<1x32xf32>, vector<1x32xf32>, vector<1x32xf32>, vector<1x32xf32> -> vector<1x128xf32>
    %196 = vector.broadcast %195 : vector<1x128xf32> to vector<8x128xf32>
    %197 = arith.subf %181, %196 : vector<8x128xf32>
    %198 = arith.mulf %197, %197 : vector<8x128xf32>
    %cst_64 = arith.constant dense<0.000000e+00> : vector<128xf32>
    %199 = vector.multi_reduction <add>, %198, %cst_64 [0] : vector<8x128xf32> to vector<128xf32>
    %200 = vector.shape_cast %199 : vector<128xf32> to vector<1x128xf32>
    %201 = vector.extract_strided_slice %200 {offsets = [0, 0], sizes = [1, 32], strides = [1, 1]} : vector<1x128xf32> to vector<1x32xf32>
    %202 = vector.extract_strided_slice %200 {offsets = [0, 32], sizes = [1, 32], strides = [1, 1]} : vector<1x128xf32> to vector<1x32xf32>
    %203 = arith.addf %201, %202 : vector<1x32xf32>
    %204 = vector.extract_strided_slice %200 {offsets = [0, 64], sizes = [1, 32], strides = [1, 1]} : vector<1x128xf32> to vector<1x32xf32>
    %205 = arith.addf %203, %204 : vector<1x32xf32>
    %206 = vector.extract_strided_slice %200 {offsets = [0, 96], sizes = [1, 32], strides = [1, 1]} : vector<1x128xf32> to vector<1x32xf32>
    %207 = arith.addf %205, %206 : vector<1x32xf32>
    %cst_65 = arith.constant 3.200000e+01 : f32
    %208 = vector.broadcast %cst_65 : f32 to vector<1x32xf32>
    %209 = arith.divf %207, %208 : vector<1x32xf32>
    %cst_66 = arith.constant 9.99999974E-6 : f32
    %210 = vector.broadcast %cst_66 : f32 to vector<1x32xf32>
    %211 = arith.addf %209, %210 : vector<1x32xf32>
    %212 = math.rsqrt %211 : vector<1x32xf32>
    %213 = arith.mulf %182, %212 : vector<1x32xf32>
    %214 = tpu.concatenate %213, %213, %213, %213 in 1 : vector<1x32xf32>, vector<1x32xf32>, vector<1x32xf32>, vector<1x32xf32> -> vector<1x128xf32>
    %215 = vector.broadcast %214 : vector<1x128xf32> to vector<8x128xf32>
    %216 = arith.mulf %197, %215 : vector<8x128xf32>
    %217 = tpu.concatenate %183, %183, %183, %183 in 1 : vector<1x32xf32>, vector<1x32xf32>, vector<1x32xf32>, vector<1x32xf32> -> vector<1x128xf32>
    %218 = vector.broadcast %217 : vector<1x128xf32> to vector<8x128xf32>
    %219 = arith.addf %216, %218 : vector<8x128xf32>
    %220 = vector.shape_cast %219 : vector<8x128xf32> to vector<2x512xf32>
    %c0_67 = arith.constant 0 : index
    %c0_68 = arith.constant 0 : index
    %221 = vector.load %arg9[%c0_67, %c0_68] : memref<512x10xf32, #tpu.memory_space<vmem>>, vector<512x10xf32>
    %cst_69 = arith.constant dense<0.000000e+00> : vector<2x10xf32>
    %222 = tpu.matmul %220, %221, %cst_69 {dimension_numbers = #tpu.dot_dimension_numbers<[1], [0], [0], [1], [0, 0, 1, 1], [], []>} : vector<2x512xf32>, vector<512x10xf32>, vector<2x10xf32> -> vector<2x10xf32>
    %c0_70 = arith.constant 0 : index
    %c0_71 = arith.constant 0 : index
    %223 = vector.load %arg10[%c0_70, %c0_71] : memref<1x10xf32, #tpu.memory_space<vmem>>, vector<1x10xf32>
    %224 = vector.broadcast %223 : vector<1x10xf32> to vector<2x10xf32>
    %225 = arith.addf %222, %224 : vector<2x10xf32>
    %c0_72 = arith.constant 0 : index
    %c0_73 = arith.constant 0 : index
    %226 = vector.load %arg11[%c0_72, %c0_73] : memref<1x10xf32, #tpu.memory_space<vmem>>, vector<1x10xf32>
    %c0_74 = arith.constant 0 : index
    %c0_75 = arith.constant 0 : index
    %227 = vector.load %arg12[%c0_74, %c0_75] : memref<1x10xf32, #tpu.memory_space<vmem>>, vector<1x10xf32>
    %cst_76 = arith.constant dense<0.000000e+00> : vector<10xf32>
    %228 = vector.multi_reduction <add>, %225, %cst_76 [0] : vector<2x10xf32> to vector<10xf32>
    %229 = vector.shape_cast %228 : vector<10xf32> to vector<1x10xf32>
    %cst_77 = arith.constant 2.000000e+00 : f32
    %230 = vector.broadcast %cst_77 : f32 to vector<1x10xf32>
    %231 = arith.divf %229, %230 : vector<1x10xf32>
    %232 = vector.broadcast %231 : vector<1x10xf32> to vector<2x10xf32>
    %233 = arith.subf %225, %232 : vector<2x10xf32>
    %234 = arith.mulf %233, %233 : vector<2x10xf32>
    %cst_78 = arith.constant dense<0.000000e+00> : vector<10xf32>
    %235 = vector.multi_reduction <add>, %234, %cst_78 [0] : vector<2x10xf32> to vector<10xf32>
    %236 = vector.shape_cast %235 : vector<10xf32> to vector<1x10xf32>
    %cst_79 = arith.constant 2.000000e+00 : f32
    %237 = vector.broadcast %cst_79 : f32 to vector<1x10xf32>
    %238 = arith.divf %236, %237 : vector<1x10xf32>
    %cst_80 = arith.constant 9.99999974E-6 : f32
    %239 = vector.broadcast %cst_80 : f32 to vector<1x10xf32>
    %240 = arith.addf %238, %239 : vector<1x10xf32>
    %241 = math.rsqrt %240 : vector<1x10xf32>
    %242 = vector.broadcast %241 : vector<1x10xf32> to vector<2x10xf32>
    %243 = arith.mulf %233, %242 : vector<2x10xf32>
    %244 = vector.broadcast %226 : vector<1x10xf32> to vector<2x10xf32>
    %245 = arith.mulf %243, %244 : vector<2x10xf32>
    %246 = vector.broadcast %227 : vector<1x10xf32> to vector<2x10xf32>
    %247 = arith.addf %245, %246 : vector<2x10xf32>
    %c0_81 = arith.constant 0 : index
    %c0_82 = arith.constant 0 : index
    %248 = vector.load %arg13[%c0_81, %c0_82] : memref<2x10xf32, #tpu.memory_space<vmem>>, vector<2x10xf32>
    tpu.vector_store %arg13[%c0_81, %c0_82], %247 {strides = array<i32>} : memref<2x10xf32, #tpu.memory_space<vmem>>, vector<2x10xf32>,
    return
  }
}

</mosaic_0001>

<llo_original>
// kernel: _lambda_.1
$region0: #{_lambda_.1}
  #allocation0 [shape = 'u32[]', space=smem, size = 0x4, offset = 0x4, fixed_abs, tag = 'smem constant byte address 0x4 - core index']
  #allocation1 [shape = 'u32[72,128]{1,0:T(1,128)}', space=vmem, size = 0x9000, scoped, tag = 'internal scratch']
  %s0 = inlined_call_operand.hbm [shape: f32[2,16,16], index: 0, kind: input, shape index: {}]
  %s1 = inlined_call_operand.hbm [shape: f32[5,20,256], index: 1, kind: input, shape index: {}]
  %s2 = inlined_call_operand.vmem [shape: f32[1,256], index: 2, kind: input, shape index: {}]
  %s3 = inlined_call_operand.vmem [shape: f32[1,16], index: 3, kind: input, shape index: {}]
  %s4 = inlined_call_operand.vmem [shape: f32[1,16], index: 4, kind: input, shape index: {}]
  %s5 = inlined_call_operand.hbm [shape: f32[5,192,256], index: 5, kind: input, shape index: {}]
  %s6 = inlined_call_operand.vmem [shape: f32[1,256], index: 6, kind: input, shape index: {}]
  %s7 = inlined_call_operand.vmem [shape: f32[1,32], index: 7, kind: input, shape index: {}]
  %s8 = inlined_call_operand.vmem [shape: f32[1,32], index: 8, kind: input, shape index: {}]
  %s9 = inlined_call_operand.hbm [shape: f32[512,10], index: 9, kind: input, shape index: {}]
  %s10 = inlined_call_operand.vmem [shape: f32[1,10], index: 10, kind: input, shape index: {}]
  %s11 = inlined_call_operand.vmem [shape: f32[1,10], index: 11, kind: input, shape index: {}]
  %s12 = inlined_call_operand.vmem [shape: f32[1,10], index: 12, kind: input, shape index: {}]
  %s13 = inlined_call_operand.hbm [shape: f32[2,10], index: 13, kind: output, shape index: {}]
  %s14 = sld [smem:[#allocation0]]
  $region78: #{_lambda_.1} parent=0
    _
  %s16 = ssub.s32 1, %s14
  %s17 = scalar_select 0, %s16, %s14
  $region1: #{_lambda_.1} parent=0
    #allocation2 [shape = 'u8[16384]{0}', space=vmem, size = 0x4000, scoped, tag = 'input window, operand 0, single buffered']
    #allocation3 [shape = 's32[1]{0}', space=sflag, size = 0x4, scoped, tag = 'scoped memory for _lambda_.1']
    #allocation4 [shape = 's32[1]{0}', space=sflag, size = 0x4, scoped, tag = 'scoped memory for _lambda_.1']
    #allocation5 [shape = 'u8[122880]{0}', space=vmem, size = 0x1e000, scoped, tag = 'input window, operand 1, single buffered']
    #allocation6 [shape = 's32[1]{0}', space=sflag, size = 0x4, scoped, tag = 'scoped memory for _lambda_.1']
    #allocation7 [shape = 'u8[983040]{0}', space=vmem, size = 0xf0000, scoped, tag = 'input window, operand 5, single buffered']
    #allocation8 [shape = 'u8[262144]{0}', space=vmem, size = 0x40000, scoped, tag = 'input window, operand 9, single buffered']
    #allocation9 [shape = 's32[1]{0}', space=sflag, size = 0x4, scoped, tag = 'scoped memory for _lambda_.1']
    #allocation10 [shape = 'u8[1024]{0}', space=vmem, size = 0x400, scoped, tag = 'output window, operand 0, single buffered']
    %18 = vsyncpa [#allocation3], 0
    %19 = vsyncpa [#allocation6], 0
    %20 = vsyncpa [#allocation9], 0
    %21 = vsyncpa [#allocation4], 0
    // Predicated region
    $region2: #{_lambda_.1} parent=1 // pred_check
      _
    $region3: #{_lambda_.1} parent=1 // pred_check_branch
      %23 = sbr.rel (0) target = $region5
    $region4: #{_lambda_.1} parent=1 // pred_region
      %25 = vsyncadd [#allocation3], 0
      %s26 = sshll.u32 %s0, 4
      %s27 = int_to_ptr.hbm [resolvable:$true] %s26
      %s28 = sshll.u32 [#allocation2], 4
      %s29 = int_to_ptr.vmem [resolvable:$true] %s28
      %34 = dma.hbm_to_vmem [thread:$0]  %s27, 512, %s29, [#allocation3], 128, 128, 8
    $region5: #{_lambda_.1} parent=1 // pred_fallthru
      _
    // Predicated region
    $region6: #{_lambda_.1} parent=1 // pred_check
      _
    $region7: #{_lambda_.1} parent=1 // pred_check_branch
      %36 = sbr.rel (0) target = $region9
    $region8: #{_lambda_.1} parent=1 // pred_region
      %38 = vsyncadd [#allocation6], 0
      %s39 = sshll.u32 %s1, 4
      %s40 = int_to_ptr.hbm [resolvable:$true] %s39
      %s41 = sshll.u32 [#allocation5], 4
      %s42 = int_to_ptr.vmem [resolvable:$true] %s41
      %47 = dma.hbm_to_vmem [thread:$0]  %s40, 3840, %s42, [#allocation6], 256, 256, 16
    $region9: #{_lambda_.1} parent=1 // pred_fallthru
      _
    // Predicated region
    $region10: #{_lambda_.1} parent=1 // pred_check
      _
    $region11: #{_lambda_.1} parent=1 // pred_check_branch
      %49 = sbr.rel (0) target = $region13
    $region12: #{_lambda_.1} parent=1 // pred_region
      _
    $region13: #{_lambda_.1} parent=1 // pred_fallthru
      _
    // Predicated region
    $region14: #{_lambda_.1} parent=1 // pred_check
      _
    $region15: #{_lambda_.1} parent=1 // pred_check_branch
      %51 = sbr.rel (0) target = $region17
    $region16: #{_lambda_.1} parent=1 // pred_region
      _
    $region17: #{_lambda_.1} parent=1 // pred_fallthru
      _
    // Predicated region
    $region18: #{_lambda_.1} parent=1 // pred_check
      _
    $region19: #{_lambda_.1} parent=1 // pred_check_branch
      %53 = sbr.rel (0) target = $region21
    $region20: #{_lambda_.1} parent=1 // pred_region
      _
    $region21: #{_lambda_.1} parent=1 // pred_fallthru
      _
    // Predicated region
    $region22: #{_lambda_.1} parent=1 // pred_check
      _
    $region23: #{_lambda_.1} parent=1 // pred_check_branch
      %55 = sbr.rel (0) target = $region25
    $region24: #{_lambda_.1} parent=1 // pred_region
      %57 = vsyncadd [#allocation6], 0
      %s58 = sshll.u32 %s5, 4
      %s59 = int_to_ptr.hbm [resolvable:$true] %s58
      %s60 = sshll.u32 [#allocation7], 4
      %s61 = int_to_ptr.vmem [resolvable:$true] %s60
      %66 = dma.hbm_to_vmem [thread:$0]  %s59, 30720, %s61, [#allocation6], 256, 256, 16
    $region25: #{_lambda_.1} parent=1 // pred_fallthru
      _
    // Predicated region
    $region26: #{_lambda_.1} parent=1 // pred_check
      _
    $region27: #{_lambda_.1} parent=1 // pred_check_branch
      %68 = sbr.rel (0) target = $region29
    $region28: #{_lambda_.1} parent=1 // pred_region
      _
    $region29: #{_lambda_.1} parent=1 // pred_fallthru
      _
    // Predicated region
    $region30: #{_lambda_.1} parent=1 // pred_check
      _
    $region31: #{_lambda_.1} parent=1 // pred_check_branch
      %70 = sbr.rel (0) target = $region33
    $region32: #{_lambda_.1} parent=1 // pred_region
      _
    $region33: #{_lambda_.1} parent=1 // pred_fallthru
      _
    // Predicated region
    $region34: #{_lambda_.1} parent=1 // pred_check
      _
    $region35: #{_lambda_.1} parent=1 // pred_check_branch
      %72 = sbr.rel (0) target = $region37
    $region36: #{_lambda_.1} parent=1 // pred_region
      _
    $region37: #{_lambda_.1} parent=1 // pred_fallthru
      _
    // Predicated region
    $region38: #{_lambda_.1} parent=1 // pred_check
      _
    $region39: #{_lambda_.1} parent=1 // pred_check_branch
      %74 = sbr.rel (0) target = $region41
    $region40: #{_lambda_.1} parent=1 // pred_region
      %76 = vsyncadd [#allocation9], 0
      %s77 = sshll.u32 %s9, 4
      %s78 = int_to_ptr.hbm [resolvable:$true] %s77
      %s79 = sshll.u32 [#allocation8], 4
      %s80 = int_to_ptr.vmem [resolvable:$true] %s79
      %85 = dma.hbm_to_vmem [thread:$0]  %s78, 8192, %s80, [#allocation9], 128, 128, 8
    $region41: #{_lambda_.1} parent=1 // pred_fallthru
      _
    // Predicated region
    $region42: #{_lambda_.1} parent=1 // pred_check
      _
    $region43: #{_lambda_.1} parent=1 // pred_check_branch
      %87 = sbr.rel (0) target = $region45
    $region44: #{_lambda_.1} parent=1 // pred_region
      _
    $region45: #{_lambda_.1} parent=1 // pred_fallthru
      _
    // Predicated region
    $region46: #{_lambda_.1} parent=1 // pred_check
      _
    $region47: #{_lambda_.1} parent=1 // pred_check_branch
      %89 = sbr.rel (0) target = $region49
    $region48: #{_lambda_.1} parent=1 // pred_region
      _
    $region49: #{_lambda_.1} parent=1 // pred_fallthru
      _
    // Predicated region
    $region50: #{_lambda_.1} parent=1 // pred_check
      _
    $region51: #{_lambda_.1} parent=1 // pred_check_branch
      %91 = sbr.rel (0) target = $region53
    $region52: #{_lambda_.1} parent=1 // pred_region
      _
    $region53: #{_lambda_.1} parent=1 // pred_fallthru
      _
    // Predicated region
    $region54: #{_lambda_.1} parent=1 // pred_check
      _
    $region55: #{_lambda_.1} parent=1 // pred_check_branch
      %93 = sbr.rel (0) target = $region57
    $region56: #{_lambda_.1} parent=1 // pred_region
      %95 = dma.done [#allocation3], 512
    $region57: #{_lambda_.1} parent=1 // pred_fallthru
      _
    // Predicated region
    $region58: #{_lambda_.1} parent=1 // pred_check
      _
    $region59: #{_lambda_.1} parent=1 // pred_check_branch
      %97 = sbr.rel (0) target = $region61
    $region60: #{_lambda_.1} parent=1 // pred_region
      %99 = dma.done [#allocation6], 3840
    $region61: #{_lambda_.1} parent=1 // pred_fallthru
      _
    // Predicated region
    $region62: #{_lambda_.1} parent=1 // pred_check
      _
    $region63: #{_lambda_.1} parent=1 // pred_check_branch
      %101 = sbr.rel (0) target = $region65
    $region64: #{_lambda_.1} parent=1 // pred_region
      %103 = dma.done [#allocation6], 30720
    $region65: #{_lambda_.1} parent=1 // pred_fallthru
      _
    // Predicated region
    $region66: #{_lambda_.1} parent=1 // pred_check
      _
    $region67: #{_lambda_.1} parent=1 // pred_check_branch
      %105 = sbr.rel (0) target = $region69
    $region68: #{_lambda_.1} parent=1 // pred_region
      %107 = dma.done [#allocation9], 8192
    $region69: #{_lambda_.1} parent=1 // pred_fallthru
      _
    %v108 = vld [vmem:[#allocation2] sm:$0xff]
    %v109 = vld [vmem:[#allocation2 + $0x8] sm:$0xff]
    %v110 = vld [vmem:[#allocation2 + $0x10] sm:$0xff]
    %v111 = vld [vmem:[#allocation2 + $0x18] sm:$0xff]
    %116 = vrot.lane.b32.xlu0 %v108, 2
    %v117 = vpop.permute.xlu0 %116
    %118 = vrot.lane.b32.xlu0 %v109, 2
    %v119 = vpop.permute.xlu0 %118
    %120 = vrot.lane.b32.xlu0 %v110, 2
    %v121 = vpop.permute.xlu0 %120
    %122 = vrot.lane.b32.xlu0 %v111, 2
    %v123 = vpop.permute.xlu0 %122
    %vm128 = vcmask 15360
    %v129 = vsel %vm128, 0.0, %v117
    %v130 = vsel %vm128, 0.0, %v119
    %v131 = vsel %vm128, 0.0, %v121
    %v132 = vsel %vm128, 0.0, %v123
    %vm133 = vcmask 146432
    %v134 = vsel %vm133, %v129, 0.0
    %v135 = vsel %vm133, %v130, 0.0
    %v136 = vsel %vm133, %v131, 0.0
    %v137 = vsel %vm133, %v132, 0.0
    %vm142 = vcmask 1041408
    %v143 = vrot.slane %v134, 6
    %v144 = vrot.slane %v135, 6
    %v145 = vsel %vm142, %v143, %v144
    %v146 = vrot.slane %v136, 6
    %v147 = vrot.slane %v137, 6
    %v148 = vsel %vm142, %v146, %v147
    %v153 = vsel %vm142, 0.0, %v143
    %v154 = vsel %vm142, 0.0, %v146
    %v155 = vsel %vm142, %v144, 0.0
    %v156 = vsel %vm142, %v147, 0.0
    %v157 = vld [vmem:[#allocation5] sm:$0xff]
    %v158 = vld [vmem:[#allocation5 + $0x8] sm:$0xff]
    %v159 = vld [vmem:[#allocation5 + $0x10] sm:$0xff]
    %v160 = vld [vmem:[#allocation5 + $0x18] sm:$0xff]
    %v161 = vld [vmem:[#allocation5 + $0x20] sm:$0xf]
    %v162 = vld [vmem:[#allocation5 + $0x28] sm:$0xf]
    %vm167 = vcmask 1046528
    %v168 = vrot.slane %v153, 1
    %v169 = vrot.slane %v145, 1
    %v170 = vsel %vm167, %v168, %v169
    %v171 = vrot.slane %v155, 1
    %v172 = vsel %vm167, %v169, %v171
    %v173 = vrot.slane %v154, 1
    %v174 = vrot.slane %v148, 1
    %v175 = vsel %vm167, %v173, %v174
    %v176 = vrot.slane %v156, 1
    %v177 = vsel %vm167, %v174, %v176
    %s178 = scalar_lea.vmem [#allocation5], 48
    %v179 = vld [vmem:[%s178] sm:$0xff]
    %v180 = vld [vmem:[%s178 + $0x8] sm:$0xff]
    %v181 = vld [vmem:[%s178 + $0x10] sm:$0xff]
    %v182 = vld [vmem:[%s178 + $0x18] sm:$0xff]
    %v183 = vld [vmem:[%s178 + $0x20] sm:$0xf]
    %v184 = vld [vmem:[%s178 + $0x28] sm:$0xf]
    %vm185 = vcmask 162816
    %v186 = vsel %vm185, %v170, 0
    %v188 = vsel %vm185, %v172, 0
    %v190 = vsel %vm185, %v175, 0
    %v192 = vsel %vm185, %v177, 0
    %vm194 = vcmask 1043456
    %v196 = vsel %vm194, %v183, 0
    %v199 = vsel %vm194, %v184, 0
    %201 = vmatpush.msra.mxu0 0.0
    %202 = vmatpush.msra.mxu0 0.0
    %203 = vmatpush.msra.mxu0 0.0
    %204 = vmatpush.msra.mxu0 0.0
    %205 = vmatpush.msra.mxu0 0.0
    %206 = vmatpush.msra.mxu0 0.0
    %207 = vmatpush.msra.mxu0 0.0
    %208 = vmatpush.msra.mxu0 0.0
    %209 = vmatpush.msra.mxu0 0.0
    %210 = vmatpush.msra.mxu0 0.0
    %211 = vmatpush.msra.mxu0 0.0
    %212 = vmatpush.msra.mxu0 0.0
    %213 = vmatpush.msra.mxu0 0.0
    %214 = vmatpush.msra.mxu0 %v196
    %215 = vmatpush.msra.mxu0 %v181
    %216 = vmatpush.msra.mxu0 %v179
    %217 = vmatmul.f32.gmra.mxu0 %v186
    %v218 = vpop.f32.mrf.mxu0
    %v219 = vadd.f32 0.0, %v218
    %220 = vmatmul.f32.gmra.mxu0 %v188
    %v221 = vpop.f32.mrf.mxu0
    %v222 = vadd.f32 0.0, %v221
    %223 = vmatmul.f32.gmra.mxu0 %v190
    %v224 = vpop.f32.mrf.mxu0
    %v225 = vadd.f32 0.0, %v224
    %226 = vmatmul.f32.gmra.mxu0 %v192
    %v227 = vpop.f32.mrf.mxu0
    %v228 = vadd.f32 0.0, %v227
    %229 = vdwg.mxu0
    %230 = vmatpush.msra.mxu0 0.0
    %231 = vmatpush.msra.mxu0 0.0
    %232 = vmatpush.msra.mxu0 0.0
    %233 = vmatpush.msra.mxu0 0.0
    %234 = vmatpush.msra.mxu0 0.0
    %235 = vmatpush.msra.mxu0 0.0
    %236 = vmatpush.msra.mxu0 0.0
    %237 = vmatpush.msra.mxu0 0.0
    %238 = vmatpush.msra.mxu0 0.0
    %239 = vmatpush.msra.mxu0 0.0
    %240 = vmatpush.msra.mxu0 0.0
    %241 = vmatpush.msra.mxu0 0.0
    %242 = vmatpush.msra.mxu0 0.0
    %243 = vmatpush.msra.mxu0 %v199
    %244 = vmatpush.msra.mxu0 %v182
    %245 = vmatpush.msra.mxu0 %v180
    %246 = vmatmul.f32.gmra.mxu0 %v186
    %v247 = vpop.f32.mrf.mxu0
    %v248 = vadd.f32 0.0, %v247
    %249 = vmatmul.f32.gmra.mxu0 %v188
    %v250 = vpop.f32.mrf.mxu0
    %v251 = vadd.f32 0.0, %v250
    %252 = vmatmul.f32.gmra.mxu0 %v190
    %v253 = vpop.f32.mrf.mxu0
    %v254 = vadd.f32 0.0, %v253
    %255 = vmatmul.f32.gmra.mxu0 %v192
    %v256 = vpop.f32.mrf.mxu0
    %v257 = vadd.f32 0.0, %v256
    %258 = vdwg.mxu0
    %v259 = vsel %vm185, %v153, 0
    %v261 = vsel %vm185, %v145, 0
    %v263 = vsel %vm185, %v154, 0
    %v265 = vsel %vm185, %v148, 0
    %v268 = vsel %vm194, %v161, 0
    %v271 = vsel %vm194, %v162, 0
    %273 = vmatpush.msra.mxu0 0.0
    %274 = vmatpush.msra.mxu0 0.0
    %275 = vmatpush.msra.mxu0 0.0
    %276 = vmatpush.msra.mxu0 0.0
    %277 = vmatpush.msra.mxu0 0.0
    %278 = vmatpush.msra.mxu0 0.0
    %279 = vmatpush.msra.mxu0 0.0
    %280 = vmatpush.msra.mxu0 0.0
    %281 = vmatpush.msra.mxu0 0.0
    %282 = vmatpush.msra.mxu0 0.0
    %283 = vmatpush.msra.mxu0 0.0
    %284 = vmatpush.msra.mxu0 0.0
    %285 = vmatpush.msra.mxu0 0.0
    %286 = vmatpush.msra.mxu0 %v268
    %287 = vmatpush.msra.mxu0 %v159
    %288 = vmatpush.msra.mxu0 %v157
    %289 = vmatmul.f32.gmra.mxu0 %v259
    %v290 = vpop.f32.mrf.mxu0
    %v291 = vadd.f32 %v219, %v290
    %292 = vmatmul.f32.gmra.mxu0 %v261
    %v293 = vpop.f32.mrf.mxu0
    %v294 = vadd.f32 %v222, %v293
    %295 = vmatmul.f32.gmra.mxu0 %v263
    %v296 = vpop.f32.mrf.mxu0
    %v297 = vadd.f32 %v225, %v296
    %298 = vmatmul.f32.gmra.mxu0 %v265
    %v299 = vpop.f32.mrf.mxu0
    %v300 = vadd.f32 %v228, %v299
    %301 = vdwg.mxu0
    %302 = vmatpush.msra.mxu0 0.0
    %303 = vmatpush.msra.mxu0 0.0
    %304 = vmatpush.msra.mxu0 0.0
    %305 = vmatpush.msra.mxu0 0.0
    %306 = vmatpush.msra.mxu0 0.0
    %307 = vmatpush.msra.mxu0 0.0
    %308 = vmatpush.msra.mxu0 0.0
    %309 = vmatpush.msra.mxu0 0.0
    %310 = vmatpush.msra.mxu0 0.0
    %311 = vmatpush.msra.mxu0 0.0
    %312 = vmatpush.msra.mxu0 0.0
    %313 = vmatpush.msra.mxu0 0.0
    %314 = vmatpush.msra.mxu0 0.0
    %315 = vmatpush.msra.mxu0 %v271
    %316 = vmatpush.msra.mxu0 %v160
    %317 = vmatpush.msra.mxu0 %v158
    %318 = vmatmul.f32.gmra.mxu0 %v259
    %v319 = vpop.f32.mrf.mxu0
    %v320 = vadd.f32 %v248, %v319
    %321 = vmatmul.f32.gmra.mxu0 %v261
    %v322 = vpop.f32.mrf.mxu0
    %v323 = vadd.f32 %v251, %v322
    %324 = vmatmul.f32.gmra.mxu0 %v263
    %v325 = vpop.f32.mrf.mxu0
    %v326 = vadd.f32 %v254, %v325
    %327 = vmatmul.f32.gmra.mxu0 %v265
    %v328 = vpop.f32.mrf.mxu0
    %v329 = vadd.f32 %v257, %v328
    %330 = vdwg.mxu0
    %vm331 = vcmask 1045504
    %v332 = vrot.slane %v153, 2
    %v333 = vrot.slane %v145, 2
    %v334 = vsel %vm331, %v332, %v333
    %v335 = vrot.slane %v155, 2
    %v336 = vsel %vm331, %v333, %v335
    %v337 = vrot.slane %v154, 2
    %v338 = vrot.slane %v148, 2
    %v339 = vsel %vm331, %v337, %v338
    %v340 = vrot.slane %v156, 2
    %v341 = vsel %vm331, %v338, %v340
    %s342 = scalar_lea.vmem [#allocation5], 96
    %v343 = vld [vmem:[%s342] sm:$0xff]
    %v344 = vld [vmem:[%s342 + $0x8] sm:$0xff]
    %v345 = vld [vmem:[%s342 + $0x10] sm:$0xff]
    %v346 = vld [vmem:[%s342 + $0x18] sm:$0xff]
    %v347 = vld [vmem:[%s342 + $0x20] sm:$0xf]
    %v348 = vld [vmem:[%s342 + $0x28] sm:$0xf]
    %v349 = vsel %vm185, %v334, 0
    %v351 = vsel %vm185, %v336, 0
    %v353 = vsel %vm185, %v339, 0
    %v355 = vsel %vm185, %v341, 0
    %v358 = vsel %vm194, %v347, 0
    %v361 = vsel %vm194, %v348, 0
    %363 = vmatpush.msra.mxu0 0.0
    %364 = vmatpush.msra.mxu0 0.0
    %365 = vmatpush.msra.mxu0 0.0
    %366 = vmatpush.msra.mxu0 0.0
    %367 = vmatpush.msra.mxu0 0.0
    %368 = vmatpush.msra.mxu0 0.0
    %369 = vmatpush.msra.mxu0 0.0
    %370 = vmatpush.msra.mxu0 0.0
    %371 = vmatpush.msra.mxu0 0.0
    %372 = vmatpush.msra.mxu0 0.0
    %373 = vmatpush.msra.mxu0 0.0
    %374 = vmatpush.msra.mxu0 0.0
    %375 = vmatpush.msra.mxu0 0.0
    %376 = vmatpush.msra.mxu0 %v358
    %377 = vmatpush.msra.mxu0 %v345
    %378 = vmatpush.msra.mxu0 %v343
    %379 = vmatmul.f32.gmra.mxu0 %v349
    %v380 = vpop.f32.mrf.mxu0
    %v381 = vadd.f32 0.0, %v380
    %382 = vmatmul.f32.gmra.mxu0 %v351
    %v383 = vpop.f32.mrf.mxu0
    %v384 = vadd.f32 0.0, %v383
    %385 = vmatmul.f32.gmra.mxu0 %v353
    %v386 = vpop.f32.mrf.mxu0
    %v387 = vadd.f32 0.0, %v386
    %388 = vmatmul.f32.gmra.mxu0 %v355
    %v389 = vpop.f32.mrf.mxu0
    %v390 = vadd.f32 0.0, %v389
    %391 = vdwg.mxu0
    %392 = vmatpush.msra.mxu0 0.0
    %393 = vmatpush.msra.mxu0 0.0
    %394 = vmatpush.msra.mxu0 0.0
    %395 = vmatpush.msra.mxu0 0.0
    %396 = vmatpush.msra.mxu0 0.0
    %397 = vmatpush.msra.mxu0 0.0
    %398 = vmatpush.msra.mxu0 0.0
    %399 = vmatpush.msra.mxu0 0.0
    %400 = vmatpush.msra.mxu0 0.0
    %401 = vmatpush.msra.mxu0 0.0
    %402 = vmatpush.msra.mxu0 0.0
    %403 = vmatpush.msra.mxu0 0.0
    %404 = vmatpush.msra.mxu0 0.0
    %405 = vmatpush.msra.mxu0 %v361
    %406 = vmatpush.msra.mxu0 %v346
    %407 = vmatpush.msra.mxu0 %v344
    %408 = vmatmul.f32.gmra.mxu0 %v349
    %v409 = vpop.f32.mrf.mxu0
    %v410 = vadd.f32 0.0, %v409
    %411 = vmatmul.f32.gmra.mxu0 %v351
    %v412 = vpop.f32.mrf.mxu0
    %v413 = vadd.f32 0.0, %v412
    %414 = vmatmul.f32.gmra.mxu0 %v353
    %v415 = vpop.f32.mrf.mxu0
    %v416 = vadd.f32 0.0, %v415
    %417 = vmatmul.f32.gmra.mxu0 %v355
    %v418 = vpop.f32.mrf.mxu0
    %v419 = vadd.f32 0.0, %v418
    %420 = vdwg.mxu0
    %v421 = vadd.f32 %v291, %v381
    %v422 = vadd.f32 %v320, %v410
    %v423 = vadd.f32 %v294, %v384
    %v424 = vadd.f32 %v323, %v413
    %v425 = vadd.f32 %v297, %v387
    %v426 = vadd.f32 %v326, %v416
    %v427 = vadd.f32 %v300, %v390
    %v428 = vadd.f32 %v329, %v419
    %vm429 = vcmask 1044480
    %v430 = vrot.slane %v153, 3
    %v431 = vrot.slane %v145, 3
    %v432 = vsel %vm429, %v430, %v431
    %v433 = vrot.slane %v155, 3
    %v434 = vsel %vm429, %v431, %v433
    %v435 = vrot.slane %v154, 3
    %v436 = vrot.slane %v148, 3
    %v437 = vsel %vm429, %v435, %v436
    %v438 = vrot.slane %v156, 3
    %v439 = vsel %vm429, %v436, %v438
    %s440 = scalar_lea.vmem [#allocation5], 144
    %v441 = vld [vmem:[%s440] sm:$0xff]
    %v442 = vld [vmem:[%s440 + $0x8] sm:$0xff]
    %v443 = vld [vmem:[%s440 + $0x10] sm:$0xff]
    %v444 = vld [vmem:[%s440 + $0x18] sm:$0xff]
    %v445 = vld [vmem:[%s440 + $0x20] sm:$0xf]
    %v446 = vld [vmem:[%s440 + $0x28] sm:$0xf]
    %v447 = vsel %vm185, %v432, 0
    %v449 = vsel %vm185, %v434, 0
    %v451 = vsel %vm185, %v437, 0
    %v453 = vsel %vm185, %v439, 0
    %v456 = vsel %vm194, %v445, 0
    %v459 = vsel %vm194, %v446, 0
    %461 = vmatpush.msra.mxu0 0.0
    %462 = vmatpush.msra.mxu0 0.0
    %463 = vmatpush.msra.mxu0 0.0
    %464 = vmatpush.msra.mxu0 0.0
    %465 = vmatpush.msra.mxu0 0.0
    %466 = vmatpush.msra.mxu0 0.0
    %467 = vmatpush.msra.mxu0 0.0
    %468 = vmatpush.msra.mxu0 0.0
    %469 = vmatpush.msra.mxu0 0.0
    %470 = vmatpush.msra.mxu0 0.0
    %471 = vmatpush.msra.mxu0 0.0
    %472 = vmatpush.msra.mxu0 0.0
    %473 = vmatpush.msra.mxu0 0.0
    %474 = vmatpush.msra.mxu0 %v456
    %475 = vmatpush.msra.mxu0 %v443
    %476 = vmatpush.msra.mxu0 %v441
    %477 = vmatmul.f32.gmra.mxu0 %v447
    %v478 = vpop.f32.mrf.mxu0
    %v479 = vadd.f32 0.0, %v478
    %480 = vmatmul.f32.gmra.mxu0 %v449
    %v481 = vpop.f32.mrf.mxu0
    %v482 = vadd.f32 0.0, %v481
    %483 = vmatmul.f32.gmra.mxu0 %v451
    %v484 = vpop.f32.mrf.mxu0
    %v485 = vadd.f32 0.0, %v484
    %486 = vmatmul.f32.gmra.mxu0 %v453
    %v487 = vpop.f32.mrf.mxu0
    %v488 = vadd.f32 0.0, %v487
    %489 = vdwg.mxu0
    %490 = vmatpush.msra.mxu0 0.0
    %491 = vmatpush.msra.mxu0 0.0
    %492 = vmatpush.msra.mxu0 0.0
    %493 = vmatpush.msra.mxu0 0.0
    %494 = vmatpush.msra.mxu0 0.0
    %495 = vmatpush.msra.mxu0 0.0
    %496 = vmatpush.msra.mxu0 0.0
    %497 = vmatpush.msra.mxu0 0.0
    %498 = vmatpush.msra.mxu0 0.0
    %499 = vmatpush.msra.mxu0 0.0
    %500 = vmatpush.msra.mxu0 0.0
    %501 = vmatpush.msra.mxu0 0.0
    %502 = vmatpush.msra.mxu0 0.0
    %503 = vmatpush.msra.mxu0 %v459
    %504 = vmatpush.msra.mxu0 %v444
    %505 = vmatpush.msra.mxu0 %v442
    %506 = vmatmul.f32.gmra.mxu0 %v447
    %v507 = vpop.f32.mrf.mxu0
    %v508 = vadd.f32 0.0, %v507
    %509 = vmatmul.f32.gmra.mxu0 %v449
    %v510 = vpop.f32.mrf.mxu0
    %v511 = vadd.f32 0.0, %v510
    %512 = vmatmul.f32.gmra.mxu0 %v451
    %v513 = vpop.f32.mrf.mxu0
    %v514 = vadd.f32 0.0, %v513
    %515 = vmatmul.f32.gmra.mxu0 %v453
    %v516 = vpop.f32.mrf.mxu0
    %v517 = vadd.f32 0.0, %v516
    %518 = vdwg.mxu0
    %v519 = vadd.f32 %v421, %v479
    %v520 = vadd.f32 %v422, %v508
    %v521 = vadd.f32 %v423, %v482
    %v522 = vadd.f32 %v424, %v511
    %v523 = vadd.f32 %v425, %v485
    %v524 = vadd.f32 %v426, %v514
    %v525 = vadd.f32 %v427, %v488
    %v526 = vadd.f32 %v428, %v517
    %v527 = vrot.slane %v153, 4
    %v528 = vrot.slane %v145, 4
    %v529 = vsel %vm194, %v527, %v528
    %v530 = vrot.slane %v155, 4
    %v531 = vsel %vm194, %v528, %v530
    %v532 = vrot.slane %v154, 4
    %v533 = vrot.slane %v148, 4
    %v534 = vsel %vm194, %v532, %v533
    %v535 = vrot.slane %v156, 4
    %v536 = vsel %vm194, %v533, %v535
    %s537 = scalar_lea.vmem [#allocation5], 192
    %v538 = vld [vmem:[%s537] sm:$0xff]
    %v539 = vld [vmem:[%s537 + $0x8] sm:$0xff]
    %v540 = vld [vmem:[%s537 + $0x10] sm:$0xff]
    %v541 = vld [vmem:[%s537 + $0x18] sm:$0xff]
    %v542 = vld [vmem:[%s537 + $0x20] sm:$0xf]
    %v543 = vld [vmem:[%s537 + $0x28] sm:$0xf]
    %v544 = vsel %vm185, %v529, 0
    %v546 = vsel %vm185, %v531, 0
    %v548 = vsel %vm185, %v534, 0
    %v550 = vsel %vm185, %v536, 0
    %v553 = vsel %vm194, %v542, 0
    %v556 = vsel %vm194, %v543, 0
    %558 = vmatpush.msra.mxu0 0.0
    %559 = vmatpush.msra.mxu0 0.0
    %560 = vmatpush.msra.mxu0 0.0
    %561 = vmatpush.msra.mxu0 0.0
    %562 = vmatpush.msra.mxu0 0.0
    %563 = vmatpush.msra.mxu0 0.0
    %564 = vmatpush.msra.mxu0 0.0
    %565 = vmatpush.msra.mxu0 0.0
    %566 = vmatpush.msra.mxu0 0.0
    %567 = vmatpush.msra.mxu0 0.0
    %568 = vmatpush.msra.mxu0 0.0
    %569 = vmatpush.msra.mxu0 0.0
    %570 = vmatpush.msra.mxu0 0.0
    %571 = vmatpush.msra.mxu0 %v553
    %572 = vmatpush.msra.mxu0 %v540
    %573 = vmatpush.msra.mxu0 %v538
    %574 = vmatmul.f32.gmra.mxu0 %v544
    %v575 = vpop.f32.mrf.mxu0
    %v576 = vadd.f32 0.0, %v575
    %577 = vmatmul.f32.gmra.mxu0 %v546
    %v578 = vpop.f32.mrf.mxu0
    %v579 = vadd.f32 0.0, %v578
    %580 = vmatmul.f32.gmra.mxu0 %v548
    %v581 = vpop.f32.mrf.mxu0
    %v582 = vadd.f32 0.0, %v581
    %583 = vmatmul.f32.gmra.mxu0 %v550
    %v584 = vpop.f32.mrf.mxu0
    %v585 = vadd.f32 0.0, %v584
    %586 = vdwg.mxu0
    %587 = vmatpush.msra.mxu0 0.0
    %588 = vmatpush.msra.mxu0 0.0
    %589 = vmatpush.msra.mxu0 0.0
    %590 = vmatpush.msra.mxu0 0.0
    %591 = vmatpush.msra.mxu0 0.0
    %592 = vmatpush.msra.mxu0 0.0
    %593 = vmatpush.msra.mxu0 0.0
    %594 = vmatpush.msra.mxu0 0.0
    %595 = vmatpush.msra.mxu0 0.0
    %596 = vmatpush.msra.mxu0 0.0
    %597 = vmatpush.msra.mxu0 0.0
    %598 = vmatpush.msra.mxu0 0.0
    %599 = vmatpush.msra.mxu0 0.0
    %600 = vmatpush.msra.mxu0 %v556
    %601 = vmatpush.msra.mxu0 %v541
    %602 = vmatpush.msra.mxu0 %v539
    %603 = vmatmul.f32.gmra.mxu0 %v544
    %v604 = vpop.f32.mrf.mxu0
    %v605 = vadd.f32 0.0, %v604
    %606 = vmatmul.f32.gmra.mxu0 %v546
    %v607 = vpop.f32.mrf.mxu0
    %v608 = vadd.f32 0.0, %v607
    %609 = vmatmul.f32.gmra.mxu0 %v548
    %v610 = vpop.f32.mrf.mxu0
    %v611 = vadd.f32 0.0, %v610
    %612 = vmatmul.f32.gmra.mxu0 %v550
    %v613 = vpop.f32.mrf.mxu0
    %v614 = vadd.f32 0.0, %v613
    %615 = vdwg.mxu0
    %v616 = vadd.f32 %v519, %v576
    %v617 = vadd.f32 %v520, %v605
    %v618 = vadd.f32 %v521, %v579
    %v619 = vadd.f32 %v522, %v608
    %v620 = vadd.f32 %v523, %v582
    %v621 = vadd.f32 %v524, %v611
    %v622 = vadd.f32 %v525, %v585
    %v623 = vadd.f32 %v526, %v614
    %v624 = vld [vmem:[%s2] sm:$0x3]
    %v626 = vperm.slane %v624, 0
    %v627 = vperm.slane %v624, 1
    %v630 = vadd.f32 %v616, %v626
    %v631 = vadd.f32 %v617, %v627
    %v632 = vadd.f32 %v618, %v626
    %v633 = vadd.f32 %v619, %v627
    %v634 = vadd.f32 %v620, %v626
    %v635 = vadd.f32 %v621, %v627
    %v636 = vadd.f32 %v622, %v626
    %v637 = vadd.f32 %v623, %v627
    %v638 = vmax.f32 %v630, 0.0
    %v639 = vmax.f32 %v631, 0.0
    %v640 = vmax.f32 %v632, 0.0
    %v641 = vmax.f32 %v633, 0.0
    %v642 = vmax.f32 %v634, 0.0
    %v643 = vmax.f32 %v635, 0.0
    %v644 = vmax.f32 %v636, 0.0
    %v645 = vmax.f32 %v637, 0.0
    %v654 = vrot.slane %v639, 4
    %v655 = vrot.slane %v641, 4
    %v656 = vrot.slane %v643, 4
    %v657 = vrot.slane %v645, 4
    %v658 = vsel %vm194, %v638, %v654
    %v659 = vsel %vm194, %v654, %v638
    %v660 = vrot.slane %v659, 4
    %v661 = vsel %vm194, %v640, %v655
    %v662 = vsel %vm194, %v655, %v640
    %v663 = vrot.slane %v662, 4
    %v664 = vsel %vm194, %v642, %v656
    %v665 = vsel %vm194, %v656, %v642
    %v666 = vrot.slane %v665, 4
    %v667 = vsel %vm194, %v644, %v657
    %v668 = vsel %vm194, %v657, %v644
    %v669 = vrot.slane %v668, 4
    %v679 = vunpack.c.l.s4 1966171168
    %v680 = vunpack.c.0.s8 %v679
    %v681 = vperm.slane %v658, %v680
    %v683 = vunpack.c.l.s4 1966171168
    %v684 = vunpack.c.0.s8 %v683
    %v685 = vperm.slane %v660, %v684
    %v687 = vunpack.c.l.s4 1966171168
    %v688 = vunpack.c.0.s8 %v687
    %v689 = vperm.slane %v661, %v688
    %v691 = vunpack.c.l.s4 1966171168
    %v692 = vunpack.c.0.s8 %v691
    %v693 = vperm.slane %v663, %v692
    %v695 = vunpack.c.l.s4 1966171168
    %v696 = vunpack.c.0.s8 %v695
    %v697 = vperm.slane %v664, %v696
    %v699 = vunpack.c.l.s4 1966171168
    %v700 = vunpack.c.0.s8 %v699
    %v701 = vperm.slane %v666, %v700
    %v703 = vunpack.c.l.s4 1966171168
    %v704 = vunpack.c.0.s8 %v703
    %v705 = vperm.slane %v667, %v704
    %v707 = vunpack.c.l.s4 1966171168
    %v708 = vunpack.c.0.s8 %v707
    %v709 = vperm.slane %v669, %v708
    %v718 = vrot.slane %v681, 4
    %v719 = vrot.slane %v685, 4
    %v720 = vrot.slane %v689, 4
    %v721 = vrot.slane %v693, 4
    %v722 = vrot.slane %v697, 4
    %v723 = vrot.slane %v701, 4
    %v724 = vrot.slane %v705, 4
    %v725 = vrot.slane %v709, 4
    %v734 = vmax.f32 %v681, %v718
    %v735 = vmax.f32 %v685, %v719
    %v736 = vmax.f32 %v689, %v720
    %v737 = vmax.f32 %v693, %v721
    %v738 = vmax.f32 %v697, %v722
    %v739 = vmax.f32 %v701, %v723
    %v740 = vmax.f32 %v705, %v724
    %v741 = vmax.f32 %v709, %v725
    %750 = vrot.lane.b32.xlu0 %v734, 112
    %v751 = vpop.permute.xlu0 %750
    %752 = vrot.lane.b32.xlu0 %v735, 112
    %v753 = vpop.permute.xlu0 %752
    %754 = vrot.lane.b32.xlu0 %v736, 112
    %v755 = vpop.permute.xlu0 %754
    %756 = vrot.lane.b32.xlu0 %v737, 112
    %v757 = vpop.permute.xlu0 %756
    %758 = vrot.lane.b32.xlu0 %v738, 112
    %v759 = vpop.permute.xlu0 %758
    %760 = vrot.lane.b32.xlu0 %v739, 112
    %v761 = vpop.permute.xlu0 %760
    %762 = vrot.lane.b32.xlu0 %v740, 112
    %v763 = vpop.permute.xlu0 %762
    %764 = vrot.lane.b32.xlu0 %v741, 112
    %v765 = vpop.permute.xlu0 %764
    %v774 = vmax.f32 %v734, %v751
    %v775 = vmax.f32 %v735, %v753
    %v776 = vmax.f32 %v736, %v755
    %v777 = vmax.f32 %v737, %v757
    %v778 = vmax.f32 %v738, %v759
    %v779 = vmax.f32 %v739, %v761
    %v780 = vmax.f32 %v740, %v763
    %v781 = vmax.f32 %v741, %v765
    %v782 = vrot.slane %v734, 2
    %v783 = vrot.slane %v735, 2
    %v784 = vrot.slane %v736, 2
    %v785 = vrot.slane %v737, 2
    %v786 = vrot.slane %v738, 2
    %v787 = vrot.slane %v739, 2
    %v788 = vrot.slane %v740, 2
    %v789 = vrot.slane %v741, 2
    %v798 = vrot.slane %v751, 2
    %v799 = vrot.slane %v753, 2
    %v800 = vrot.slane %v755, 2
    %v801 = vrot.slane %v757, 2
    %v802 = vrot.slane %v759, 2
    %v803 = vrot.slane %v761, 2
    %v804 = vrot.slane %v763, 2
    %v805 = vrot.slane %v765, 2
    %v814 = vmax.f32 %v782, %v798
    %v815 = vmax.f32 %v783, %v799
    %v816 = vmax.f32 %v784, %v800
    %v817 = vmax.f32 %v785, %v801
    %v818 = vmax.f32 %v786, %v802
    %v819 = vmax.f32 %v787, %v803
    %v820 = vmax.f32 %v788, %v804
    %v821 = vmax.f32 %v789, %v805
    %822 = vrot.lane.b32.xlu0 %v734, 96
    %v823 = vpop.permute.xlu0 %822
    %824 = vrot.lane.b32.xlu0 %v735, 96
    %v825 = vpop.permute.xlu0 %824
    %826 = vrot.lane.b32.xlu0 %v736, 96
    %v827 = vpop.permute.xlu0 %826
    %828 = vrot.lane.b32.xlu0 %v737, 96
    %v829 = vpop.permute.xlu0 %828
    %830 = vrot.lane.b32.xlu0 %v738, 96
    %v831 = vpop.permute.xlu0 %830
    %832 = vrot.lane.b32.xlu0 %v739, 96
    %v833 = vpop.permute.xlu0 %832
    %834 = vrot.lane.b32.xlu0 %v740, 96
    %v835 = vpop.permute.xlu0 %834
    %836 = vrot.lane.b32.xlu0 %v741, 96
    %v837 = vpop.permute.xlu0 %836
    %v838 = vrot.slane %v823, 2
    %v839 = vrot.slane %v825, 2
    %v840 = vrot.slane %v827, 2
    %v841 = vrot.slane %v829, 2
    %v842 = vrot.slane %v831, 2
    %v843 = vrot.slane %v833, 2
    %v844 = vrot.slane %v835, 2
    %v845 = vrot.slane %v837, 2
    %854 = vrot.lane.b32.xlu0 %v734, 80
    %v855 = vpop.permute.xlu0 %854
    %856 = vrot.lane.b32.xlu0 %v735, 80
    %v857 = vpop.permute.xlu0 %856
    %858 = vrot.lane.b32.xlu0 %v736, 80
    %v859 = vpop.permute.xlu0 %858
    %860 = vrot.lane.b32.xlu0 %v737, 80
    %v861 = vpop.permute.xlu0 %860
    %862 = vrot.lane.b32.xlu0 %v738, 80
    %v863 = vpop.permute.xlu0 %862
    %864 = vrot.lane.b32.xlu0 %v739, 80
    %v865 = vpop.permute.xlu0 %864
    %866 = vrot.lane.b32.xlu0 %v740, 80
    %v867 = vpop.permute.xlu0 %866
    %868 = vrot.lane.b32.xlu0 %v741, 80
    %v869 = vpop.permute.xlu0 %868
    %v870 = vrot.slane %v855, 2
    %v871 = vrot.slane %v857, 2
    %v872 = vrot.slane %v859, 2
    %v873 = vrot.slane %v861, 2
    %v874 = vrot.slane %v863, 2
    %v875 = vrot.slane %v865, 2
    %v876 = vrot.slane %v867, 2
    %v877 = vrot.slane %v869, 2
    %v886 = vmax.f32 %v838, %v870
    %v887 = vmax.f32 %v839, %v871
    %v888 = vmax.f32 %v840, %v872
    %v889 = vmax.f32 %v841, %v873
    %v890 = vmax.f32 %v842, %v874
    %v891 = vmax.f32 %v843, %v875
    %v892 = vmax.f32 %v844, %v876
    %v893 = vmax.f32 %v845, %v877
    %894 = vrot.lane.b32.xlu0 %v734, 64
    %v895 = vpop.permute.xlu0 %894
    %896 = vrot.lane.b32.xlu0 %v735, 64
    %v897 = vpop.permute.xlu0 %896
    %898 = vrot.lane.b32.xlu0 %v736, 64
    %v899 = vpop.permute.xlu0 %898
    %900 = vrot.lane.b32.xlu0 %v737, 64
    %v901 = vpop.permute.xlu0 %900
    %902 = vrot.lane.b32.xlu0 %v738, 64
    %v903 = vpop.permute.xlu0 %902
    %904 = vrot.lane.b32.xlu0 %v739, 64
    %v905 = vpop.permute.xlu0 %904
    %906 = vrot.lane.b32.xlu0 %v740, 64
    %v907 = vpop.permute.xlu0 %906
    %908 = vrot.lane.b32.xlu0 %v741, 64
    %v909 = vpop.permute.xlu0 %908
    %v910 = vrot.slane %v895, 2
    %v911 = vrot.slane %v897, 2
    %v912 = vrot.slane %v899, 2
    %v913 = vrot.slane %v901, 2
    %v914 = vrot.slane %v903, 2
    %v915 = vrot.slane %v905, 2
    %v916 = vrot.slane %v907, 2
    %v917 = vrot.slane %v909, 2
    %926 = vrot.lane.b32.xlu0 %v734, 48
    %v927 = vpop.permute.xlu0 %926
    %928 = vrot.lane.b32.xlu0 %v735, 48
    %v929 = vpop.permute.xlu0 %928
    %930 = vrot.lane.b32.xlu0 %v736, 48
    %v931 = vpop.permute.xlu0 %930
    %932 = vrot.lane.b32.xlu0 %v737, 48
    %v933 = vpop.permute.xlu0 %932
    %934 = vrot.lane.b32.xlu0 %v738, 48
    %v935 = vpop.permute.xlu0 %934
    %936 = vrot.lane.b32.xlu0 %v739, 48
    %v937 = vpop.permute.xlu0 %936
    %938 = vrot.lane.b32.xlu0 %v740, 48
    %v939 = vpop.permute.xlu0 %938
    %940 = vrot.lane.b32.xlu0 %v741, 48
    %v941 = vpop.permute.xlu0 %940
    %v942 = vrot.slane %v927, 2
    %v943 = vrot.slane %v929, 2
    %v944 = vrot.slane %v931, 2
    %v945 = vrot.slane %v933, 2
    %v946 = vrot.slane %v935, 2
    %v947 = vrot.slane %v937, 2
    %v948 = vrot.slane %v939, 2
    %v949 = vrot.slane %v941, 2
    %v958 = vmax.f32 %v910, %v942
    %v959 = vmax.f32 %v911, %v943
    %v960 = vmax.f32 %v912, %v944
    %v961 = vmax.f32 %v913, %v945
    %v962 = vmax.f32 %v914, %v946
    %v963 = vmax.f32 %v915, %v947
    %v964 = vmax.f32 %v916, %v948
    %v965 = vmax.f32 %v917, %v949
    %966 = vrot.lane.b32.xlu0 %v734, 32
    %v967 = vpop.permute.xlu0 %966
    %968 = vrot.lane.b32.xlu0 %v735, 32
    %v969 = vpop.permute.xlu0 %968
    %970 = vrot.lane.b32.xlu0 %v736, 32
    %v971 = vpop.permute.xlu0 %970
    %972 = vrot.lane.b32.xlu0 %v737, 32
    %v973 = vpop.permute.xlu0 %972
    %974 = vrot.lane.b32.xlu0 %v738, 32
    %v975 = vpop.permute.xlu0 %974
    %976 = vrot.lane.b32.xlu0 %v739, 32
    %v977 = vpop.permute.xlu0 %976
    %978 = vrot.lane.b32.xlu0 %v740, 32
    %v979 = vpop.permute.xlu0 %978
    %980 = vrot.lane.b32.xlu0 %v741, 32
    %v981 = vpop.permute.xlu0 %980
    %v982 = vrot.slane %v967, 2
    %v983 = vrot.slane %v969, 2
    %v984 = vrot.slane %v971, 2
    %v985 = vrot.slane %v973, 2
    %v986 = vrot.slane %v975, 2
    %v987 = vrot.slane %v977, 2
    %v988 = vrot.slane %v979, 2
    %v989 = vrot.slane %v981, 2
    %998 = vrot.lane.b32.xlu0 %v734, 16
    %v999 = vpop.permute.xlu0 %998
    %1000 = vrot.lane.b32.xlu0 %v735, 16
    %v1001 = vpop.permute.xlu0 %1000
    %1002 = vrot.lane.b32.xlu0 %v736, 16
    %v1003 = vpop.permute.xlu0 %1002
    %1004 = vrot.lane.b32.xlu0 %v737, 16
    %v1005 = vpop.permute.xlu0 %1004
    %1006 = vrot.lane.b32.xlu0 %v738, 16
    %v1007 = vpop.permute.xlu0 %1006
    %1008 = vrot.lane.b32.xlu0 %v739, 16
    %v1009 = vpop.permute.xlu0 %1008
    %1010 = vrot.lane.b32.xlu0 %v740, 16
    %v1011 = vpop.permute.xlu0 %1010
    %1012 = vrot.lane.b32.xlu0 %v741, 16
    %v1013 = vpop.permute.xlu0 %1012
    %v1014 = vrot.slane %v999, 2
    %v1015 = vrot.slane %v1001, 2
    %v1016 = vrot.slane %v1003, 2
    %v1017 = vrot.slane %v1005, 2
    %v1018 = vrot.slane %v1007, 2
    %v1019 = vrot.slane %v1009, 2
    %v1020 = vrot.slane %v1011, 2
    %v1021 = vrot.slane %v1013, 2
    %v1030 = vmax.f32 %v982, %v1014
    %v1031 = vmax.f32 %v983, %v1015
    %v1032 = vmax.f32 %v984, %v1016
    %v1033 = vmax.f32 %v985, %v1017
    %v1034 = vmax.f32 %v986, %v1018
    %v1035 = vmax.f32 %v987, %v1019
    %v1036 = vmax.f32 %v988, %v1020
    %v1037 = vmax.f32 %v989, %v1021
    %1046 = vst [vmem:[#allocation1] ss:$4 sm:$0xff] %v774
    %s1047 = scalar_lea.vmem [#allocation1], 1
    %1048 = vst [vmem:[%s1047] ss:$4 sm:$0xff] %v775
    %s1049 = scalar_lea.vmem [#allocation1], 2
    %1050 = vst [vmem:[%s1049] ss:$4 sm:$0xff] %v776
    %s1051 = scalar_lea.vmem [#allocation1], 3
    %1052 = vst [vmem:[%s1051] ss:$4 sm:$0xff] %v777
    %s1053 = scalar_lea.vmem [#allocation1], 32
    %1054 = vst [vmem:[%s1053] ss:$4 sm:$0xff] %v778
    %s1055 = scalar_lea.vmem [#allocation1], 33
    %1056 = vst [vmem:[%s1055] ss:$4 sm:$0xff] %v779
    %s1057 = scalar_lea.vmem [#allocation1], 34
    %1058 = vst [vmem:[%s1057] ss:$4 sm:$0xff] %v780
    %s1059 = scalar_lea.vmem [#allocation1], 35
    %1060 = vst [vmem:[%s1059] ss:$4 sm:$0xff] %v781
    %v1061 = vld.sshfl [vmem:[#allocation1] sm:$0xff pattern:$0x73625140]
    %v1062 = vld.sshfl [vmem:[#allocation1 + $0x20] sm:$0xff pattern:$0x73625140]
    %1065 = vst [vmem:[#allocation1] ss:$4 sm:$0xff] %v774
    %s1066 = scalar_lea.vmem [#allocation1], 1
    %1067 = vst [vmem:[%s1066] ss:$4 sm:$0xff] %v775
    %s1068 = scalar_lea.vmem [#allocation1], 2
    %1069 = vst [vmem:[%s1068] ss:$4 sm:$0xff] %v776
    %s1070 = scalar_lea.vmem [#allocation1], 3
    %1071 = vst [vmem:[%s1070] ss:$4 sm:$0xff] %v777
    %s1072 = scalar_lea.vmem [#allocation1], 32
    %1073 = vst [vmem:[%s1072] ss:$4 sm:$0xff] %v778
    %s1074 = scalar_lea.vmem [#allocation1], 33
    %1075 = vst [vmem:[%s1074] ss:$4 sm:$0xff] %v779
    %s1076 = scalar_lea.vmem [#allocation1], 34
    %1077 = vst [vmem:[%s1076] ss:$4 sm:$0xff] %v780
    %s1078 = scalar_lea.vmem [#allocation1], 35
    %1079 = vst [vmem:[%s1078] ss:$4 sm:$0xff] %v781
    %v1080 = vld.sshfl [vmem:[#allocation1] sm:$0xff pattern:$0x73625140]
    %v1081 = vld.sshfl [vmem:[#allocation1 + $0x20] sm:$0xff pattern:$0x73625140]
    %1082 = vrot.lane.b32.xlu0 %v1080, 112
    %v1083 = vpop.permute.xlu0 %1082
    %1084 = vrot.lane.b32.xlu0 %v1081, 112
    %v1085 = vpop.permute.xlu0 %1084
    %1088 = vst [vmem:[#allocation1] ss:$4 sm:$0xff] %v774
    %s1089 = scalar_lea.vmem [#allocation1], 1
    %1090 = vst [vmem:[%s1089] ss:$4 sm:$0xff] %v775
    %s1091 = scalar_lea.vmem [#allocation1], 2
    %1092 = vst [vmem:[%s1091] ss:$4 sm:$0xff] %v776
    %s1093 = scalar_lea.vmem [#allocation1], 3
    %1094 = vst [vmem:[%s1093] ss:$4 sm:$0xff] %v777
    %s1095 = scalar_lea.vmem [#allocation1], 32
    %1096 = vst [vmem:[%s1095] ss:$4 sm:$0xff] %v778
    %s1097 = scalar_lea.vmem [#allocation1], 33
    %1098 = vst [vmem:[%s1097] ss:$4 sm:$0xff] %v779
    %s1099 = scalar_lea.vmem [#allocation1], 34
    %1100 = vst [vmem:[%s1099] ss:$4 sm:$0xff] %v780
    %s1101 = scalar_lea.vmem [#allocation1], 35
    %1102 = vst [vmem:[%s1101] ss:$4 sm:$0xff] %v781
    %v1103 = vld.sshfl [vmem:[#allocation1] sm:$0xff pattern:$0x73625140]
    %v1104 = vld.sshfl [vmem:[#allocation1 + $0x20] sm:$0xff pattern:$0x73625140]
    %1105 = vrot.lane.b32.xlu0 %v1103, 96
    %v1106 = vpop.permute.xlu0 %1105
    %1107 = vrot.lane.b32.xlu0 %v1104, 96
    %v1108 = vpop.permute.xlu0 %1107
    %1111 = vst [vmem:[#allocation1] ss:$4 sm:$0xff] %v774
    %s1112 = scalar_lea.vmem [#allocation1], 1
    %1113 = vst [vmem:[%s1112] ss:$4 sm:$0xff] %v775
    %s1114 = scalar_lea.vmem [#allocation1], 2
    %1115 = vst [vmem:[%s1114] ss:$4 sm:$0xff] %v776
    %s1116 = scalar_lea.vmem [#allocation1], 3
    %1117 = vst [vmem:[%s1116] ss:$4 sm:$0xff] %v777
    %s1118 = scalar_lea.vmem [#allocation1], 32
    %1119 = vst [vmem:[%s1118] ss:$4 sm:$0xff] %v778
    %s1120 = scalar_lea.vmem [#allocation1], 33
    %1121 = vst [vmem:[%s1120] ss:$4 sm:$0xff] %v779
    %s1122 = scalar_lea.vmem [#allocation1], 34
    %1123 = vst [vmem:[%s1122] ss:$4 sm:$0xff] %v780
    %s1124 = scalar_lea.vmem [#allocation1], 35
    %1125 = vst [vmem:[%s1124] ss:$4 sm:$0xff] %v781
    %v1126 = vld.sshfl [vmem:[#allocation1] sm:$0xff pattern:$0x73625140]
    %v1127 = vld.sshfl [vmem:[#allocation1 + $0x20] sm:$0xff pattern:$0x73625140]
    %1128 = vrot.lane.b32.xlu0 %v1126, 80
    %v1129 = vpop.permute.xlu0 %1128
    %1130 = vrot.lane.b32.xlu0 %v1127, 80
    %v1131 = vpop.permute.xlu0 %1130
    %1142 = vst [vmem:[#allocation1] ss:$4 sm:$0xff] %v814
    %s1143 = scalar_lea.vmem [#allocation1], 1
    %1144 = vst [vmem:[%s1143] ss:$4 sm:$0xff] %v815
    %s1145 = scalar_lea.vmem [#allocation1], 2
    %1146 = vst [vmem:[%s1145] ss:$4 sm:$0xff] %v816
    %s1147 = scalar_lea.vmem [#allocation1], 3
    %1148 = vst [vmem:[%s1147] ss:$4 sm:$0xff] %v817
    %s1149 = scalar_lea.vmem [#allocation1], 32
    %1150 = vst [vmem:[%s1149] ss:$4 sm:$0xff] %v818
    %s1151 = scalar_lea.vmem [#allocation1], 33
    %1152 = vst [vmem:[%s1151] ss:$4 sm:$0xff] %v819
    %s1153 = scalar_lea.vmem [#allocation1], 34
    %1154 = vst [vmem:[%s1153] ss:$4 sm:$0xff] %v820
    %s1155 = scalar_lea.vmem [#allocation1], 35
    %1156 = vst [vmem:[%s1155] ss:$4 sm:$0xff] %v821
    %v1157 = vld.sshfl [vmem:[#allocation1] sm:$0xff pattern:$0x73625140]
    %v1158 = vld.sshfl [vmem:[#allocation1 + $0x20] sm:$0xff pattern:$0x73625140]
    %1159 = vrot.lane.b32.xlu0 %v1157, 64
    %v1160 = vpop.permute.xlu0 %1159
    %1161 = vrot.lane.b32.xlu0 %v1158, 64
    %v1162 = vpop.permute.xlu0 %1161
    %1173 = vst [vmem:[#allocation1] ss:$4 sm:$0xff] %v886
    %s1174 = scalar_lea.vmem [#allocation1], 1
    %1175 = vst [vmem:[%s1174] ss:$4 sm:$0xff] %v887
    %s1176 = scalar_lea.vmem [#allocation1], 2
    %1177 = vst [vmem:[%s1176] ss:$4 sm:$0xff] %v888
    %s1178 = scalar_lea.vmem [#allocation1], 3
    %1179 = vst [vmem:[%s1178] ss:$4 sm:$0xff] %v889
    %s1180 = scalar_lea.vmem [#allocation1], 32
    %1181 = vst [vmem:[%s1180] ss:$4 sm:$0xff] %v890
    %s1182 = scalar_lea.vmem [#allocation1], 33
    %1183 = vst [vmem:[%s1182] ss:$4 sm:$0xff] %v891
    %s1184 = scalar_lea.vmem [#allocation1], 34
    %1185 = vst [vmem:[%s1184] ss:$4 sm:$0xff] %v892
    %s1186 = scalar_lea.vmem [#allocation1], 35
    %1187 = vst [vmem:[%s1186] ss:$4 sm:$0xff] %v893
    %v1188 = vld.sshfl [vmem:[#allocation1] sm:$0xff pattern:$0x73625140]
    %v1189 = vld.sshfl [vmem:[#allocation1 + $0x20] sm:$0xff pattern:$0x73625140]
    %1190 = vrot.lane.b32.xlu0 %v1188, 80
    %v1191 = vpop.permute.xlu0 %1190
    %1192 = vrot.lane.b32.xlu0 %v1189, 80
    %v1193 = vpop.permute.xlu0 %1192
    %1204 = vst [vmem:[#allocation1] ss:$4 sm:$0xff] %v958
    %s1205 = scalar_lea.vmem [#allocation1], 1
    %1206 = vst [vmem:[%s1205] ss:$4 sm:$0xff] %v959
    %s1207 = scalar_lea.vmem [#allocation1], 2
    %1208 = vst [vmem:[%s1207] ss:$4 sm:$0xff] %v960
    %s1209 = scalar_lea.vmem [#allocation1], 3
    %1210 = vst [vmem:[%s1209] ss:$4 sm:$0xff] %v961
    %s1211 = scalar_lea.vmem [#allocation1], 32
    %1212 = vst [vmem:[%s1211] ss:$4 sm:$0xff] %v962
    %s1213 = scalar_lea.vmem [#allocation1], 33
    %1214 = vst [vmem:[%s1213] ss:$4 sm:$0xff] %v963
    %s1215 = scalar_lea.vmem [#allocation1], 34
    %1216 = vst [vmem:[%s1215] ss:$4 sm:$0xff] %v964
    %s1217 = scalar_lea.vmem [#allocation1], 35
    %1218 = vst [vmem:[%s1217] ss:$4 sm:$0xff] %v965
    %v1219 = vld.sshfl [vmem:[#allocation1] sm:$0xff pattern:$0x73625140]
    %v1220 = vld.sshfl [vmem:[#allocation1 + $0x20] sm:$0xff pattern:$0x73625140]
    %1221 = vrot.lane.b32.xlu0 %v1219, 96
    %v1222 = vpop.permute.xlu0 %1221
    %1223 = vrot.lane.b32.xlu0 %v1220, 96
    %v1224 = vpop.permute.xlu0 %1223
    %1235 = vst [vmem:[#allocation1] ss:$4 sm:$0xff] %v1030
    %s1236 = scalar_lea.vmem [#allocation1], 1
    %1237 = vst [vmem:[%s1236] ss:$4 sm:$0xff] %v1031
    %s1238 = scalar_lea.vmem [#allocation1], 2
    %1239 = vst [vmem:[%s1238] ss:$4 sm:$0xff] %v1032
    %s1240 = scalar_lea.vmem [#allocation1], 3
    %1241 = vst [vmem:[%s1240] ss:$4 sm:$0xff] %v1033
    %s1242 = scalar_lea.vmem [#allocation1], 32
    %1243 = vst [vmem:[%s1242] ss:$4 sm:$0xff] %v1034
    %s1244 = scalar_lea.vmem [#allocation1], 33
    %1245 = vst [vmem:[%s1244] ss:$4 sm:$0xff] %v1035
    %s1246 = scalar_lea.vmem [#allocation1], 34
    %1247 = vst [vmem:[%s1246] ss:$4 sm:$0xff] %v1036
    %s1248 = scalar_lea.vmem [#allocation1], 35
    %1249 = vst [vmem:[%s1248] ss:$4 sm:$0xff] %v1037
    %v1250 = vld.sshfl [vmem:[#allocation1] sm:$0xff pattern:$0x73625140]
    %v1251 = vld.sshfl [vmem:[#allocation1 + $0x20] sm:$0xff pattern:$0x73625140]
    %1252 = vrot.lane.b32.xlu0 %v1250, 112
    %v1253 = vpop.permute.xlu0 %1252
    %1254 = vrot.lane.b32.xlu0 %v1251, 112
    %v1255 = vpop.permute.xlu0 %1254
    %vm1258 = vcmask 130048
    %v1259 = vsel %vm1258, %v1061, %v1083
    %v1260 = vsel %vm1258, %v1062, %v1085
    %vm1261 = vcmask 261120
    %v1262 = vsel %vm1261, %v1259, %v1106
    %v1263 = vsel %vm1261, %v1260, %v1108
    %vm1264 = vcmask 392192
    %v1265 = vsel %vm1264, %v1262, %v1129
    %v1266 = vsel %vm1264, %v1263, %v1131
    %vm1267 = vcmask 523264
    %v1268 = vsel %vm1267, %v1265, %v1160
    %v1269 = vsel %vm1267, %v1266, %v1162
    %vm1270 = vcmask 654336
    %v1271 = vsel %vm1270, %v1268, %v1191
    %v1272 = vsel %vm1270, %v1269, %v1193
    %vm1273 = vcmask 785408
    %v1274 = vsel %vm1273, %v1271, %v1222
    %v1275 = vsel %vm1273, %v1272, %v1224
    %vm1276 = vcmask 916480
    %v1277 = vsel %vm1276, %v1274, %v1253
    %v1278 = vsel %vm1276, %v1275, %v1255
    %v1279 = vld [vmem:[%s3] sm:$0x1]
    %v1280 = vld [vmem:[%s4] sm:$0x1]
    %v1281 = vadd.f32 %v1277, %v1278
    %v1282 = vrot.slane %v1281, 4
    %v1283 = vadd.f32 %v1281, %v1282
    %v1284 = vrot.slane %v1283, 2
    %v1285 = vadd.f32 %v1283, %v1284
    %v1286 = vrot.slane %v1285, 1
    %v1287 = vadd.f32 %v1285, %v1286
    %1289 = vrot.lane.b32.xlu0 %v1287, 112
    %v1290 = vpop.permute.xlu0 %1289
    %v1292 = vadd.f32 %v1287, %v1290
    %1293 = vrot.lane.b32.xlu0 %v1287, 96
    %v1294 = vpop.permute.xlu0 %1293
    %v1296 = vadd.f32 %v1292, %v1294
    %1297 = vrot.lane.b32.xlu0 %v1287, 80
    %v1298 = vpop.permute.xlu0 %1297
    %v1300 = vadd.f32 %v1296, %v1298
    %1301 = vrot.lane.b32.xlu0 %v1287, 64
    %v1302 = vpop.permute.xlu0 %1301
    %v1304 = vadd.f32 %v1300, %v1302
    %1305 = vrot.lane.b32.xlu0 %v1287, 48
    %v1306 = vpop.permute.xlu0 %1305
    %v1308 = vadd.f32 %v1304, %v1306
    %1309 = vrot.lane.b32.xlu0 %v1287, 32
    %v1310 = vpop.permute.xlu0 %1309
    %v1312 = vadd.f32 %v1308, %v1310
    %1313 = vrot.lane.b32.xlu0 %v1287, 16
    %v1314 = vpop.permute.xlu0 %1313
    %v1316 = vadd.f32 %v1312, %v1314
    %v1317 = vrcp.pop 128.0
    %v1318 = vmul.f32 128.0, %v1317
    %v1319 = vsub.f32 1.0, %v1318
    %v1320 = vmul.f32 %v1317, %v1319
    %v1321 = vadd.f32 %v1317, %v1320
    %vm1322 = vweird.f32 %v1317
    %v1323 = vsel %vm1322, %v1317, %v1321
    %v1324 = vmul.f32 %v1316, %v1323
    %1326 = vrot.lane.b32.xlu0 %v1324, 16
    %v1327 = vpop.permute.xlu0 %1326
    %1329 = vrot.lane.b32.xlu0 %v1324, 32
    %v1330 = vpop.permute.xlu0 %1329
    %1332 = vrot.lane.b32.xlu0 %v1324, 48
    %v1333 = vpop.permute.xlu0 %1332
    %1335 = vrot.lane.b32.xlu0 %v1324, 64
    %v1336 = vpop.permute.xlu0 %1335
    %1338 = vrot.lane.b32.xlu0 %v1324, 80
    %v1339 = vpop.permute.xlu0 %1338
    %1341 = vrot.lane.b32.xlu0 %v1324, 96
    %v1342 = vpop.permute.xlu0 %1341
    %1344 = vrot.lane.b32.xlu0 %v1324, 112
    %v1345 = vpop.permute.xlu0 %1344
    %v1347 = vsel %vm1258, %v1324, %v1327
    %v1348 = vsel %vm1261, %v1347, %v1330
    %v1349 = vsel %vm1264, %v1348, %v1333
    %v1350 = vsel %vm1267, %v1349, %v1336
    %v1351 = vsel %vm1270, %v1350, %v1339
    %v1352 = vsel %vm1273, %v1351, %v1342
    %v1353 = vsel %vm1276, %v1352, %v1345
    %v1354 = vperm.slane %v1353, 0
    %v1355 = vsub.f32 %v1277, %v1354
    %v1356 = vsub.f32 %v1278, %v1354
    %v1357 = vmul.f32 %v1355, %v1355
    %v1358 = vmul.f32 %v1356, %v1356
    %v1359 = vadd.f32 %v1357, %v1358
    %v1360 = vrot.slane %v1359, 4
    %v1361 = vadd.f32 %v1359, %v1360
    %v1362 = vrot.slane %v1361, 2
    %v1363 = vadd.f32 %v1361, %v1362
    %v1364 = vrot.slane %v1363, 1
    %v1365 = vadd.f32 %v1363, %v1364
    %1367 = vrot.lane.b32.xlu0 %v1365, 112
    %v1368 = vpop.permute.xlu0 %1367
    %v1370 = vadd.f32 %v1365, %v1368
    %1371 = vrot.lane.b32.xlu0 %v1365, 96
    %v1372 = vpop.permute.xlu0 %1371
    %v1374 = vadd.f32 %v1370, %v1372
    %1375 = vrot.lane.b32.xlu0 %v1365, 80
    %v1376 = vpop.permute.xlu0 %1375
    %v1378 = vadd.f32 %v1374, %v1376
    %1379 = vrot.lane.b32.xlu0 %v1365, 64
    %v1380 = vpop.permute.xlu0 %1379
    %v1382 = vadd.f32 %v1378, %v1380
    %1383 = vrot.lane.b32.xlu0 %v1365, 48
    %v1384 = vpop.permute.xlu0 %1383
    %v1386 = vadd.f32 %v1382, %v1384
    %1387 = vrot.lane.b32.xlu0 %v1365, 32
    %v1388 = vpop.permute.xlu0 %1387
    %v1390 = vadd.f32 %v1386, %v1388
    %1391 = vrot.lane.b32.xlu0 %v1365, 16
    %v1392 = vpop.permute.xlu0 %1391
    %v1394 = vadd.f32 %v1390, %v1392
    %v1395 = vmul.f32 %v1394, %v1323
    %v1396 = vadd.f32 %v1395, 1e-05
    %v1397 = vrsqrt.pop %v1396
    %v1398 = vmul.f32 %v1397, %v1396
    %v1399 = vmul.f32 %v1398, %v1397
    %v1400 = vmul.f32 0.5, %v1399
    %v1401 = vsub.f32 1.5, %v1400
    %v1402 = vmul.f32 %v1397, %v1401
    %vm1403 = vweird.f32 %v1396
    %vm1404 = vweird.f32 %v1397
    %vm1405 = vmor %vm1403, %vm1404
    %v1406 = vsel %vm1405, %v1397, %v1402
    %v1407 = vmul.f32 %v1279, %v1406
    %v1409 = vperm.slane %v1407, 0
    %1410 = vrot.lane.b32.xlu0 %v1409, 16
    %v1411 = vpop.permute.xlu0 %1410
    %1413 = vrot.lane.b32.xlu0 %v1409, 32
    %v1414 = vpop.permute.xlu0 %1413
    %1416 = vrot.lane.b32.xlu0 %v1409, 48
    %v1417 = vpop.permute.xlu0 %1416
    %1419 = vrot.lane.b32.xlu0 %v1409, 64
    %v1420 = vpop.permute.xlu0 %1419
    %1422 = vrot.lane.b32.xlu0 %v1409, 80
    %v1423 = vpop.permute.xlu0 %1422
    %1425 = vrot.lane.b32.xlu0 %v1409, 96
    %v1426 = vpop.permute.xlu0 %1425
    %1428 = vrot.lane.b32.xlu0 %v1409, 112
    %v1429 = vpop.permute.xlu0 %1428
    %v1431 = vsel %vm1258, %v1407, %v1411
    %v1432 = vsel %vm1261, %v1431, %v1414
    %v1433 = vsel %vm1264, %v1432, %v1417
    %v1434 = vsel %vm1267, %v1433, %v1420
    %v1435 = vsel %vm1270, %v1434, %v1423
    %v1436 = vsel %vm1273, %v1435, %v1426
    %v1437 = vsel %vm1276, %v1436, %v1429
    %v1438 = vperm.slane %v1437, 0
    %v1439 = vmul.f32 %v1355, %v1438
    %v1440 = vmul.f32 %v1356, %v1438
    %v1442 = vperm.slane %v1280, 0
    %1443 = vrot.lane.b32.xlu0 %v1442, 16
    %v1444 = vpop.permute.xlu0 %1443
    %1446 = vrot.lane.b32.xlu0 %v1442, 32
    %v1447 = vpop.permute.xlu0 %1446
    %1449 = vrot.lane.b32.xlu0 %v1442, 48
    %v1450 = vpop.permute.xlu0 %1449
    %1452 = vrot.lane.b32.xlu0 %v1442, 64
    %v1453 = vpop.permute.xlu0 %1452
    %1455 = vrot.lane.b32.xlu0 %v1442, 80
    %v1456 = vpop.permute.xlu0 %1455
    %1458 = vrot.lane.b32.xlu0 %v1442, 96
    %v1459 = vpop.permute.xlu0 %1458
    %1461 = vrot.lane.b32.xlu0 %v1442, 112
    %v1462 = vpop.permute.xlu0 %1461
    %v1464 = vsel %vm1258, %v1280, %v1444
    %v1465 = vsel %vm1261, %v1464, %v1447
    %v1466 = vsel %vm1264, %v1465, %v1450
    %v1467 = vsel %vm1267, %v1466, %v1453
    %v1468 = vsel %vm1270, %v1467, %v1456
    %v1469 = vsel %vm1273, %v1468, %v1459
    %v1470 = vsel %vm1276, %v1469, %v1462
    %v1471 = vperm.slane %v1470, 0
    %v1472 = vadd.f32 %v1439, %v1471
    %v1473 = vadd.f32 %v1440, %v1471
    %1476 = vrot.lane.b32.xlu0 %v1472, 32
    %v1477 = vpop.permute.xlu0 %1476
    %1478 = vrot.lane.b32.xlu0 %v1473, 32
    %v1479 = vpop.permute.xlu0 %1478
    %v1482 = vsel %vm1261, 0.0, %v1477
    %v1483 = vsel %vm1261, 0.0, %v1479
    %v1484 = vsel %vm1261, %v1477, 0.0
    %v1485 = vsel %vm1261, %v1479, 0.0
    %v1490 = vrot.slane %v1482, 6
    %v1491 = vrot.slane %v1484, 6
    %v1492 = vrot.slane %v1483, 6
    %v1493 = vrot.slane %v1485, 6
    %v1498 = vsel %vm142, 0.0, %v1490
    %v1499 = vsel %vm142, 0.0, %v1491
    %v1500 = vsel %vm142, 0.0, %v1492
    %v1501 = vsel %vm142, 0.0, %v1493
    %v1502 = vsel %vm142, %v1490, 0.0
    %v1503 = vsel %vm142, %v1491, 0.0
    %v1504 = vsel %vm142, %v1492, 0.0
    %v1505 = vsel %vm142, %v1493, 0.0
    %v1506 = vld [vmem:[#allocation7] sm:$0xff]
    %v1507 = vld [vmem:[#allocation7 + $0x8] sm:$0xff]
    %v1508 = vld [vmem:[#allocation7 + $0x10] sm:$0xff]
    %v1509 = vld [vmem:[#allocation7 + $0x18] sm:$0xff]
    %v1510 = vld [vmem:[#allocation7 + $0x20] sm:$0xff]
    %v1511 = vld [vmem:[#allocation7 + $0x28] sm:$0xff]
    %v1512 = vld [vmem:[#allocation7 + $0x30] sm:$0xff]
    %v1513 = vld [vmem:[#allocation7 + $0x38] sm:$0xff]
    %v1514 = vld [vmem:[#allocation7 + $0x40] sm:$0xff]
    %v1515 = vld [vmem:[#allocation7 + $0x48] sm:$0xff]
    %v1516 = vld [vmem:[#allocation7 + $0x50] sm:$0xff]
    %v1517 = vld [vmem:[#allocation7 + $0x58] sm:$0xff]
    %v1518 = vld [vmem:[#allocation7 + $0x60] sm:$0xff]
    %v1519 = vld [vmem:[#allocation7 + $0x68] sm:$0xff]
    %v1520 = vld [vmem:[#allocation7 + $0x70] sm:$0xff]
    %v1521 = vld [vmem:[#allocation7 + $0x78] sm:$0xff]
    %v1522 = vld [vmem:[#allocation7 + $0x80] sm:$0xff]
    %v1523 = vld [vmem:[#allocation7 + $0x88] sm:$0xff]
    %v1524 = vld [vmem:[#allocation7 + $0x90] sm:$0xff]
    %v1525 = vld [vmem:[#allocation7 + $0x98] sm:$0xff]
    %v1526 = vld [vmem:[#allocation7 + $0xa0] sm:$0xff]
    %v1527 = vld [vmem:[#allocation7 + $0xa8] sm:$0xff]
    %v1528 = vld [vmem:[#allocation7 + $0xb0] sm:$0xff]
    %v1529 = vld [vmem:[#allocation7 + $0xb8] sm:$0xff]
    %v1530 = vld [vmem:[#allocation7 + $0xc0] sm:$0xff]
    %v1531 = vld [vmem:[#allocation7 + $0xc8] sm:$0xff]
    %v1532 = vld [vmem:[#allocation7 + $0xd0] sm:$0xff]
    %v1533 = vld [vmem:[#allocation7 + $0xd8] sm:$0xff]
    %v1534 = vld [vmem:[#allocation7 + $0xe0] sm:$0xff]
    %v1535 = vld [vmem:[#allocation7 + $0xe8] sm:$0xff]
    %v1536 = vld [vmem:[#allocation7 + $0xf0] sm:$0xff]
    %v1537 = vld [vmem:[#allocation7 + $0xf8] sm:$0xff]
    %v1538 = vld [vmem:[#allocation7 + $0x100] sm:$0xff]
    %v1539 = vld [vmem:[#allocation7 + $0x108] sm:$0xff]
    %v1540 = vld [vmem:[#allocation7 + $0x110] sm:$0xff]
    %v1541 = vld [vmem:[#allocation7 + $0x118] sm:$0xff]
    %v1542 = vld [vmem:[#allocation7 + $0x120] sm:$0xff]
    %v1543 = vld [vmem:[#allocation7 + $0x128] sm:$0xff]
    %v1544 = vld [vmem:[#allocation7 + $0x130] sm:$0xff]
    %v1545 = vld [vmem:[#allocation7 + $0x138] sm:$0xff]
    %v1546 = vld [vmem:[#allocation7 + $0x140] sm:$0xff]
    %v1547 = vld [vmem:[#allocation7 + $0x148] sm:$0xff]
    %v1548 = vld [vmem:[#allocation7 + $0x150] sm:$0xff]
    %v1549 = vld [vmem:[#allocation7 + $0x158] sm:$0xff]
    %v1550 = vld [vmem:[#allocation7 + $0x160] sm:$0xff]
    %v1551 = vld [vmem:[#allocation7 + $0x168] sm:$0xff]
    %v1552 = vld [vmem:[#allocation7 + $0x170] sm:$0xff]
    %v1553 = vld [vmem:[#allocation7 + $0x178] sm:$0xff]
    %v1562 = vrot.slane %v1498, 1
    %v1563 = vrot.slane %v1502, 1
    %v1564 = vsel %vm167, %v1562, %v1563
    %v1565 = vrot.slane %v1499, 1
    %v1566 = vrot.slane %v1503, 1
    %v1567 = vsel %vm167, %v1565, %v1566
    %v1568 = vrot.slane %v1500, 1
    %v1569 = vrot.slane %v1504, 1
    %v1570 = vsel %vm167, %v1568, %v1569
    %v1571 = vrot.slane %v1501, 1
    %v1572 = vrot.slane %v1505, 1
    %v1573 = vsel %vm167, %v1571, %v1572
    %s1576 = scalar_lea.vmem [#allocation7], 384
    %v1577 = vld [vmem:[%s1576] sm:$0xff]
    %v1578 = vld [vmem:[%s1576 + $0x8] sm:$0xff]
    %v1579 = vld [vmem:[%s1576 + $0x10] sm:$0xff]
    %v1580 = vld [vmem:[%s1576 + $0x18] sm:$0xff]
    %v1581 = vld [vmem:[%s1576 + $0x20] sm:$0xff]
    %v1582 = vld [vmem:[%s1576 + $0x28] sm:$0xff]
    %v1583 = vld [vmem:[%s1576 + $0x30] sm:$0xff]
    %v1584 = vld [vmem:[%s1576 + $0x38] sm:$0xff]
    %v1585 = vld [vmem:[%s1576 + $0x40] sm:$0xff]
    %v1586 = vld [vmem:[%s1576 + $0x48] sm:$0xff]
    %v1587 = vld [vmem:[%s1576 + $0x50] sm:$0xff]
    %v1588 = vld [vmem:[%s1576 + $0x58] sm:$0xff]
    %v1589 = vld [vmem:[%s1576 + $0x60] sm:$0xff]
    %v1590 = vld [vmem:[%s1576 + $0x68] sm:$0xff]
    %v1591 = vld [vmem:[%s1576 + $0x70] sm:$0xff]
    %v1592 = vld [vmem:[%s1576 + $0x78] sm:$0xff]
    %v1593 = vld [vmem:[%s1576 + $0x80] sm:$0xff]
    %v1594 = vld [vmem:[%s1576 + $0x88] sm:$0xff]
    %v1595 = vld [vmem:[%s1576 + $0x90] sm:$0xff]
    %v1596 = vld [vmem:[%s1576 + $0x98] sm:$0xff]
    %v1597 = vld [vmem:[%s1576 + $0xa0] sm:$0xff]
    %v1598 = vld [vmem:[%s1576 + $0xa8] sm:$0xff]
    %v1599 = vld [vmem:[%s1576 + $0xb0] sm:$0xff]
    %v1600 = vld [vmem:[%s1576 + $0xb8] sm:$0xff]
    %v1601 = vld [vmem:[%s1576 + $0xc0] sm:$0xff]
    %v1602 = vld [vmem:[%s1576 + $0xc8] sm:$0xff]
    %v1603 = vld [vmem:[%s1576 + $0xd0] sm:$0xff]
    %v1604 = vld [vmem:[%s1576 + $0xd8] sm:$0xff]
    %v1605 = vld [vmem:[%s1576 + $0xe0] sm:$0xff]
    %v1606 = vld [vmem:[%s1576 + $0xe8] sm:$0xff]
    %v1607 = vld [vmem:[%s1576 + $0xf0] sm:$0xff]
    %v1608 = vld [vmem:[%s1576 + $0xf8] sm:$0xff]
    %v1609 = vld [vmem:[%s1576 + $0x100] sm:$0xff]
    %v1610 = vld [vmem:[%s1576 + $0x108] sm:$0xff]
    %v1611 = vld [vmem:[%s1576 + $0x110] sm:$0xff]
    %v1612 = vld [vmem:[%s1576 + $0x118] sm:$0xff]
    %v1613 = vld [vmem:[%s1576 + $0x120] sm:$0xff]
    %v1614 = vld [vmem:[%s1576 + $0x128] sm:$0xff]
    %v1615 = vld [vmem:[%s1576 + $0x130] sm:$0xff]
    %v1616 = vld [vmem:[%s1576 + $0x138] sm:$0xff]
    %v1617 = vld [vmem:[%s1576 + $0x140] sm:$0xff]
    %v1618 = vld [vmem:[%s1576 + $0x148] sm:$0xff]
    %v1619 = vld [vmem:[%s1576 + $0x150] sm:$0xff]
    %v1620 = vld [vmem:[%s1576 + $0x158] sm:$0xff]
    %v1621 = vld [vmem:[%s1576 + $0x160] sm:$0xff]
    %v1622 = vld [vmem:[%s1576 + $0x168] sm:$0xff]
    %v1623 = vld [vmem:[%s1576 + $0x170] sm:$0xff]
    %v1624 = vld [vmem:[%s1576 + $0x178] sm:$0xff]
    %v1625 = vsel %vm1267, %v1567, 0
    %v1627 = vsel %vm1267, %v1573, 0
    %1629 = vmatpush.msra.mxu0 %v1607
    %1630 = vmatpush.msra.mxu0 %v1605
    %1631 = vmatpush.msra.mxu0 %v1603
    %1632 = vmatpush.msra.mxu0 %v1601
    %1633 = vmatpush.msra.mxu0 %v1599
    %1634 = vmatpush.msra.mxu0 %v1597
    %1635 = vmatpush.msra.mxu0 %v1595
    %1636 = vmatpush.msra.mxu0 %v1593
    %1637 = vmatpush.msra.mxu0 %v1591
    %1638 = vmatpush.msra.mxu0 %v1589
    %1639 = vmatpush.msra.mxu0 %v1587
    %1640 = vmatpush.msra.mxu0 %v1585
    %1641 = vmatpush.msra.mxu0 %v1583
    %1642 = vmatpush.msra.mxu0 %v1581
    %1643 = vmatpush.msra.mxu0 %v1579
    %1644 = vmatpush.msra.mxu0 %v1577
    %1645 = vmatmul.f32.gmra.mxu0 %v1564
    %v1646 = vpop.f32.mrf.mxu0
    %v1647 = vadd.f32 0.0, %v1646
    %1648 = vmatmul.f32.gmra.mxu0 %v1570
    %v1649 = vpop.f32.mrf.mxu0
    %v1650 = vadd.f32 0.0, %v1649
    %1651 = vdwg.mxu0
    %1652 = vmatpush.msra.mxu0 0.0
    %1653 = vmatpush.msra.mxu0 0.0
    %1654 = vmatpush.msra.mxu0 0.0
    %1655 = vmatpush.msra.mxu0 0.0
    %1656 = vmatpush.msra.mxu0 0.0
    %1657 = vmatpush.msra.mxu0 0.0
    %1658 = vmatpush.msra.mxu0 0.0
    %1659 = vmatpush.msra.mxu0 0.0
    %1660 = vmatpush.msra.mxu0 %v1623
    %1661 = vmatpush.msra.mxu0 %v1621
    %1662 = vmatpush.msra.mxu0 %v1619
    %1663 = vmatpush.msra.mxu0 %v1617
    %1664 = vmatpush.msra.mxu0 %v1615
    %1665 = vmatpush.msra.mxu0 %v1613
    %1666 = vmatpush.msra.mxu0 %v1611
    %1667 = vmatpush.msra.mxu0 %v1609
    %1668 = vmatmul.f32.gmra.mxu0 %v1625
    %v1669 = vpop.f32.mrf.mxu0
    %v1670 = vadd.f32 %v1647, %v1669
    %1671 = vmatmul.f32.gmra.mxu0 %v1627
    %v1672 = vpop.f32.mrf.mxu0
    %v1673 = vadd.f32 %v1650, %v1672
    %1674 = vdwg.mxu0
    %1675 = vmatpush.msra.mxu0 %v1608
    %1676 = vmatpush.msra.mxu0 %v1606
    %1677 = vmatpush.msra.mxu0 %v1604
    %1678 = vmatpush.msra.mxu0 %v1602
    %1679 = vmatpush.msra.mxu0 %v1600
    %1680 = vmatpush.msra.mxu0 %v1598
    %1681 = vmatpush.msra.mxu0 %v1596
    %1682 = vmatpush.msra.mxu0 %v1594
    %1683 = vmatpush.msra.mxu0 %v1592
    %1684 = vmatpush.msra.mxu0 %v1590
    %1685 = vmatpush.msra.mxu0 %v1588
    %1686 = vmatpush.msra.mxu0 %v1586
    %1687 = vmatpush.msra.mxu0 %v1584
    %1688 = vmatpush.msra.mxu0 %v1582
    %1689 = vmatpush.msra.mxu0 %v1580
    %1690 = vmatpush.msra.mxu0 %v1578
    %1691 = vmatmul.f32.gmra.mxu0 %v1564
    %v1692 = vpop.f32.mrf.mxu0
    %v1693 = vadd.f32 0.0, %v1692
    %1694 = vmatmul.f32.gmra.mxu0 %v1570
    %v1695 = vpop.f32.mrf.mxu0
    %v1696 = vadd.f32 0.0, %v1695
    %1697 = vdwg.mxu0
    %1698 = vmatpush.msra.mxu0 0.0
    %1699 = vmatpush.msra.mxu0 0.0
    %1700 = vmatpush.msra.mxu0 0.0
    %1701 = vmatpush.msra.mxu0 0.0
    %1702 = vmatpush.msra.mxu0 0.0
    %1703 = vmatpush.msra.mxu0 0.0
    %1704 = vmatpush.msra.mxu0 0.0
    %1705 = vmatpush.msra.mxu0 0.0
    %1706 = vmatpush.msra.mxu0 %v1624
    %1707 = vmatpush.msra.mxu0 %v1622
    %1708 = vmatpush.msra.mxu0 %v1620
    %1709 = vmatpush.msra.mxu0 %v1618
    %1710 = vmatpush.msra.mxu0 %v1616
    %1711 = vmatpush.msra.mxu0 %v1614
    %1712 = vmatpush.msra.mxu0 %v1612
    %1713 = vmatpush.msra.mxu0 %v1610
    %1714 = vmatmul.f32.gmra.mxu0 %v1625
    %v1715 = vpop.f32.mrf.mxu0
    %v1716 = vadd.f32 %v1693, %v1715
    %1717 = vmatmul.f32.gmra.mxu0 %v1627
    %v1718 = vpop.f32.mrf.mxu0
    %v1719 = vadd.f32 %v1696, %v1718
    %1720 = vdwg.mxu0
    %v1721 = vsel %vm1267, %v1499, 0
    %v1723 = vsel %vm1267, %v1501, 0
    %1725 = vmatpush.msra.mxu0 %v1536
    %1726 = vmatpush.msra.mxu0 %v1534
    %1727 = vmatpush.msra.mxu0 %v1532
    %1728 = vmatpush.msra.mxu0 %v1530
    %1729 = vmatpush.msra.mxu0 %v1528
    %1730 = vmatpush.msra.mxu0 %v1526
    %1731 = vmatpush.msra.mxu0 %v1524
    %1732 = vmatpush.msra.mxu0 %v1522
    %1733 = vmatpush.msra.mxu0 %v1520
    %1734 = vmatpush.msra.mxu0 %v1518
    %1735 = vmatpush.msra.mxu0 %v1516
    %1736 = vmatpush.msra.mxu0 %v1514
    %1737 = vmatpush.msra.mxu0 %v1512
    %1738 = vmatpush.msra.mxu0 %v1510
    %1739 = vmatpush.msra.mxu0 %v1508
    %1740 = vmatpush.msra.mxu0 %v1506
    %1741 = vmatmul.f32.gmra.mxu0 %v1498
    %v1742 = vpop.f32.mrf.mxu0
    %v1743 = vadd.f32 %v1670, %v1742
    %1744 = vmatmul.f32.gmra.mxu0 %v1500
    %v1745 = vpop.f32.mrf.mxu0
    %v1746 = vadd.f32 %v1673, %v1745
    %1747 = vdwg.mxu0
    %1748 = vmatpush.msra.mxu0 0.0
    %1749 = vmatpush.msra.mxu0 0.0
    %1750 = vmatpush.msra.mxu0 0.0
    %1751 = vmatpush.msra.mxu0 0.0
    %1752 = vmatpush.msra.mxu0 0.0
    %1753 = vmatpush.msra.mxu0 0.0
    %1754 = vmatpush.msra.mxu0 0.0
    %1755 = vmatpush.msra.mxu0 0.0
    %1756 = vmatpush.msra.mxu0 %v1552
    %1757 = vmatpush.msra.mxu0 %v1550
    %1758 = vmatpush.msra.mxu0 %v1548
    %1759 = vmatpush.msra.mxu0 %v1546
    %1760 = vmatpush.msra.mxu0 %v1544
    %1761 = vmatpush.msra.mxu0 %v1542
    %1762 = vmatpush.msra.mxu0 %v1540
    %1763 = vmatpush.msra.mxu0 %v1538
    %1764 = vmatmul.f32.gmra.mxu0 %v1721
    %v1765 = vpop.f32.mrf.mxu0
    %v1766 = vadd.f32 %v1743, %v1765
    %1767 = vmatmul.f32.gmra.mxu0 %v1723
    %v1768 = vpop.f32.mrf.mxu0
    %v1769 = vadd.f32 %v1746, %v1768
    %1770 = vdwg.mxu0
    %1771 = vmatpush.msra.mxu0 %v1537
    %1772 = vmatpush.msra.mxu0 %v1535
    %1773 = vmatpush.msra.mxu0 %v1533
    %1774 = vmatpush.msra.mxu0 %v1531
    %1775 = vmatpush.msra.mxu0 %v1529
    %1776 = vmatpush.msra.mxu0 %v1527
    %1777 = vmatpush.msra.mxu0 %v1525
    %1778 = vmatpush.msra.mxu0 %v1523
    %1779 = vmatpush.msra.mxu0 %v1521
    %1780 = vmatpush.msra.mxu0 %v1519
    %1781 = vmatpush.msra.mxu0 %v1517
    %1782 = vmatpush.msra.mxu0 %v1515
    %1783 = vmatpush.msra.mxu0 %v1513
    %1784 = vmatpush.msra.mxu0 %v1511
    %1785 = vmatpush.msra.mxu0 %v1509
    %1786 = vmatpush.msra.mxu0 %v1507
    %1787 = vmatmul.f32.gmra.mxu0 %v1498
    %v1788 = vpop.f32.mrf.mxu0
    %v1789 = vadd.f32 %v1716, %v1788
    %1790 = vmatmul.f32.gmra.mxu0 %v1500
    %v1791 = vpop.f32.mrf.mxu0
    %v1792 = vadd.f32 %v1719, %v1791
    %1793 = vdwg.mxu0
    %1794 = vmatpush.msra.mxu0 0.0
    %1795 = vmatpush.msra.mxu0 0.0
    %1796 = vmatpush.msra.mxu0 0.0
    %1797 = vmatpush.msra.mxu0 0.0
    %1798 = vmatpush.msra.mxu0 0.0
    %1799 = vmatpush.msra.mxu0 0.0
    %1800 = vmatpush.msra.mxu0 0.0
    %1801 = vmatpush.msra.mxu0 0.0
    %1802 = vmatpush.msra.mxu0 %v1553
    %1803 = vmatpush.msra.mxu0 %v1551
    %1804 = vmatpush.msra.mxu0 %v1549
    %1805 = vmatpush.msra.mxu0 %v1547
    %1806 = vmatpush.msra.mxu0 %v1545
    %1807 = vmatpush.msra.mxu0 %v1543
    %1808 = vmatpush.msra.mxu0 %v1541
    %1809 = vmatpush.msra.mxu0 %v1539
    %1810 = vmatmul.f32.gmra.mxu0 %v1721
    %v1811 = vpop.f32.mrf.mxu0
    %v1812 = vadd.f32 %v1789, %v1811
    %1813 = vmatmul.f32.gmra.mxu0 %v1723
    %v1814 = vpop.f32.mrf.mxu0
    %v1815 = vadd.f32 %v1792, %v1814
    %1816 = vdwg.mxu0
    %v1817 = vrot.slane %v1498, 2
    %v1818 = vrot.slane %v1502, 2
    %v1819 = vsel %vm331, %v1817, %v1818
    %v1820 = vrot.slane %v1499, 2
    %v1821 = vrot.slane %v1503, 2
    %v1822 = vsel %vm331, %v1820, %v1821
    %v1823 = vrot.slane %v1500, 2
    %v1824 = vrot.slane %v1504, 2
    %v1825 = vsel %vm331, %v1823, %v1824
    %v1826 = vrot.slane %v1501, 2
    %v1827 = vrot.slane %v1505, 2
    %v1828 = vsel %vm331, %v1826, %v1827
    %s1831 = scalar_lea.vmem [#allocation7], 768
    %v1832 = vld [vmem:[%s1831] sm:$0xff]
    %v1833 = vld [vmem:[%s1831 + $0x8] sm:$0xff]
    %v1834 = vld [vmem:[%s1831 + $0x10] sm:$0xff]
    %v1835 = vld [vmem:[%s1831 + $0x18] sm:$0xff]
    %v1836 = vld [vmem:[%s1831 + $0x20] sm:$0xff]
    %v1837 = vld [vmem:[%s1831 + $0x28] sm:$0xff]
    %v1838 = vld [vmem:[%s1831 + $0x30] sm:$0xff]
    %v1839 = vld [vmem:[%s1831 + $0x38] sm:$0xff]
    %v1840 = vld [vmem:[%s1831 + $0x40] sm:$0xff]
    %v1841 = vld [vmem:[%s1831 + $0x48] sm:$0xff]
    %v1842 = vld [vmem:[%s1831 + $0x50] sm:$0xff]
    %v1843 = vld [vmem:[%s1831 + $0x58] sm:$0xff]
    %v1844 = vld [vmem:[%s1831 + $0x60] sm:$0xff]
    %v1845 = vld [vmem:[%s1831 + $0x68] sm:$0xff]
    %v1846 = vld [vmem:[%s1831 + $0x70] sm:$0xff]
    %v1847 = vld [vmem:[%s1831 + $0x78] sm:$0xff]
    %v1848 = vld [vmem:[%s1831 + $0x80] sm:$0xff]
    %v1849 = vld [vmem:[%s1831 + $0x88] sm:$0xff]
    %v1850 = vld [vmem:[%s1831 + $0x90] sm:$0xff]
    %v1851 = vld [vmem:[%s1831 + $0x98] sm:$0xff]
    %v1852 = vld [vmem:[%s1831 + $0xa0] sm:$0xff]
    %v1853 = vld [vmem:[%s1831 + $0xa8] sm:$0xff]
    %v1854 = vld [vmem:[%s1831 + $0xb0] sm:$0xff]
    %v1855 = vld [vmem:[%s1831 + $0xb8] sm:$0xff]
    %v1856 = vld [vmem:[%s1831 + $0xc0] sm:$0xff]
    %v1857 = vld [vmem:[%s1831 + $0xc8] sm:$0xff]
    %v1858 = vld [vmem:[%s1831 + $0xd0] sm:$0xff]
    %v1859 = vld [vmem:[%s1831 + $0xd8] sm:$0xff]
    %v1860 = vld [vmem:[%s1831 + $0xe0] sm:$0xff]
    %v1861 = vld [vmem:[%s1831 + $0xe8] sm:$0xff]
    %v1862 = vld [vmem:[%s1831 + $0xf0] sm:$0xff]
    %v1863 = vld [vmem:[%s1831 + $0xf8] sm:$0xff]
    %v1864 = vld [vmem:[%s1831 + $0x100] sm:$0xff]
    %v1865 = vld [vmem:[%s1831 + $0x108] sm:$0xff]
    %v1866 = vld [vmem:[%s1831 + $0x110] sm:$0xff]
    %v1867 = vld [vmem:[%s1831 + $0x118] sm:$0xff]
    %v1868 = vld [vmem:[%s1831 + $0x120] sm:$0xff]
    %v1869 = vld [vmem:[%s1831 + $0x128] sm:$0xff]
    %v1870 = vld [vmem:[%s1831 + $0x130] sm:$0xff]
    %v1871 = vld [vmem:[%s1831 + $0x138] sm:$0xff]
    %v1872 = vld [vmem:[%s1831 + $0x140] sm:$0xff]
    %v1873 = vld [vmem:[%s1831 + $0x148] sm:$0xff]
    %v1874 = vld [vmem:[%s1831 + $0x150] sm:$0xff]
    %v1875 = vld [vmem:[%s1831 + $0x158] sm:$0xff]
    %v1876 = vld [vmem:[%s1831 + $0x160] sm:$0xff]
    %v1877 = vld [vmem:[%s1831 + $0x168] sm:$0xff]
    %v1878 = vld [vmem:[%s1831 + $0x170] sm:$0xff]
    %v1879 = vld [vmem:[%s1831 + $0x178] sm:$0xff]
    %v1880 = vsel %vm1267, %v1822, 0
    %v1882 = vsel %vm1267, %v1828, 0
    %1884 = vmatpush.msra.mxu0 %v1862
    %1885 = vmatpush.msra.mxu0 %v1860
    %1886 = vmatpush.msra.mxu0 %v1858
    %1887 = vmatpush.msra.mxu0 %v1856
    %1888 = vmatpush.msra.mxu0 %v1854
    %1889 = vmatpush.msra.mxu0 %v1852
    %1890 = vmatpush.msra.mxu0 %v1850
    %1891 = vmatpush.msra.mxu0 %v1848
    %1892 = vmatpush.msra.mxu0 %v1846
    %1893 = vmatpush.msra.mxu0 %v1844
    %1894 = vmatpush.msra.mxu0 %v1842
    %1895 = vmatpush.msra.mxu0 %v1840
    %1896 = vmatpush.msra.mxu0 %v1838
    %1897 = vmatpush.msra.mxu0 %v1836
    %1898 = vmatpush.msra.mxu0 %v1834
    %1899 = vmatpush.msra.mxu0 %v1832
    %1900 = vmatmul.f32.gmra.mxu0 %v1819
    %v1901 = vpop.f32.mrf.mxu0
    %v1902 = vadd.f32 0.0, %v1901
    %1903 = vmatmul.f32.gmra.mxu0 %v1825
    %v1904 = vpop.f32.mrf.mxu0
    %v1905 = vadd.f32 0.0, %v1904
    %1906 = vdwg.mxu0
    %1907 = vmatpush.msra.mxu0 0.0
    %1908 = vmatpush.msra.mxu0 0.0
    %1909 = vmatpush.msra.mxu0 0.0
    %1910 = vmatpush.msra.mxu0 0.0
    %1911 = vmatpush.msra.mxu0 0.0
    %1912 = vmatpush.msra.mxu0 0.0
    %1913 = vmatpush.msra.mxu0 0.0
    %1914 = vmatpush.msra.mxu0 0.0
    %1915 = vmatpush.msra.mxu0 %v1878
    %1916 = vmatpush.msra.mxu0 %v1876
    %1917 = vmatpush.msra.mxu0 %v1874
    %1918 = vmatpush.msra.mxu0 %v1872
    %1919 = vmatpush.msra.mxu0 %v1870
    %1920 = vmatpush.msra.mxu0 %v1868
    %1921 = vmatpush.msra.mxu0 %v1866
    %1922 = vmatpush.msra.mxu0 %v1864
    %1923 = vmatmul.f32.gmra.mxu0 %v1880
    %v1924 = vpop.f32.mrf.mxu0
    %v1925 = vadd.f32 %v1902, %v1924
    %1926 = vmatmul.f32.gmra.mxu0 %v1882
    %v1927 = vpop.f32.mrf.mxu0
    %v1928 = vadd.f32 %v1905, %v1927
    %1929 = vdwg.mxu0
    %1930 = vmatpush.msra.mxu0 %v1863
    %1931 = vmatpush.msra.mxu0 %v1861
    %1932 = vmatpush.msra.mxu0 %v1859
    %1933 = vmatpush.msra.mxu0 %v1857
    %1934 = vmatpush.msra.mxu0 %v1855
    %1935 = vmatpush.msra.mxu0 %v1853
    %1936 = vmatpush.msra.mxu0 %v1851
    %1937 = vmatpush.msra.mxu0 %v1849
    %1938 = vmatpush.msra.mxu0 %v1847
    %1939 = vmatpush.msra.mxu0 %v1845
    %1940 = vmatpush.msra.mxu0 %v1843
    %1941 = vmatpush.msra.mxu0 %v1841
    %1942 = vmatpush.msra.mxu0 %v1839
    %1943 = vmatpush.msra.mxu0 %v1837
    %1944 = vmatpush.msra.mxu0 %v1835
    %1945 = vmatpush.msra.mxu0 %v1833
    %1946 = vmatmul.f32.gmra.mxu0 %v1819
    %v1947 = vpop.f32.mrf.mxu0
    %v1948 = vadd.f32 0.0, %v1947
    %1949 = vmatmul.f32.gmra.mxu0 %v1825
    %v1950 = vpop.f32.mrf.mxu0
    %v1951 = vadd.f32 0.0, %v1950
    %1952 = vdwg.mxu0
    %1953 = vmatpush.msra.mxu0 0.0
    %1954 = vmatpush.msra.mxu0 0.0
    %1955 = vmatpush.msra.mxu0 0.0
    %1956 = vmatpush.msra.mxu0 0.0
    %1957 = vmatpush.msra.mxu0 0.0
    %1958 = vmatpush.msra.mxu0 0.0
    %1959 = vmatpush.msra.mxu0 0.0
    %1960 = vmatpush.msra.mxu0 0.0
    %1961 = vmatpush.msra.mxu0 %v1879
    %1962 = vmatpush.msra.mxu0 %v1877
    %1963 = vmatpush.msra.mxu0 %v1875
    %1964 = vmatpush.msra.mxu0 %v1873
    %1965 = vmatpush.msra.mxu0 %v1871
    %1966 = vmatpush.msra.mxu0 %v1869
    %1967 = vmatpush.msra.mxu0 %v1867
    %1968 = vmatpush.msra.mxu0 %v1865
    %1969 = vmatmul.f32.gmra.mxu0 %v1880
    %v1970 = vpop.f32.mrf.mxu0
    %v1971 = vadd.f32 %v1948, %v1970
    %1972 = vmatmul.f32.gmra.mxu0 %v1882
    %v1973 = vpop.f32.mrf.mxu0
    %v1974 = vadd.f32 %v1951, %v1973
    %1975 = vdwg.mxu0
    %v1976 = vadd.f32 %v1766, %v1925
    %v1977 = vadd.f32 %v1812, %v1971
    %v1978 = vadd.f32 %v1769, %v1928
    %v1979 = vadd.f32 %v1815, %v1974
    %v1980 = vrot.slane %v1498, 3
    %v1981 = vrot.slane %v1502, 3
    %v1982 = vsel %vm429, %v1980, %v1981
    %v1983 = vrot.slane %v1499, 3
    %v1984 = vrot.slane %v1503, 3
    %v1985 = vsel %vm429, %v1983, %v1984
    %v1986 = vrot.slane %v1500, 3
    %v1987 = vrot.slane %v1504, 3
    %v1988 = vsel %vm429, %v1986, %v1987
    %v1989 = vrot.slane %v1501, 3
    %v1990 = vrot.slane %v1505, 3
    %v1991 = vsel %vm429, %v1989, %v1990
    %s1994 = scalar_lea.vmem [#allocation7], 1152
    %v1995 = vld [vmem:[%s1994] sm:$0xff]
    %v1996 = vld [vmem:[%s1994 + $0x8] sm:$0xff]
    %v1997 = vld [vmem:[%s1994 + $0x10] sm:$0xff]
    %v1998 = vld [vmem:[%s1994 + $0x18] sm:$0xff]
    %v1999 = vld [vmem:[%s1994 + $0x20] sm:$0xff]
    %v2000 = vld [vmem:[%s1994 + $0x28] sm:$0xff]
    %v2001 = vld [vmem:[%s1994 + $0x30] sm:$0xff]
    %v2002 = vld [vmem:[%s1994 + $0x38] sm:$0xff]
    %v2003 = vld [vmem:[%s1994 + $0x40] sm:$0xff]
    %v2004 = vld [vmem:[%s1994 + $0x48] sm:$0xff]
    %v2005 = vld [vmem:[%s1994 + $0x50] sm:$0xff]
    %v2006 = vld [vmem:[%s1994 + $0x58] sm:$0xff]
    %v2007 = vld [vmem:[%s1994 + $0x60] sm:$0xff]
    %v2008 = vld [vmem:[%s1994 + $0x68] sm:$0xff]
    %v2009 = vld [vmem:[%s1994 + $0x70] sm:$0xff]
    %v2010 = vld [vmem:[%s1994 + $0x78] sm:$0xff]
    %v2011 = vld [vmem:[%s1994 + $0x80] sm:$0xff]
    %v2012 = vld [vmem:[%s1994 + $0x88] sm:$0xff]
    %v2013 = vld [vmem:[%s1994 + $0x90] sm:$0xff]
    %v2014 = vld [vmem:[%s1994 + $0x98] sm:$0xff]
    %v2015 = vld [vmem:[%s1994 + $0xa0] sm:$0xff]
    %v2016 = vld [vmem:[%s1994 + $0xa8] sm:$0xff]
    %v2017 = vld [vmem:[%s1994 + $0xb0] sm:$0xff]
    %v2018 = vld [vmem:[%s1994 + $0xb8] sm:$0xff]
    %v2019 = vld [vmem:[%s1994 + $0xc0] sm:$0xff]
    %v2020 = vld [vmem:[%s1994 + $0xc8] sm:$0xff]
    %v2021 = vld [vmem:[%s1994 + $0xd0] sm:$0xff]
    %v2022 = vld [vmem:[%s1994 + $0xd8] sm:$0xff]
    %v2023 = vld [vmem:[%s1994 + $0xe0] sm:$0xff]
    %v2024 = vld [vmem:[%s1994 + $0xe8] sm:$0xff]
    %v2025 = vld [vmem:[%s1994 + $0xf0] sm:$0xff]
    %v2026 = vld [vmem:[%s1994 + $0xf8] sm:$0xff]
    %v2027 = vld [vmem:[%s1994 + $0x100] sm:$0xff]
    %v2028 = vld [vmem:[%s1994 + $0x108] sm:$0xff]
    %v2029 = vld [vmem:[%s1994 + $0x110] sm:$0xff]
    %v2030 = vld [vmem:[%s1994 + $0x118] sm:$0xff]
    %v2031 = vld [vmem:[%s1994 + $0x120] sm:$0xff]
    %v2032 = vld [vmem:[%s1994 + $0x128] sm:$0xff]
    %v2033 = vld [vmem:[%s1994 + $0x130] sm:$0xff]
    %v2034 = vld [vmem:[%s1994 + $0x138] sm:$0xff]
    %v2035 = vld [vmem:[%s1994 + $0x140] sm:$0xff]
    %v2036 = vld [vmem:[%s1994 + $0x148] sm:$0xff]
    %v2037 = vld [vmem:[%s1994 + $0x150] sm:$0xff]
    %v2038 = vld [vmem:[%s1994 + $0x158] sm:$0xff]
    %v2039 = vld [vmem:[%s1994 + $0x160] sm:$0xff]
    %v2040 = vld [vmem:[%s1994 + $0x168] sm:$0xff]
    %v2041 = vld [vmem:[%s1994 + $0x170] sm:$0xff]
    %v2042 = vld [vmem:[%s1994 + $0x178] sm:$0xff]
    %v2043 = vsel %vm1267, %v1985, 0
    %v2045 = vsel %vm1267, %v1991, 0
    %2047 = vmatpush.msra.mxu0 %v2025
    %2048 = vmatpush.msra.mxu0 %v2023
    %2049 = vmatpush.msra.mxu0 %v2021
    %2050 = vmatpush.msra.mxu0 %v2019
    %2051 = vmatpush.msra.mxu0 %v2017
    %2052 = vmatpush.msra.mxu0 %v2015
    %2053 = vmatpush.msra.mxu0 %v2013
    %2054 = vmatpush.msra.mxu0 %v2011
    %2055 = vmatpush.msra.mxu0 %v2009
    %2056 = vmatpush.msra.mxu0 %v2007
    %2057 = vmatpush.msra.mxu0 %v2005
    %2058 = vmatpush.msra.mxu0 %v2003
    %2059 = vmatpush.msra.mxu0 %v2001
    %2060 = vmatpush.msra.mxu0 %v1999
    %2061 = vmatpush.msra.mxu0 %v1997
    %2062 = vmatpush.msra.mxu0 %v1995
    %2063 = vmatmul.f32.gmra.mxu0 %v1982
    %v2064 = vpop.f32.mrf.mxu0
    %v2065 = vadd.f32 0.0, %v2064
    %2066 = vmatmul.f32.gmra.mxu0 %v1988
    %v2067 = vpop.f32.mrf.mxu0
    %v2068 = vadd.f32 0.0, %v2067
    %2069 = vdwg.mxu0
    %2070 = vmatpush.msra.mxu0 0.0
    %2071 = vmatpush.msra.mxu0 0.0
    %2072 = vmatpush.msra.mxu0 0.0
    %2073 = vmatpush.msra.mxu0 0.0
    %2074 = vmatpush.msra.mxu0 0.0
    %2075 = vmatpush.msra.mxu0 0.0
    %2076 = vmatpush.msra.mxu0 0.0
    %2077 = vmatpush.msra.mxu0 0.0
    %2078 = vmatpush.msra.mxu0 %v2041
    %2079 = vmatpush.msra.mxu0 %v2039
    %2080 = vmatpush.msra.mxu0 %v2037
    %2081 = vmatpush.msra.mxu0 %v2035
    %2082 = vmatpush.msra.mxu0 %v2033
    %2083 = vmatpush.msra.mxu0 %v2031
    %2084 = vmatpush.msra.mxu0 %v2029
    %2085 = vmatpush.msra.mxu0 %v2027
    %2086 = vmatmul.f32.gmra.mxu0 %v2043
    %v2087 = vpop.f32.mrf.mxu0
    %v2088 = vadd.f32 %v2065, %v2087
    %2089 = vmatmul.f32.gmra.mxu0 %v2045
    %v2090 = vpop.f32.mrf.mxu0
    %v2091 = vadd.f32 %v2068, %v2090
    %2092 = vdwg.mxu0
    %2093 = vmatpush.msra.mxu0 %v2026
    %2094 = vmatpush.msra.mxu0 %v2024
    %2095 = vmatpush.msra.mxu0 %v2022
    %2096 = vmatpush.msra.mxu0 %v2020
    %2097 = vmatpush.msra.mxu0 %v2018
    %2098 = vmatpush.msra.mxu0 %v2016
    %2099 = vmatpush.msra.mxu0 %v2014
    %2100 = vmatpush.msra.mxu0 %v2012
    %2101 = vmatpush.msra.mxu0 %v2010
    %2102 = vmatpush.msra.mxu0 %v2008
    %2103 = vmatpush.msra.mxu0 %v2006
    %2104 = vmatpush.msra.mxu0 %v2004
    %2105 = vmatpush.msra.mxu0 %v2002
    %2106 = vmatpush.msra.mxu0 %v2000
    %2107 = vmatpush.msra.mxu0 %v1998
    %2108 = vmatpush.msra.mxu0 %v1996
    %2109 = vmatmul.f32.gmra.mxu0 %v1982
    %v2110 = vpop.f32.mrf.mxu0
    %v2111 = vadd.f32 0.0, %v2110
    %2112 = vmatmul.f32.gmra.mxu0 %v1988
    %v2113 = vpop.f32.mrf.mxu0
    %v2114 = vadd.f32 0.0, %v2113
    %2115 = vdwg.mxu0
    %2116 = vmatpush.msra.mxu0 0.0
    %2117 = vmatpush.msra.mxu0 0.0
    %2118 = vmatpush.msra.mxu0 0.0
    %2119 = vmatpush.msra.mxu0 0.0
    %2120 = vmatpush.msra.mxu0 0.0
    %2121 = vmatpush.msra.mxu0 0.0
    %2122 = vmatpush.msra.mxu0 0.0
    %2123 = vmatpush.msra.mxu0 0.0
    %2124 = vmatpush.msra.mxu0 %v2042
    %2125 = vmatpush.msra.mxu0 %v2040
    %2126 = vmatpush.msra.mxu0 %v2038
    %2127 = vmatpush.msra.mxu0 %v2036
    %2128 = vmatpush.msra.mxu0 %v2034
    %2129 = vmatpush.msra.mxu0 %v2032
    %2130 = vmatpush.msra.mxu0 %v2030
    %2131 = vmatpush.msra.mxu0 %v2028
    %2132 = vmatmul.f32.gmra.mxu0 %v2043
    %v2133 = vpop.f32.mrf.mxu0
    %v2134 = vadd.f32 %v2111, %v2133
    %2135 = vmatmul.f32.gmra.mxu0 %v2045
    %v2136 = vpop.f32.mrf.mxu0
    %v2137 = vadd.f32 %v2114, %v2136
    %2138 = vdwg.mxu0
    %v2139 = vadd.f32 %v1976, %v2088
    %v2140 = vadd.f32 %v1977, %v2134
    %v2141 = vadd.f32 %v1978, %v2091
    %v2142 = vadd.f32 %v1979, %v2137
    %v2143 = vrot.slane %v1498, 4
    %v2144 = vrot.slane %v1502, 4
    %v2145 = vsel %vm194, %v2143, %v2144
    %v2146 = vrot.slane %v1499, 4
    %v2147 = vrot.slane %v1503, 4
    %v2148 = vsel %vm194, %v2146, %v2147
    %v2149 = vrot.slane %v1500, 4
    %v2150 = vrot.slane %v1504, 4
    %v2151 = vsel %vm194, %v2149, %v2150
    %v2152 = vrot.slane %v1501, 4
    %v2153 = vrot.slane %v1505, 4
    %v2154 = vsel %vm194, %v2152, %v2153
    %s2157 = scalar_lea.vmem [#allocation7], 1536
    %v2158 = vld [vmem:[%s2157] sm:$0xff]
    %v2159 = vld [vmem:[%s2157 + $0x8] sm:$0xff]
    %v2160 = vld [vmem:[%s2157 + $0x10] sm:$0xff]
    %v2161 = vld [vmem:[%s2157 + $0x18] sm:$0xff]
    %v2162 = vld [vmem:[%s2157 + $0x20] sm:$0xff]
    %v2163 = vld [vmem:[%s2157 + $0x28] sm:$0xff]
    %v2164 = vld [vmem:[%s2157 + $0x30] sm:$0xff]
    %v2165 = vld [vmem:[%s2157 + $0x38] sm:$0xff]
    %v2166 = vld [vmem:[%s2157 + $0x40] sm:$0xff]
    %v2167 = vld [vmem:[%s2157 + $0x48] sm:$0xff]
    %v2168 = vld [vmem:[%s2157 + $0x50] sm:$0xff]
    %v2169 = vld [vmem:[%s2157 + $0x58] sm:$0xff]
    %v2170 = vld [vmem:[%s2157 + $0x60] sm:$0xff]
    %v2171 = vld [vmem:[%s2157 + $0x68] sm:$0xff]
    %v2172 = vld [vmem:[%s2157 + $0x70] sm:$0xff]
    %v2173 = vld [vmem:[%s2157 + $0x78] sm:$0xff]
    %v2174 = vld [vmem:[%s2157 + $0x80] sm:$0xff]
    %v2175 = vld [vmem:[%s2157 + $0x88] sm:$0xff]
    %v2176 = vld [vmem:[%s2157 + $0x90] sm:$0xff]
    %v2177 = vld [vmem:[%s2157 + $0x98] sm:$0xff]
    %v2178 = vld [vmem:[%s2157 + $0xa0] sm:$0xff]
    %v2179 = vld [vmem:[%s2157 + $0xa8] sm:$0xff]
    %v2180 = vld [vmem:[%s2157 + $0xb0] sm:$0xff]
    %v2181 = vld [vmem:[%s2157 + $0xb8] sm:$0xff]
    %v2182 = vld [vmem:[%s2157 + $0xc0] sm:$0xff]
    %v2183 = vld [vmem:[%s2157 + $0xc8] sm:$0xff]
    %v2184 = vld [vmem:[%s2157 + $0xd0] sm:$0xff]
    %v2185 = vld [vmem:[%s2157 + $0xd8] sm:$0xff]
    %v2186 = vld [vmem:[%s2157 + $0xe0] sm:$0xff]
    %v2187 = vld [vmem:[%s2157 + $0xe8] sm:$0xff]
    %v2188 = vld [vmem:[%s2157 + $0xf0] sm:$0xff]
    %v2189 = vld [vmem:[%s2157 + $0xf8] sm:$0xff]
    %v2190 = vld [vmem:[%s2157 + $0x100] sm:$0xff]
    %v2191 = vld [vmem:[%s2157 + $0x108] sm:$0xff]
    %v2192 = vld [vmem:[%s2157 + $0x110] sm:$0xff]
    %v2193 = vld [vmem:[%s2157 + $0x118] sm:$0xff]
    %v2194 = vld [vmem:[%s2157 + $0x120] sm:$0xff]
    %v2195 = vld [vmem:[%s2157 + $0x128] sm:$0xff]
    %v2196 = vld [vmem:[%s2157 + $0x130] sm:$0xff]
    %v2197 = vld [vmem:[%s2157 + $0x138] sm:$0xff]
    %v2198 = vld [vmem:[%s2157 + $0x140] sm:$0xff]
    %v2199 = vld [vmem:[%s2157 + $0x148] sm:$0xff]
    %v2200 = vld [vmem:[%s2157 + $0x150] sm:$0xff]
    %v2201 = vld [vmem:[%s2157 + $0x158] sm:$0xff]
    %v2202 = vld [vmem:[%s2157 + $0x160] sm:$0xff]
    %v2203 = vld [vmem:[%s2157 + $0x168] sm:$0xff]
    %v2204 = vld [vmem:[%s2157 + $0x170] sm:$0xff]
    %v2205 = vld [vmem:[%s2157 + $0x178] sm:$0xff]
    %v2206 = vsel %vm1267, %v2148, 0
    %v2208 = vsel %vm1267, %v2154, 0
    %2210 = vmatpush.msra.mxu0 %v2188
    %2211 = vmatpush.msra.mxu0 %v2186
    %2212 = vmatpush.msra.mxu0 %v2184
    %2213 = vmatpush.msra.mxu0 %v2182
    %2214 = vmatpush.msra.mxu0 %v2180
    %2215 = vmatpush.msra.mxu0 %v2178
    %2216 = vmatpush.msra.mxu0 %v2176
    %2217 = vmatpush.msra.mxu0 %v2174
    %2218 = vmatpush.msra.mxu0 %v2172
    %2219 = vmatpush.msra.mxu0 %v2170
    %2220 = vmatpush.msra.mxu0 %v2168
    %2221 = vmatpush.msra.mxu0 %v2166
    %2222 = vmatpush.msra.mxu0 %v2164
    %2223 = vmatpush.msra.mxu0 %v2162
    %2224 = vmatpush.msra.mxu0 %v2160
    %2225 = vmatpush.msra.mxu0 %v2158
    %2226 = vmatmul.f32.gmra.mxu0 %v2145
    %v2227 = vpop.f32.mrf.mxu0
    %v2228 = vadd.f32 0.0, %v2227
    %2229 = vmatmul.f32.gmra.mxu0 %v2151
    %v2230 = vpop.f32.mrf.mxu0
    %v2231 = vadd.f32 0.0, %v2230
    %2232 = vdwg.mxu0
    %2233 = vmatpush.msra.mxu0 0.0
    %2234 = vmatpush.msra.mxu0 0.0
    %2235 = vmatpush.msra.mxu0 0.0
    %2236 = vmatpush.msra.mxu0 0.0
    %2237 = vmatpush.msra.mxu0 0.0
    %2238 = vmatpush.msra.mxu0 0.0
    %2239 = vmatpush.msra.mxu0 0.0
    %2240 = vmatpush.msra.mxu0 0.0
    %2241 = vmatpush.msra.mxu0 %v2204
    %2242 = vmatpush.msra.mxu0 %v2202
    %2243 = vmatpush.msra.mxu0 %v2200
    %2244 = vmatpush.msra.mxu0 %v2198
    %2245 = vmatpush.msra.mxu0 %v2196
    %2246 = vmatpush.msra.mxu0 %v2194
    %2247 = vmatpush.msra.mxu0 %v2192
    %2248 = vmatpush.msra.mxu0 %v2190
    %2249 = vmatmul.f32.gmra.mxu0 %v2206
    %v2250 = vpop.f32.mrf.mxu0
    %v2251 = vadd.f32 %v2228, %v2250
    %2252 = vmatmul.f32.gmra.mxu0 %v2208
    %v2253 = vpop.f32.mrf.mxu0
    %v2254 = vadd.f32 %v2231, %v2253
    %2255 = vdwg.mxu0
    %2256 = vmatpush.msra.mxu0 %v2189
    %2257 = vmatpush.msra.mxu0 %v2187
    %2258 = vmatpush.msra.mxu0 %v2185
    %2259 = vmatpush.msra.mxu0 %v2183
    %2260 = vmatpush.msra.mxu0 %v2181
    %2261 = vmatpush.msra.mxu0 %v2179
    %2262 = vmatpush.msra.mxu0 %v2177
    %2263 = vmatpush.msra.mxu0 %v2175
    %2264 = vmatpush.msra.mxu0 %v2173
    %2265 = vmatpush.msra.mxu0 %v2171
    %2266 = vmatpush.msra.mxu0 %v2169
    %2267 = vmatpush.msra.mxu0 %v2167
    %2268 = vmatpush.msra.mxu0 %v2165
    %2269 = vmatpush.msra.mxu0 %v2163
    %2270 = vmatpush.msra.mxu0 %v2161
    %2271 = vmatpush.msra.mxu0 %v2159
    %2272 = vmatmul.f32.gmra.mxu0 %v2145
    %v2273 = vpop.f32.mrf.mxu0
    %v2274 = vadd.f32 0.0, %v2273
    %2275 = vmatmul.f32.gmra.mxu0 %v2151
    %v2276 = vpop.f32.mrf.mxu0
    %v2277 = vadd.f32 0.0, %v2276
    %2278 = vdwg.mxu0
    %2279 = vmatpush.msra.mxu0 0.0
    %2280 = vmatpush.msra.mxu0 0.0
    %2281 = vmatpush.msra.mxu0 0.0
    %2282 = vmatpush.msra.mxu0 0.0
    %2283 = vmatpush.msra.mxu0 0.0
    %2284 = vmatpush.msra.mxu0 0.0
    %2285 = vmatpush.msra.mxu0 0.0
    %2286 = vmatpush.msra.mxu0 0.0
    %2287 = vmatpush.msra.mxu0 %v2205
    %2288 = vmatpush.msra.mxu0 %v2203
    %2289 = vmatpush.msra.mxu0 %v2201
    %2290 = vmatpush.msra.mxu0 %v2199
    %2291 = vmatpush.msra.mxu0 %v2197
    %2292 = vmatpush.msra.mxu0 %v2195
    %2293 = vmatpush.msra.mxu0 %v2193
    %2294 = vmatpush.msra.mxu0 %v2191
    %2295 = vmatmul.f32.gmra.mxu0 %v2206
    %v2296 = vpop.f32.mrf.mxu0
    %v2297 = vadd.f32 %v2274, %v2296
    %2298 = vmatmul.f32.gmra.mxu0 %v2208
    %v2299 = vpop.f32.mrf.mxu0
    %v2300 = vadd.f32 %v2277, %v2299
    %2301 = vdwg.mxu0
    %v2302 = vadd.f32 %v2139, %v2251
    %v2303 = vadd.f32 %v2140, %v2297
    %v2304 = vadd.f32 %v2141, %v2254
    %v2305 = vadd.f32 %v2142, %v2300
    %v2306 = vld [vmem:[%s6] sm:$0x3]
    %v2308 = vperm.slane %v2306, 0
    %v2309 = vperm.slane %v2306, 1
    %v2312 = vadd.f32 %v2302, %v2308
    %v2313 = vadd.f32 %v2303, %v2309
    %v2314 = vadd.f32 %v2304, %v2308
    %v2315 = vadd.f32 %v2305, %v2309
    %v2316 = vmax.f32 %v2312, 0.0
    %v2317 = vmax.f32 %v2313, 0.0
    %v2318 = vmax.f32 %v2314, 0.0
    %v2319 = vmax.f32 %v2315, 0.0
    %v2324 = vrot.slane %v2317, 4
    %v2325 = vrot.slane %v2319, 4
    %v2326 = vsel %vm194, %v2316, %v2324
    %v2327 = vsel %vm194, %v2324, %v2316
    %v2328 = vrot.slane %v2327, 4
    %v2329 = vsel %vm194, %v2318, %v2325
    %v2330 = vsel %vm194, %v2325, %v2318
    %v2331 = vrot.slane %v2330, 4
    %v2337 = vunpack.c.l.s4 1966171168
    %v2338 = vunpack.c.0.s8 %v2337
    %v2339 = vperm.slane %v2326, %v2338
    %v2341 = vunpack.c.l.s4 1966171168
    %v2342 = vunpack.c.0.s8 %v2341
    %v2343 = vperm.slane %v2328, %v2342
    %v2345 = vunpack.c.l.s4 1966171168
    %v2346 = vunpack.c.0.s8 %v2345
    %v2347 = vperm.slane %v2329, %v2346
    %v2349 = vunpack.c.l.s4 1966171168
    %v2350 = vunpack.c.0.s8 %v2349
    %v2351 = vperm.slane %v2331, %v2350
    %v2356 = vrot.slane %v2339, 4
    %v2357 = vrot.slane %v2343, 4
    %v2358 = vrot.slane %v2347, 4
    %v2359 = vrot.slane %v2351, 4
    %v2364 = vmax.f32 %v2339, %v2356
    %v2365 = vmax.f32 %v2343, %v2357
    %v2366 = vmax.f32 %v2347, %v2358
    %v2367 = vmax.f32 %v2351, %v2359
    %2372 = vrot.lane.b32.xlu0 %v2364, 96
    %v2373 = vpop.permute.xlu0 %2372
    %2374 = vrot.lane.b32.xlu0 %v2365, 96
    %v2375 = vpop.permute.xlu0 %2374
    %2376 = vrot.lane.b32.xlu0 %v2366, 96
    %v2377 = vpop.permute.xlu0 %2376
    %2378 = vrot.lane.b32.xlu0 %v2367, 96
    %v2379 = vpop.permute.xlu0 %2378
    %v2384 = vmax.f32 %v2364, %v2373
    %v2385 = vmax.f32 %v2365, %v2375
    %v2386 = vmax.f32 %v2366, %v2377
    %v2387 = vmax.f32 %v2367, %v2379
    %v2388 = vrot.slane %v2364, 2
    %v2389 = vrot.slane %v2365, 2
    %v2390 = vrot.slane %v2366, 2
    %v2391 = vrot.slane %v2367, 2
    %v2396 = vrot.slane %v2373, 2
    %v2397 = vrot.slane %v2375, 2
    %v2398 = vrot.slane %v2377, 2
    %v2399 = vrot.slane %v2379, 2
    %v2404 = vmax.f32 %v2388, %v2396
    %v2405 = vmax.f32 %v2389, %v2397
    %v2406 = vmax.f32 %v2390, %v2398
    %v2407 = vmax.f32 %v2391, %v2399
    %2408 = vrot.lane.b32.xlu0 %v2364, 64
    %v2409 = vpop.permute.xlu0 %2408
    %2410 = vrot.lane.b32.xlu0 %v2365, 64
    %v2411 = vpop.permute.xlu0 %2410
    %2412 = vrot.lane.b32.xlu0 %v2366, 64
    %v2413 = vpop.permute.xlu0 %2412
    %2414 = vrot.lane.b32.xlu0 %v2367, 64
    %v2415 = vpop.permute.xlu0 %2414
    %v2416 = vrot.slane %v2409, 2
    %v2417 = vrot.slane %v2411, 2
    %v2418 = vrot.slane %v2413, 2
    %v2419 = vrot.slane %v2415, 2
    %2424 = vrot.lane.b32.xlu0 %v2364, 32
    %v2425 = vpop.permute.xlu0 %2424
    %2426 = vrot.lane.b32.xlu0 %v2365, 32
    %v2427 = vpop.permute.xlu0 %2426
    %2428 = vrot.lane.b32.xlu0 %v2366, 32
    %v2429 = vpop.permute.xlu0 %2428
    %2430 = vrot.lane.b32.xlu0 %v2367, 32
    %v2431 = vpop.permute.xlu0 %2430
    %v2432 = vrot.slane %v2425, 2
    %v2433 = vrot.slane %v2427, 2
    %v2434 = vrot.slane %v2429, 2
    %v2435 = vrot.slane %v2431, 2
    %v2440 = vmax.f32 %v2416, %v2432
    %v2441 = vmax.f32 %v2417, %v2433
    %v2442 = vmax.f32 %v2418, %v2434
    %v2443 = vmax.f32 %v2419, %v2435
    %2448 = vst [vmem:[#allocation1] ss:$4 sm:$0xff] %v2384
    %s2449 = scalar_lea.vmem [#allocation1], 1
    %2450 = vst [vmem:[%s2449] ss:$4 sm:$0xff] %v2385
    %s2451 = scalar_lea.vmem [#allocation1], 2
    %2452 = vst [vmem:[%s2451] ss:$4 sm:$0xff] %v2386
    %s2453 = scalar_lea.vmem [#allocation1], 3
    %2454 = vst [vmem:[%s2453] ss:$4 sm:$0xff] %v2387
    %v2455 = vld.sshfl [vmem:[#allocation1] sm:$0xff pattern:$0x73625140]
    %2457 = vst [vmem:[#allocation1] ss:$4 sm:$0xff] %v2384
    %s2458 = scalar_lea.vmem [#allocation1], 1
    %2459 = vst [vmem:[%s2458] ss:$4 sm:$0xff] %v2385
    %s2460 = scalar_lea.vmem [#allocation1], 2
    %2461 = vst [vmem:[%s2460] ss:$4 sm:$0xff] %v2386
    %s2462 = scalar_lea.vmem [#allocation1], 3
    %2463 = vst [vmem:[%s2462] ss:$4 sm:$0xff] %v2387
    %v2464 = vld.sshfl [vmem:[#allocation1] sm:$0xff pattern:$0x73625140]
    %2465 = vrot.lane.b32.xlu0 %v2464, 96
    %v2466 = vpop.permute.xlu0 %2465
    %2472 = vst [vmem:[#allocation1] ss:$4 sm:$0xff] %v2404
    %s2473 = scalar_lea.vmem [#allocation1], 1
    %2474 = vst [vmem:[%s2473] ss:$4 sm:$0xff] %v2405
    %s2475 = scalar_lea.vmem [#allocation1], 2
    %2476 = vst [vmem:[%s2475] ss:$4 sm:$0xff] %v2406
    %s2477 = scalar_lea.vmem [#allocation1], 3
    %2478 = vst [vmem:[%s2477] ss:$4 sm:$0xff] %v2407
    %v2479 = vld.sshfl [vmem:[#allocation1] sm:$0xff pattern:$0x73625140]
    %2480 = vrot.lane.b32.xlu0 %v2479, 64
    %v2481 = vpop.permute.xlu0 %2480
    %2487 = vst [vmem:[#allocation1] ss:$4 sm:$0xff] %v2440
    %s2488 = scalar_lea.vmem [#allocation1], 1
    %2489 = vst [vmem:[%s2488] ss:$4 sm:$0xff] %v2441
    %s2490 = scalar_lea.vmem [#allocation1], 2
    %2491 = vst [vmem:[%s2490] ss:$4 sm:$0xff] %v2442
    %s2492 = scalar_lea.vmem [#allocation1], 3
    %2493 = vst [vmem:[%s2492] ss:$4 sm:$0xff] %v2443
    %v2494 = vld.sshfl [vmem:[#allocation1] sm:$0xff pattern:$0x73625140]
    %2495 = vrot.lane.b32.xlu0 %v2494, 96
    %v2496 = vpop.permute.xlu0 %2495
    %v2498 = vsel %vm1261, %v2455, %v2466
    %v2499 = vsel %vm1267, %v2498, %v2481
    %v2500 = vsel %vm1273, %v2499, %v2496
    %v2501 = vld [vmem:[%s7] sm:$0x1]
    %v2502 = vld [vmem:[%s8] sm:$0x1]
    %v2503 = vrot.slane %v2500, 4
    %v2504 = vadd.f32 %v2500, %v2503
    %v2505 = vrot.slane %v2504, 2
    %v2506 = vadd.f32 %v2504, %v2505
    %v2507 = vrot.slane %v2506, 1
    %v2508 = vadd.f32 %v2506, %v2507
    %2510 = vrot.lane.b32.xlu0 %v2508, 96
    %v2511 = vpop.permute.xlu0 %2510
    %v2513 = vadd.f32 %v2508, %v2511
    %2514 = vrot.lane.b32.xlu0 %v2508, 64
    %v2515 = vpop.permute.xlu0 %2514
    %v2517 = vadd.f32 %v2513, %v2515
    %2518 = vrot.lane.b32.xlu0 %v2508, 32
    %v2519 = vpop.permute.xlu0 %2518
    %v2521 = vadd.f32 %v2517, %v2519
    %v2522 = vrcp.pop 32.0
    %v2523 = vmul.f32 32.0, %v2522
    %v2524 = vsub.f32 1.0, %v2523
    %v2525 = vmul.f32 %v2522, %v2524
    %v2526 = vadd.f32 %v2522, %v2525
    %vm2527 = vweird.f32 %v2522
    %v2528 = vsel %vm2527, %v2522, %v2526
    %v2529 = vmul.f32 %v2521, %v2528
    %2531 = vrot.lane.b32.xlu0 %v2529, 32
    %v2532 = vpop.permute.xlu0 %2531
    %2534 = vrot.lane.b32.xlu0 %v2529, 64
    %v2535 = vpop.permute.xlu0 %2534
    %2537 = vrot.lane.b32.xlu0 %v2529, 96
    %v2538 = vpop.permute.xlu0 %2537
    %v2540 = vsel %vm1261, %v2529, %v2532
    %v2541 = vsel %vm1267, %v2540, %v2535
    %v2542 = vsel %vm1273, %v2541, %v2538
    %v2543 = vperm.slane %v2542, 0
    %v2544 = vsub.f32 %v2500, %v2543
    %v2545 = vmul.f32 %v2544, %v2544
    %v2546 = vrot.slane %v2545, 4
    %v2547 = vadd.f32 %v2545, %v2546
    %v2548 = vrot.slane %v2547, 2
    %v2549 = vadd.f32 %v2547, %v2548
    %v2550 = vrot.slane %v2549, 1
    %v2551 = vadd.f32 %v2549, %v2550
    %2553 = vrot.lane.b32.xlu0 %v2551, 96
    %v2554 = vpop.permute.xlu0 %2553
    %v2556 = vadd.f32 %v2551, %v2554
    %2557 = vrot.lane.b32.xlu0 %v2551, 64
    %v2558 = vpop.permute.xlu0 %2557
    %v2560 = vadd.f32 %v2556, %v2558
    %2561 = vrot.lane.b32.xlu0 %v2551, 32
    %v2562 = vpop.permute.xlu0 %2561
    %v2564 = vadd.f32 %v2560, %v2562
    %v2565 = vmul.f32 %v2564, %v2528
    %v2566 = vadd.f32 %v2565, 1e-05
    %v2567 = vrsqrt.pop %v2566
    %v2568 = vmul.f32 %v2567, %v2566
    %v2569 = vmul.f32 %v2568, %v2567
    %v2570 = vmul.f32 0.5, %v2569
    %v2571 = vsub.f32 1.5, %v2570
    %v2572 = vmul.f32 %v2567, %v2571
    %vm2573 = vweird.f32 %v2566
    %vm2574 = vweird.f32 %v2567
    %vm2575 = vmor %vm2573, %vm2574
    %v2576 = vsel %vm2575, %v2567, %v2572
    %v2577 = vmul.f32 %v2501, %v2576
    %v2579 = vperm.slane %v2577, 0
    %2580 = vrot.lane.b32.xlu0 %v2579, 32
    %v2581 = vpop.permute.xlu0 %2580
    %2583 = vrot.lane.b32.xlu0 %v2579, 64
    %v2584 = vpop.permute.xlu0 %2583
    %2586 = vrot.lane.b32.xlu0 %v2579, 96
    %v2587 = vpop.permute.xlu0 %2586
    %v2589 = vsel %vm1261, %v2577, %v2581
    %v2590 = vsel %vm1267, %v2589, %v2584
    %v2591 = vsel %vm1273, %v2590, %v2587
    %v2592 = vperm.slane %v2591, 0
    %v2593 = vmul.f32 %v2544, %v2592
    %v2595 = vperm.slane %v2502, 0
    %2596 = vrot.lane.b32.xlu0 %v2595, 32
    %v2597 = vpop.permute.xlu0 %2596
    %2599 = vrot.lane.b32.xlu0 %v2595, 64
    %v2600 = vpop.permute.xlu0 %2599
    %2602 = vrot.lane.b32.xlu0 %v2595, 96
    %v2603 = vpop.permute.xlu0 %2602
    %v2605 = vsel %vm1261, %v2502, %v2597
    %v2606 = vsel %vm1267, %v2605, %v2600
    %v2607 = vsel %vm1273, %v2606, %v2603
    %v2608 = vperm.slane %v2607, 0
    %v2609 = vadd.f32 %v2593, %v2608
    %v2611 = vunpack.c.l.s4 1935823168
    %v2612 = vunpack.c.0.s8 %v2611
    %v2613 = vperm.slane %v2609, %v2612
    %v2614 = vld [vmem:[#allocation8] sm:$0xff]
    %v2615 = vld [vmem:[#allocation8 + $0x8] sm:$0xff]
    %v2616 = vld [vmem:[#allocation8 + $0x10] sm:$0xff]
    %v2617 = vld [vmem:[#allocation8 + $0x18] sm:$0xff]
    %v2618 = vld [vmem:[#allocation8 + $0x20] sm:$0xff]
    %v2619 = vld [vmem:[#allocation8 + $0x28] sm:$0xff]
    %v2620 = vld [vmem:[#allocation8 + $0x30] sm:$0xff]
    %v2621 = vld [vmem:[#allocation8 + $0x38] sm:$0xff]
    %v2622 = vld [vmem:[#allocation8 + $0x40] sm:$0xff]
    %v2623 = vld [vmem:[#allocation8 + $0x48] sm:$0xff]
    %v2624 = vld [vmem:[#allocation8 + $0x50] sm:$0xff]
    %v2625 = vld [vmem:[#allocation8 + $0x58] sm:$0xff]
    %v2626 = vld [vmem:[#allocation8 + $0x60] sm:$0xff]
    %v2627 = vld [vmem:[#allocation8 + $0x68] sm:$0xff]
    %v2628 = vld [vmem:[#allocation8 + $0x70] sm:$0xff]
    %v2629 = vld [vmem:[#allocation8 + $0x78] sm:$0xff]
    %v2630 = vld [vmem:[#allocation8 + $0x80] sm:$0xff]
    %v2631 = vld [vmem:[#allocation8 + $0x88] sm:$0xff]
    %v2632 = vld [vmem:[#allocation8 + $0x90] sm:$0xff]
    %v2633 = vld [vmem:[#allocation8 + $0x98] sm:$0xff]
    %v2634 = vld [vmem:[#allocation8 + $0xa0] sm:$0xff]
    %v2635 = vld [vmem:[#allocation8 + $0xa8] sm:$0xff]
    %v2636 = vld [vmem:[#allocation8 + $0xb0] sm:$0xff]
    %v2637 = vld [vmem:[#allocation8 + $0xb8] sm:$0xff]
    %v2638 = vld [vmem:[#allocation8 + $0xc0] sm:$0xff]
    %v2639 = vld [vmem:[#allocation8 + $0xc8] sm:$0xff]
    %v2640 = vld [vmem:[#allocation8 + $0xd0] sm:$0xff]
    %v2641 = vld [vmem:[#allocation8 + $0xd8] sm:$0xff]
    %v2642 = vld [vmem:[#allocation8 + $0xe0] sm:$0xff]
    %v2643 = vld [vmem:[#allocation8 + $0xe8] sm:$0xff]
    %v2644 = vld [vmem:[#allocation8 + $0xf0] sm:$0xff]
    %v2645 = vld [vmem:[#allocation8 + $0xf8] sm:$0xff]
    %v2646 = vld [vmem:[#allocation8 + $0x100] sm:$0xff]
    %v2647 = vld [vmem:[#allocation8 + $0x108] sm:$0xff]
    %v2648 = vld [vmem:[#allocation8 + $0x110] sm:$0xff]
    %v2649 = vld [vmem:[#allocation8 + $0x118] sm:$0xff]
    %v2650 = vld [vmem:[#allocation8 + $0x120] sm:$0xff]
    %v2651 = vld [vmem:[#allocation8 + $0x128] sm:$0xff]
    %v2652 = vld [vmem:[#allocation8 + $0x130] sm:$0xff]
    %v2653 = vld [vmem:[#allocation8 + $0x138] sm:$0xff]
    %v2654 = vld [vmem:[#allocation8 + $0x140] sm:$0xff]
    %v2655 = vld [vmem:[#allocation8 + $0x148] sm:$0xff]
    %v2656 = vld [vmem:[#allocation8 + $0x150] sm:$0xff]
    %v2657 = vld [vmem:[#allocation8 + $0x158] sm:$0xff]
    %v2658 = vld [vmem:[#allocation8 + $0x160] sm:$0xff]
    %v2659 = vld [vmem:[#allocation8 + $0x168] sm:$0xff]
    %v2660 = vld [vmem:[#allocation8 + $0x170] sm:$0xff]
    %v2661 = vld [vmem:[#allocation8 + $0x178] sm:$0xff]
    %v2662 = vld [vmem:[#allocation8 + $0x180] sm:$0xff]
    %v2663 = vld [vmem:[#allocation8 + $0x188] sm:$0xff]
    %v2664 = vld [vmem:[#allocation8 + $0x190] sm:$0xff]
    %v2665 = vld [vmem:[#allocation8 + $0x198] sm:$0xff]
    %v2666 = vld [vmem:[#allocation8 + $0x1a0] sm:$0xff]
    %v2667 = vld [vmem:[#allocation8 + $0x1a8] sm:$0xff]
    %v2668 = vld [vmem:[#allocation8 + $0x1b0] sm:$0xff]
    %v2669 = vld [vmem:[#allocation8 + $0x1b8] sm:$0xff]
    %v2670 = vld [vmem:[#allocation8 + $0x1c0] sm:$0xff]
    %v2671 = vld [vmem:[#allocation8 + $0x1c8] sm:$0xff]
    %v2672 = vld [vmem:[#allocation8 + $0x1d0] sm:$0xff]
    %v2673 = vld [vmem:[#allocation8 + $0x1d8] sm:$0xff]
    %v2674 = vld [vmem:[#allocation8 + $0x1e0] sm:$0xff]
    %v2675 = vld [vmem:[#allocation8 + $0x1e8] sm:$0xff]
    %v2676 = vld [vmem:[#allocation8 + $0x1f0] sm:$0xff]
    %v2677 = vld [vmem:[#allocation8 + $0x1f8] sm:$0xff]
    %v2678 = vld [vmem:[%s10] sm:$0x1]
    %v2680 = vperm.slane %v2678, 0
    %2683 = vst [vmem:[#allocation1] ss:$4 sm:$0xff] %v2613
    %v2684 = vld.sshfl [vmem:[#allocation1] sm:$0xff pattern:$0x73625140]
    %v2685 = vld.sshfl [vmem:[#allocation1 + $0x8] sm:$0xff pattern:$0x73625140]
    %v2686 = vld.sshfl [vmem:[#allocation1 + $0x10] sm:$0xff pattern:$0x73625140]
    %v2687 = vld.sshfl [vmem:[#allocation1 + $0x18] sm:$0xff pattern:$0x73625140]
    %2692 = vmatpush.msra.mxu0 %v2629
    %2693 = vmatpush.msra.mxu0 %v2628
    %2694 = vmatpush.msra.mxu0 %v2627
    %2695 = vmatpush.msra.mxu0 %v2626
    %2696 = vmatpush.msra.mxu0 %v2625
    %2697 = vmatpush.msra.mxu0 %v2624
    %2698 = vmatpush.msra.mxu0 %v2623
    %2699 = vmatpush.msra.mxu0 %v2622
    %2700 = vmatpush.msra.mxu0 %v2621
    %2701 = vmatpush.msra.mxu0 %v2620
    %2702 = vmatpush.msra.mxu0 %v2619
    %2703 = vmatpush.msra.mxu0 %v2618
    %2704 = vmatpush.msra.mxu0 %v2617
    %2705 = vmatpush.msra.mxu0 %v2616
    %2706 = vmatpush.msra.mxu0 %v2615
    %2707 = vmatpush.msra.mxu0 %v2614
    %2708 = vmatmul.f32.gmra.mxu0 %v2684
    %v2709 = vpop.f32.mrf.mxu0
    %v2710 = vadd.f32 %v2680, %v2709
    %2711 = vdwg.mxu0
    %2712 = vmatpush.msra.mxu0 %v2645
    %2713 = vmatpush.msra.mxu0 %v2644
    %2714 = vmatpush.msra.mxu0 %v2643
    %2715 = vmatpush.msra.mxu0 %v2642
    %2716 = vmatpush.msra.mxu0 %v2641
    %2717 = vmatpush.msra.mxu0 %v2640
    %2718 = vmatpush.msra.mxu0 %v2639
    %2719 = vmatpush.msra.mxu0 %v2638
    %2720 = vmatpush.msra.mxu0 %v2637
    %2721 = vmatpush.msra.mxu0 %v2636
    %2722 = vmatpush.msra.mxu0 %v2635
    %2723 = vmatpush.msra.mxu0 %v2634
    %2724 = vmatpush.msra.mxu0 %v2633
    %2725 = vmatpush.msra.mxu0 %v2632
    %2726 = vmatpush.msra.mxu0 %v2631
    %2727 = vmatpush.msra.mxu0 %v2630
    %2728 = vmatmul.f32.gmra.mxu0 %v2685
    %v2729 = vpop.f32.mrf.mxu0
    %v2730 = vadd.f32 %v2710, %v2729
    %2731 = vdwg.mxu0
    %2732 = vmatpush.msra.mxu0 %v2661
    %2733 = vmatpush.msra.mxu0 %v2660
    %2734 = vmatpush.msra.mxu0 %v2659
    %2735 = vmatpush.msra.mxu0 %v2658
    %2736 = vmatpush.msra.mxu0 %v2657
    %2737 = vmatpush.msra.mxu0 %v2656
    %2738 = vmatpush.msra.mxu0 %v2655
    %2739 = vmatpush.msra.mxu0 %v2654
    %2740 = vmatpush.msra.mxu0 %v2653
    %2741 = vmatpush.msra.mxu0 %v2652
    %2742 = vmatpush.msra.mxu0 %v2651
    %2743 = vmatpush.msra.mxu0 %v2650
    %2744 = vmatpush.msra.mxu0 %v2649
    %2745 = vmatpush.msra.mxu0 %v2648
    %2746 = vmatpush.msra.mxu0 %v2647
    %2747 = vmatpush.msra.mxu0 %v2646
    %2748 = vmatmul.f32.gmra.mxu0 %v2686
    %v2749 = vpop.f32.mrf.mxu0
    %v2750 = vadd.f32 %v2730, %v2749
    %2751 = vdwg.mxu0
    %2752 = vmatpush.msra.mxu0 %v2677
    %2753 = vmatpush.msra.mxu0 %v2676
    %2754 = vmatpush.msra.mxu0 %v2675
    %2755 = vmatpush.msra.mxu0 %v2674
    %2756 = vmatpush.msra.mxu0 %v2673
    %2757 = vmatpush.msra.mxu0 %v2672
    %2758 = vmatpush.msra.mxu0 %v2671
    %2759 = vmatpush.msra.mxu0 %v2670
    %2760 = vmatpush.msra.mxu0 %v2669
    %2761 = vmatpush.msra.mxu0 %v2668
    %2762 = vmatpush.msra.mxu0 %v2667
    %2763 = vmatpush.msra.mxu0 %v2666
    %2764 = vmatpush.msra.mxu0 %v2665
    %2765 = vmatpush.msra.mxu0 %v2664
    %2766 = vmatpush.msra.mxu0 %v2663
    %2767 = vmatpush.msra.mxu0 %v2662
    %2768 = vmatmul.f32.gmra.mxu0 %v2687
    %v2769 = vpop.f32.mrf.mxu0
    %v2770 = vadd.f32 %v2750, %v2769
    %2771 = vdwg.mxu0
    %v2772 = vld [vmem:[%s11] sm:$0x1]
    %v2773 = vld [vmem:[%s12] sm:$0x1]
    %vm2774 = vcmask 74752
    %v2775 = vsel %vm2774, %v2770, 0.0
    %v2776 = vrot.slane %v2775, 4
    %v2777 = vadd.f32 %v2775, %v2776
    %v2778 = vrot.slane %v2777, 2
    %v2779 = vadd.f32 %v2777, %v2778
    %v2780 = vrot.slane %v2779, 1
    %v2781 = vadd.f32 %v2779, %v2780
    %v2782 = vrcp.pop 2.0
    %v2783 = vmul.f32 2.0, %v2782
    %v2784 = vsub.f32 1.0, %v2783
    %v2785 = vmul.f32 %v2782, %v2784
    %v2786 = vadd.f32 %v2782, %v2785
    %vm2787 = vweird.f32 %v2782
    %v2788 = vsel %vm2787, %v2782, %v2786
    %v2789 = vmul.f32 %v2781, %v2788
    %v2790 = vsub.f32 %v2770, %v2789
    %v2791 = vmul.f32 %v2790, %v2790
    %v2792 = vsel %vm2774, %v2791, 0.0
    %v2793 = vrot.slane %v2792, 4
    %v2794 = vadd.f32 %v2792, %v2793
    %v2795 = vrot.slane %v2794, 2
    %v2796 = vadd.f32 %v2794, %v2795
    %v2797 = vrot.slane %v2796, 1
    %v2798 = vadd.f32 %v2796, %v2797
    %v2799 = vmul.f32 %v2798, %v2788
    %v2800 = vadd.f32 %v2799, 1e-05
    %v2801 = vrsqrt.pop %v2800
    %v2802 = vmul.f32 %v2801, %v2800
    %v2803 = vmul.f32 %v2802, %v2801
    %v2804 = vmul.f32 0.5, %v2803
    %v2805 = vsub.f32 1.5, %v2804
    %v2806 = vmul.f32 %v2801, %v2805
    %vm2807 = vweird.f32 %v2800
    %vm2808 = vweird.f32 %v2801
    %vm2809 = vmor %vm2807, %vm2808
    %v2810 = vsel %vm2809, %v2801, %v2806
    %v2811 = vmul.f32 %v2790, %v2810
    %v2813 = vperm.slane %v2772, 0
    %v2815 = vmul.f32 %v2811, %v2813
    %v2817 = vperm.slane %v2773, 0
    %v2819 = vadd.f32 %v2815, %v2817
    %2820 = vst.msk [vmem:[#allocation10] sm:$0x3] %vm2774, %v2819
    // Predicated region
    $region70: #{_lambda_.1} parent=1 // pred_check
      _
    $region71: #{_lambda_.1} parent=1 // pred_check_branch
      %2822 = sbr.rel (0) target = $region73
    $region72: #{_lambda_.1} parent=1 // pred_region
      %2824 = vsyncadd [#allocation4], 0
      %s2826 = sshll.u32 [#allocation10], 4
      %s2827 = int_to_ptr.vmem [resolvable:$true] %s2826
      %s2828 = sshll.u32 %s13, 4
      %s2829 = int_to_ptr.hbm [resolvable:$true] %s2828
      %2831 = dma.vmem_to_hbm [thread:$0]  %s2827, 32, %s2829, [#allocation4]
    $region73: #{_lambda_.1} parent=1 // pred_fallthru
      _
    // Predicated region
    $region74: #{_lambda_.1} parent=1 // pred_check
      _
    $region75: #{_lambda_.1} parent=1 // pred_check_branch
      %2833 = sbr.rel (0) target = $region77
    $region76: #{_lambda_.1} parent=1 // pred_region
      %2835 = dma.done [#allocation4], 32
    $region77: #{_lambda_.1} parent=1 // pred_fallthru
      _
    %2836 = vsyncpa [#allocation3], 1
    %2837 = vsyncpa [#allocation6], 1
    %2838 = vsyncpa [#allocation9], 1
    %2839 = vsyncpa [#allocation4], 1

</llo_original>
